<compile_context>
chip_gen: v5e
topology: v5e:2x2
jax: 0.10.0
libtpu: 0.0.40
codegen_flags: <defaults>
</compile_context>

<pallas_src>
import functools
import numpy as np
import jax
import jax.numpy as jnp
from jax.experimental import pallas as pl
from jax.experimental.pallas import tpu as pltpu

_VMEM_LIMIT = 48 * 1024 * 1024   # safe on v7x (64 MiB/TC) and raises v5e/v6e default


def _round_up(x, m):
    return ((x + m - 1) // m) * m


# ----------------------------------------------------------------------------
# Tiled linear: y = act(x @ w + b); weights arrive pre-cast bf16,
# activations are cast to bf16 in-kernel, accumulation is f32 into o_ref.
# ----------------------------------------------------------------------------
def _linear_kernel(x_ref, w_ref, b_ref, o_ref, *, activation):
    k = pl.program_id(2)

    @pl.when(k == 0)
    def _init():
        o_ref[...] = jnp.zeros_like(o_ref)

    o_ref[...] += jnp.dot(x_ref[...].astype(jnp.bfloat16), w_ref[...],
                          preferred_element_type=jnp.float32)

    @pl.when(k == pl.num_programs(2) - 1)
    def _fin():
        y = o_ref[...] + b_ref[...]
        if activation == "relu":
            y = jnp.maximum(y, 0.0)
        o_ref[...] = y


def _linear_ln_kernel(x_ref, w_ref, b_ref, r_ref, g_ref, be_ref, o_ref):
    """Epilogue: LayerNorm(x @ w + b + residual); tn spans the full d_model."""
    k = pl.program_id(2)

    @pl.when(k == 0)
    def _init():
        o_ref[...] = jnp.zeros_like(o_ref)

    o_ref[...] += jnp.dot(x_ref[...].astype(jnp.bfloat16), w_ref[...],
                          preferred_element_type=jnp.float32)

    @pl.when(k == pl.num_programs(2) - 1)
    def _fin():
        y = o_ref[...] + b_ref[...] + r_ref[...]
        mean = jnp.mean(y, axis=-1, keepdims=True)
        yc = y - mean
        var = jnp.mean(yc * yc, axis=-1, keepdims=True)
        o_ref[...] = yc * jax.lax.rsqrt(var + 1e-5) * g_ref[...] + be_ref[...]


def linear(x, w, b, activation="none", residual=None, gamma=None, beta=None):
    """x: [M, K] f32, w: [K, N] bf16 (pre-cast), b: [1, N] f32.
    If residual/gamma/beta are given, computes LayerNorm(x@w + b + residual)."""
    M, K = x.shape
    N = w.shape[1]
    fuse_ln = residual is not None

    # Row tiling (pad M only when needed).
    if M <= 512:
        tm = _round_up(M, 8)
        Mp = tm
    else:
        tm = 512
        Mp = _round_up(M, tm)

    # Contraction tiling: only split K when it is large and 128-divisible.
    if K % 128 == 0 and K > 512:
        tk = 512 if K % 512 == 0 else (256 if K % 256 == 0 else 128)
    else:
        tk = K

    # N tiling: full row for the LN epilogue; lane-dense 512/256/128 otherwise.
    if fuse_ln or N % 128 != 0:
        tn = N
    else:
        tn = 512 if N % 512 == 0 else (256 if N % 256 == 0 else 128)
        tn = min(tn, N)

    xp = x if Mp == M else jnp.pad(x, ((0, Mp - M), (0, 0)))
    grid = (Mp // tm, N // tn, K // tk)

    common_specs = [
        pl.BlockSpec((tm, tk), lambda i, j, k: (i, k)),
        pl.BlockSpec((tk, tn), lambda i, j, k: (k, j)),
        pl.BlockSpec((1, tn), lambda i, j, k: (0, j)),
    ]
    cparams = pltpu.CompilerParams(
        dimension_semantics=("parallel", "parallel", "arbitrary"),
        vmem_limit_bytes=_VMEM_LIMIT)

    if fuse_ln:
        rp = residual if Mp == M else jnp.pad(residual, ((0, Mp - M), (0, 0)))
        out = pl.pallas_call(
            _linear_ln_kernel,
            out_shape=jax.ShapeDtypeStruct((Mp, N), jnp.float32),
            grid=grid,
            in_specs=common_specs + [
                pl.BlockSpec((tm, tn), lambda i, j, k: (i, j)),
                pl.BlockSpec((1, tn), lambda i, j, k: (0, j)),
                pl.BlockSpec((1, tn), lambda i, j, k: (0, j)),
            ],
            out_specs=pl.BlockSpec((tm, tn), lambda i, j, k: (i, j)),
            compiler_params=cparams,
        )(xp, w, b, rp, gamma, beta)
    else:
        out = pl.pallas_call(
            functools.partial(_linear_kernel, activation=activation),
            out_shape=jax.ShapeDtypeStruct((Mp, N), jnp.float32),
            grid=grid,
            in_specs=common_specs,
            out_specs=pl.BlockSpec((tm, tn), lambda i, j, k: (i, j)),
            compiler_params=cparams,
        )(xp, w, b)

    if Mp != M:
        out = out[:M]
    return out


# ----------------------------------------------------------------------------
# Flash-style attention over lane-dense [B, S, H*d] activations.
# Grid = (B, Sq-tiles, Sk-tiles); online softmax with (m, l, acc) scratch.
# 1/sqrt(d_k) is already folded into wq at fuse time.
# ----------------------------------------------------------------------------
def _flash_attn_kernel(q_ref, k_ref, v_ref, pq_ref, pk_ref, o_ref,
                       m_ref, l_ref, acc_ref, *, H, dk, dv, tq, tks, causal):
    ki = pl.program_id(2)

    @pl.when(ki == 0)
    def _init():
        m_ref[...] = jnp.full_like(m_ref, -jnp.inf)
        l_ref[...] = jnp.zeros_like(l_ref)
        acc_ref[...] = jnp.zeros_like(acc_ref)

    q = q_ref[0]      # (tq,  H*dk) f32
    k = k_ref[0]      # (tks, H*dk) f32
    v = v_ref[0]      # (tks, H*dv) f32
    pq = pq_ref[0]    # (tq, 1)  f32, 1.0 where token is real
    pk = pk_ref[0]    # (1, tks) f32

    # Additive mask bias, built once per (q-tile, k-tile), shared across heads.
    neg = jnp.float32(-1e9)
    bias = jnp.where((pq * pk) == 0.0, neg, jnp.float32(0.0))   # (tq, tks)
    if causal:
        row = jax.lax.broadcasted_iota(jnp.int32, (tq, tks), 0) + pl.program_id(1) * tq
        col = jax.lax.broadcasted_iota(jnp.int32, (tq, tks), 1) + ki * tks
        bias = jnp.where(col > row, neg, bias)

    dn = (((1,), (1,)), ((), ()))   # q . k^T contraction
    for h in range(H):
        qh = q[:, h * dk:(h + 1) * dk].astype(jnp.bfloat16)
        kh = k[:, h * dk:(h + 1) * dk].astype(jnp.bfloat16)
        vh = v[:, h * dv:(h + 1) * dv].astype(jnp.bfloat16)

        s = jax.lax.dot_general(qh, kh, dn,
                                preferred_element_type=jnp.float32) + bias  # (tq, tks)
        m_prev = m_ref[h]                                   # (tq, 1)
        m_new = jnp.maximum(m_prev, jnp.max(s, axis=-1, keepdims=True))
        alpha = jnp.exp(m_prev - m_new)
        p = jnp.exp(s - m_new)
        l_ref[h] = alpha * l_ref[h] + jnp.sum(p, axis=-1, keepdims=True)
        acc_ref[h] = alpha * acc_ref[h] + jnp.dot(p.astype(jnp.bfloat16), vh,
                                                  preferred_element_type=jnp.float32)
        m_ref[h] = m_new

    @pl.when(ki == pl.num_programs(2) - 1)
    def _fin():
        # Reassemble the lane-dense (tq, H*dv) output and store once.
        outs = [acc_ref[h] / l_ref[h] for h in range(H)]
        o_ref[0] = jnp.concatenate(outs, axis=-1)


def attention(q, k, v, pad_q, pad_k, *, head, d_k, d_v, causal):
    """q: [B,Sq,H*dk] f32, k: [B,Sk,H*dk] f32, v: [B,Sk,H*dv] f32,
    pad_*: [B,S] (1.0 = real token)  ->  [B, Sq, H*dv] f32."""
    B, Sq, Dq = q.shape
    Sk = k.shape[1]
    Dv = v.shape[2]

    def _seq_tile(S, target):
        if S <= target:
            t = _round_up(S, 8)
            return t, t
        return target, _round_up(S, target)

    tq, Sqp = _seq_tile(Sq, 128)
    tks, Skp = _seq_tile(Sk, 256)

    if Sqp != Sq:
        q = jnp.pad(q, ((0, 0), (0, Sqp - Sq), (0, 0)))
        pad_q = jnp.pad(pad_q, ((0, 0), (0, Sqp - Sq)))
    if Skp != Sk:
        k = jnp.pad(k, ((0, 0), (0, Skp - Sk), (0, 0)))
        v = jnp.pad(v, ((0, 0), (0, Skp - Sk), (0, 0)))
        pad_k = jnp.pad(pad_k, ((0, 0), (0, Skp - Sk)))

    pq = pad_q.reshape(B, Sqp, 1).astype(jnp.float32)
    pk = pad_k.reshape(B, 1, Skp).astype(jnp.float32)

    out = pl.pallas_call(
        functools.partial(_flash_attn_kernel, H=head, dk=d_k, dv=d_v,
                          tq=tq, tks=tks, causal=causal),
        out_shape=jax.ShapeDtypeStruct((B, Sqp, head * d_v), jnp.float32),
        grid=(B, Sqp // tq, Skp // tks),
        in_specs=[
            pl.BlockSpec((1, tq, Dq), lambda b, qi, ki: (b, qi, 0)),
            pl.BlockSpec((1, tks, Dq), lambda b, qi, ki: (b, ki, 0)),
            pl.BlockSpec((1, tks, Dv), lambda b, qi, ki: (b, ki, 0)),
            pl.BlockSpec((1, tq, 1), lambda b, qi, ki: (b, qi, 0)),
            pl.BlockSpec((1, 1, tks), lambda b, qi, ki: (b, 0, ki)),
        ],
        out_specs=pl.BlockSpec((1, tq, head * d_v), lambda b, qi, ki: (b, qi, 0)),
        scratch_shapes=[
            pltpu.VMEM((head, tq, 1), jnp.float32),      # m
            pltpu.VMEM((head, tq, 1), jnp.float32),      # l
            pltpu.VMEM((head, tq, d_v), jnp.float32),    # acc
        ],
        compiler_params=pltpu.CompilerParams(
            dimension_semantics=("parallel", "parallel", "arbitrary"),
            vmem_limit_bytes=_VMEM_LIMIT),
    )(q, k, v, pq, pk)

    if Sqp != Sq:
        out = out[:, :Sq, :]
    return out


# ----------------------------------------------------------------------------
# Parameter initialization (deterministic, xavier-uniform like the PyTorch module)
# ----------------------------------------------------------------------------
def xavier(key, shape):
    fan_in, fan_out = shape[0], shape[1]
    bound = float(np.sqrt(6.0 / (fan_in + fan_out)))
    return jax.random.uniform(key, shape, jnp.float32, -bound, bound)


def init_mha(key, d_model, head, d_k, d_v):
    ks = jax.random.split(key, 4)
    return dict(
        wq=xavier(ks[0], (d_model, head * d_k)), bq=jnp.zeros((head * d_k,), jnp.float32),
        wk=xavier(ks[1], (d_model, head * d_k)), bk=jnp.zeros((head * d_k,), jnp.float32),
        wv=xavier(ks[2], (d_model, head * d_v)), bv=jnp.zeros((head * d_v,), jnp.float32),
        wo=xavier(ks[3], (head * d_v, d_model)), bo=jnp.zeros((d_model,), jnp.float32),
    )


def init_ffn(key, d_model, d_ff):
    k1, k2 = jax.random.split(key)
    return dict(
        w1=xavier(k1, (d_model, d_ff)), b1=jnp.zeros((d_ff,), jnp.float32),
        w2=xavier(k2, (d_ff, d_model)), b2=jnp.zeros((d_model,), jnp.float32),
    )


def init_ln(d_model):
    return dict(g=jnp.ones((d_model,), jnp.float32), b=jnp.zeros((d_model,), jnp.float32))


def init_params(key, N, vocab_size, d_model, head, d_k, d_v, d_ff):
    keys = jax.random.split(key, 1 + 2 * N * 3)
    emb = xavier(keys[0], (vocab_size, d_model))   # shared embedding / output weight
    enc_layers, dec_layers = [], []
    idx = 1
    for _ in range(N):
        enc_layers.append(dict(
            self=init_mha(keys[idx], d_model, head, d_k, d_v),
            ffn=init_ffn(keys[idx + 1], d_model, d_ff),
            ln1=init_ln(d_model), ln2=init_ln(d_model)))
        idx += 2
    for _ in range(N):
        dec_layers.append(dict(
            self=init_mha(keys[idx], d_model, head, d_k, d_v),
            cross=init_mha(keys[idx + 1], d_model, head, d_k, d_v),
            ffn=init_ffn(keys[idx + 2], d_model, d_ff),
            ln1=init_ln(d_model), ln2=init_ln(d_model), ln3=init_ln(d_model)))
        idx += 3
    b_out = jnp.zeros((vocab_size,), jnp.float32)
    return dict(emb=emb, enc=enc_layers, dec=dec_layers, b_out=b_out)


# ----------------------------------------------------------------------------
# One-time parameter prep: fuse Q|K|V, fold 1/sqrt(d_k), pre-cast to bf16,
# pre-reshape biases / LN params, pre-transpose the tied output weight.
# ----------------------------------------------------------------------------
def fuse_mha(p, d_k):
    inv = 1.0 / float(np.sqrt(d_k))
    wq_s = p["wq"] * inv
    bq_s = p["bq"] * inv
    return dict(
        wqkv=jnp.concatenate([wq_s, p["wk"], p["wv"]], axis=1).astype(jnp.bfloat16),
        bqkv=jnp.concatenate([bq_s, p["bk"], p["bv"]]).reshape(1, -1),
        wq=wq_s.astype(jnp.bfloat16), bq=bq_s.reshape(1, -1),
        wkv=jnp.concatenate([p["wk"], p["wv"]], axis=1).astype(jnp.bfloat16),
        bkv=jnp.concatenate([p["bk"], p["bv"]]).reshape(1, -1),
        wo=p["wo"].astype(jnp.bfloat16), bo=p["bo"].reshape(1, -1))


def fuse_ffn(p):
    return dict(w1=p["w1"].astype(jnp.bfloat16), b1=p["b1"].reshape(1, -1),
                w2=p["w2"].astype(jnp.bfloat16), b2=p["b2"].reshape(1, -1))


def fuse_ln(p):
    return dict(g=p["g"].reshape(1, -1), b=p["b"].reshape(1, -1))


def fuse_params(params, d_k):
    enc = [dict(self=fuse_mha(lp["self"], d_k), ffn=fuse_ffn(lp["ffn"]),
                ln1=fuse_ln(lp["ln1"]), ln2=fuse_ln(lp["ln2"])) for lp in params["enc"]]
    dec = [dict(self=fuse_mha(lp["self"], d_k), cross=fuse_mha(lp["cross"], d_k),
                ffn=fuse_ffn(lp["ffn"]), ln1=fuse_ln(lp["ln1"]),
                ln2=fuse_ln(lp["ln2"]), ln3=fuse_ln(lp["ln3"]))
           for lp in params["dec"]]
    return dict(emb=params["emb"],
                emb_T=jnp.transpose(params["emb"]).astype(jnp.bfloat16),
                b_out=params["b_out"].reshape(1, -1), enc=enc, dec=dec)


def sinusoidal_pe(max_len, d_model):
    pos = np.arange(max_len)[:, None].astype(np.float64)
    i = np.arange(d_model)[None, :].astype(np.float64)
    angle = pos / np.power(10000.0, (2.0 * (i // 2)) / d_model)
    pe = np.where(i % 2 == 0, np.sin(angle), np.cos(angle))
    return jnp.asarray(pe, jnp.float32)


# ----------------------------------------------------------------------------
# Model assembly (embedding gather / slicing in plain JAX; everything heavy in Pallas)
# ----------------------------------------------------------------------------
def mha_block(x_q, x_kv, pad_q, pad_k, p, ln, head, d_k, d_v, *, causal, self_attn):
    """Returns LayerNorm(x_q + MHA(x_q, x_kv)) — add+LN fused into the wo linear."""
    B, Sq, D = x_q.shape
    Sk = x_kv.shape[1]
    xq2 = x_q.reshape(B * Sq, D)
    if self_attn:
        qkv = linear(xq2, p["wqkv"], p["bqkv"])
        q = qkv[:, :head * d_k].reshape(B, Sq, head * d_k)
        k = qkv[:, head * d_k:2 * head * d_k].reshape(B, Sq, head * d_k)
        v = qkv[:, 2 * head * d_k:].reshape(B, Sq, head * d_v)
    else:
        q = linear(xq2, p["wq"], p["bq"]).reshape(B, Sq, head * d_k)
        kv = linear(x_kv.reshape(B * Sk, D), p["wkv"], p["bkv"])
        k = kv[:, :head * d_k].reshape(B, Sk, head * d_k)
        v = kv[:, head * d_k:].reshape(B, Sk, head * d_v)

    ctx = attention(q, k, v, pad_q, pad_k, head=head, d_k=d_k, d_v=d_v,
                    causal=causal)                       # [B, Sq, H*dv] lane-dense f32
    out = linear(ctx.reshape(B * Sq, head * d_v), p["wo"], p["bo"],
                 residual=xq2, gamma=ln["g"], beta=ln["b"])
    return out.reshape(B, Sq, D)


def ffn_block(x, p, ln):
    """Returns LayerNorm(x + FFN(x)) — add+LN fused into the w2 linear."""
    B, S, D = x.shape
    x2 = x.reshape(B * S, D)
    h = linear(x2, p["w1"], p["b1"], activation="relu")
    out = linear(h, p["w2"], p["b2"], residual=x2, gamma=ln["g"], beta=ln["b"])
    return out.reshape(B, S, D)


def transformer_forward(fused, src_input, tgt_input, pe, *, d_model, head, d_k, d_v):
    # NOTE: drop_rate is a no-op in eval/inference mode (deterministic forward).
    emb = fused["emb"]
    scale = float(np.sqrt(d_model))

    pad_src = (src_input != 0).astype(jnp.float32)   # [B, Ss]
    pad_tgt = (tgt_input != 0).astype(jnp.float32)   # [B, St]
    B, Ss = src_input.shape
    St = tgt_input.shape[1]

    # ---- encoder ----
    x = emb[src_input] * scale + pe[:Ss][None, :, :]
    for lp in fused["enc"]:
        x = mha_block(x, x, pad_src, pad_src, lp["self"], lp["ln1"],
                      head, d_k, d_v, causal=False, self_attn=True)
        x = ffn_block(x, lp["ffn"], lp["ln2"])
    encoder_output = x

    # ---- decoder ----
    # TODO(synk): Encoder/Decoder internals were not provided; decoder
    # self-attention combines the tgt padding mask with a causal mask built
    # in-kernel from broadcasted_iota.
    y = emb[tgt_input] * scale + pe[:St][None, :, :]
    for lp in fused["dec"]:
        y = mha_block(y, y, pad_tgt, pad_tgt, lp["self"], lp["ln1"],
                      head, d_k, d_v, causal=True, self_attn=True)
        y = mha_block(y, encoder_output, pad_tgt, pad_src, lp["cross"], lp["ln2"],
                      head, d_k, d_v, causal=False, self_attn=False)
        y = ffn_block(y, lp["ffn"], lp["ln3"])

    # ---- output projection (weight tied to the shared embedding, pre-transposed bf16) ----
    predict = linear(y.reshape(B * St, d_model), fused["emb_T"], fused["b_out"])
    return predict   # [B*St, vocab_size]


# ----------------------------------------------------------------------------
if __name__ == "__main__":
    # Small shapes consistent with the module.
    N = 2
    vocab_size = 50
    pos_max_len = 16
    d_model = 32
    head = 4
    d_k = 8
    d_v = 8
    d_ff = 64
    B = 2
    S_src = 8
    S_tgt = 8

    root = jax.random.PRNGKey(0)
    k_params, k_src, k_tgt = jax.random.split(root, 3)
    params = init_params(k_params, N, vocab_size, d_model, head, d_k, d_v, d_ff)
    fused = fuse_params(params, d_k)                  # one-time fusion / bf16 cast / transpose
    pe = sinusoidal_pe(pos_max_len, d_model)          # hoisted out of the forward

    src = jax.random.randint(k_src, (B, S_src), 1, vocab_size, dtype=jnp.int32)
    tgt = jax.random.randint(k_tgt, (B, S_tgt), 1, vocab_size, dtype=jnp.int32)
    # introduce padding (token id 0) to exercise the masks
    src = src.at[:, -2:].set(0)
    tgt = tgt.at[:, -1:].set(0)

    fwd = jax.jit(functools.partial(
        transformer_forward, d_model=d_model, head=head, d_k=d_k, d_v=d_v))

    predict = fwd(fused, src, tgt, pe)
    jax.block_until_ready(predict)
    assert predict.shape == (B * S_tgt, vocab_size)
    assert bool(jnp.all(jnp.isfinite(predict)))
    print("KERNEL_OK")
</pallas_src>

<mosaic_0001>
module attributes {stable_mosaic.version = 11 : i64} {
  func.func @_linear_kernel(%arg0: i32, %arg1: i32, %arg2: i32, %arg3: memref<16x32xf32, #tpu.memory_space<vmem>>, %arg4: memref<32x96xbf16, #tpu.memory_space<vmem>>, %arg5: memref<1x96xf32, #tpu.memory_space<vmem>>, %arg6: memref<16x96xf32, #tpu.memory_space<vmem>>) attributes {dimension_semantics = [#tpu.dimension_semantics<parallel>, #tpu.dimension_semantics<parallel>, #tpu.dimension_semantics<arbitrary>], iteration_bounds = array<i64: 1, 1, 1>, scalar_prefetch = 0 : i64, scratch_operands = 0 : i64, tpu.core_type = #tpu.core_type<tc>, window_params = [{transform_indices = @transform_0, window_bounds = array<i64: 16, 32>}, {transform_indices = @transform_1, window_bounds = array<i64: 32, 96>}, {transform_indices = @transform_2, window_bounds = array<i64: 1, 96>}, {transform_indices = @transform_3, window_bounds = array<i64: 16, 96>}]} {
    %c0_i32 = arith.constant 0 : i32
    %0 = arith.cmpi eq, %arg2, %c0_i32 : i32
    %1 = arith.extui %0 : i1 to i32
    %c0_i32_0 = arith.constant 0 : i32
    %2 = arith.cmpi ne, %1, %c0_i32_0 : i32
    scf.if %2 {
      %cst_10 = arith.constant 0.000000e+00 : f32
      %13 = vector.broadcast %cst_10 : f32 to vector<16x96xf32>
      %c0_11 = arith.constant 0 : index
      %c0_12 = arith.constant 0 : index
      %14 = vector.load %arg6[%c0_11, %c0_12] : memref<16x96xf32, #tpu.memory_space<vmem>>, vector<16x96xf32>
      tpu.vector_store %arg6[%c0_11, %c0_12], %13 {strides = array<i32>} : memref<16x96xf32, #tpu.memory_space<vmem>>, vector<16x96xf32>,
    } else {
    }
    %c0 = arith.constant 0 : index
    %c0_1 = arith.constant 0 : index
    %3 = vector.load %arg6[%c0, %c0_1] : memref<16x96xf32, #tpu.memory_space<vmem>>, vector<16x96xf32>
    %c0_2 = arith.constant 0 : index
    %c0_3 = arith.constant 0 : index
    %4 = vector.load %arg3[%c0_2, %c0_3] : memref<16x32xf32, #tpu.memory_space<vmem>>, vector<16x32xf32>
    %5 = arith.truncf %4 : vector<16x32xf32> to vector<16x32xbf16>
    %c0_4 = arith.constant 0 : index
    %c0_5 = arith.constant 0 : index
    %6 = vector.load %arg4[%c0_4, %c0_5] : memref<32x96xbf16, #tpu.memory_space<vmem>>, vector<32x96xbf16>
    %cst = arith.constant dense<0.000000e+00> : vector<16x96xf32>
    %7 = tpu.matmul %5, %6, %cst {dimension_numbers = #tpu.dot_dimension_numbers<[1], [0], [0], [1], [0, 0, 1, 1], [], []>} : vector<16x32xbf16>, vector<32x96xbf16>, vector<16x96xf32> -> vector<16x96xf32>
    %8 = arith.addf %3, %7 : vector<16x96xf32>
    %c0_6 = arith.constant 0 : index
    %c0_7 = arith.constant 0 : index
    %9 = vector.load %arg6[%c0_6, %c0_7] : memref<16x96xf32, #tpu.memory_space<vmem>>, vector<16x96xf32>
    tpu.vector_store %arg6[%c0_6, %c0_7], %8 {strides = array<i32>} : memref<16x96xf32, #tpu.memory_space<vmem>>, vector<16x96xf32>,
    %c0_i32_8 = arith.constant 0 : i32
    %10 = arith.cmpi eq, %arg2, %c0_i32_8 : i32
    %11 = arith.extui %10 : i1 to i32
    %c0_i32_9 = arith.constant 0 : i32
    %12 = arith.cmpi ne, %11, %c0_i32_9 : i32
    scf.if %12 {
      %c0_10 = arith.constant 0 : index
      %c0_11 = arith.constant 0 : index
      %13 = vector.load %arg6[%c0_10, %c0_11] : memref<16x96xf32, #tpu.memory_space<vmem>>, vector<16x96xf32>
      %c0_12 = arith.constant 0 : index
      %c0_13 = arith.constant 0 : index
      %14 = vector.load %arg5[%c0_12, %c0_13] : memref<1x96xf32, #tpu.memory_space<vmem>>, vector<1x96xf32>
      %15 = vector.broadcast %14 : vector<1x96xf32> to vector<16x96xf32>
      %16 = arith.addf %13, %15 : vector<16x96xf32>
      %c0_14 = arith.constant 0 : index
      %c0_15 = arith.constant 0 : index
      %17 = vector.load %arg6[%c0_14, %c0_15] : memref<16x96xf32, #tpu.memory_space<vmem>>, vector<16x96xf32>
      tpu.vector_store %arg6[%c0_14, %c0_15], %16 {strides = array<i32>} : memref<16x96xf32, #tpu.memory_space<vmem>>, vector<16x96xf32>,
    } else {
    }
    return
  }
  func.func @transform_0(%arg0: i32, %arg1: i32, %arg2: i32) -> (i32, i32) {
    %c0_i32 = arith.constant 0 : i32
    return %arg0, %arg2 : i32, i32
  }
  func.func @transform_1(%arg0: i32, %arg1: i32, %arg2: i32) -> (i32, i32) {
    %c0_i32 = arith.constant 0 : i32
    return %arg2, %arg1 : i32, i32
  }
  func.func @transform_2(%arg0: i32, %arg1: i32, %arg2: i32) -> (i32, i32) {
    %c0_i32 = arith.constant 0 : i32
    %c0_i32_0 = arith.constant 0 : i32
    return %c0_i32, %arg1 : i32, i32
  }
  func.func @transform_3(%arg0: i32, %arg1: i32, %arg2: i32) -> (i32, i32) {
    %c0_i32 = arith.constant 0 : i32
    return %arg0, %arg1 : i32, i32
  }
}

module attributes {stable_mosaic.version = 11 : i64} {
  func.func @_flash_attn_kernel(%arg0: i32, %arg1: i32, %arg2: i32, %arg3: memref<1x8x32xf32, #tpu.memory_space<vmem>>, %arg4: memref<1x8x32xf32, #tpu.memory_space<vmem>>, %arg5: memref<1x8x32xf32, #tpu.memory_space<vmem>>, %arg6: memref<1x8x1xf32, #tpu.memory_space<vmem>>, %arg7: memref<1x1x8xf32, #tpu.memory_space<vmem>>, %arg8: memref<1x8x32xf32, #tpu.memory_space<vmem>>, %arg9: memref<4x8x1xf32, #tpu.memory_space<vmem>>, %arg10: memref<4x8x1xf32, #tpu.memory_space<vmem>>, %arg11: memref<4x8x8xf32, #tpu.memory_space<vmem>>) attributes {dimension_semantics = [#tpu.dimension_semantics<parallel>, #tpu.dimension_semantics<parallel>, #tpu.dimension_semantics<arbitrary>], iteration_bounds = array<i64: 2, 1, 1>, scalar_prefetch = 0 : i64, scratch_operands = 3 : i64, tpu.core_type = #tpu.core_type<tc>, window_params = [{transform_indices = @transform_0, window_bounds = array<i64: 1, 8, 32>}, {transform_indices = @transform_1, window_bounds = array<i64: 1, 8, 32>}, {transform_indices = @transform_2, window_bounds = array<i64: 1, 8, 32>}, {transform_indices = @transform_3, window_bounds = array<i64: 1, 8, 1>}, {transform_indices = @transform_4, window_bounds = array<i64: 1, 1, 8>}, {transform_indices = @transform_5, window_bounds = array<i64: 1, 8, 32>}]} {
    %c0_i32 = arith.constant 0 : i32
    %0 = arith.cmpi eq, %arg2, %c0_i32 : i32
    %1 = arith.extui %0 : i1 to i32
    %c0_i32_0 = arith.constant 0 : i32
    %2 = arith.cmpi ne, %1, %c0_i32_0 : i32
    scf.if %2 {
      %cst_104 = arith.constant 0xFF800000 : f32
      %184 = vector.broadcast %cst_104 : f32 to vector<4x8x1xf32>
      %c0_105 = arith.constant 0 : index
      %c0_106 = arith.constant 0 : index
      %c0_107 = arith.constant 0 : index
      %185 = vector.load %arg9[%c0_105, %c0_106, %c0_107] : memref<4x8x1xf32, #tpu.memory_space<vmem>>, vector<4x8x1xf32>
      tpu.vector_store %arg9[%c0_105, %c0_106, %c0_107], %184 {strides = array<i32>} : memref<4x8x1xf32, #tpu.memory_space<vmem>>, vector<4x8x1xf32>,
      %cst_108 = arith.constant 0.000000e+00 : f32
      %186 = vector.broadcast %cst_108 : f32 to vector<4x8x1xf32>
      %c0_109 = arith.constant 0 : index
      %c0_110 = arith.constant 0 : index
      %c0_111 = arith.constant 0 : index
      %187 = vector.load %arg10[%c0_109, %c0_110, %c0_111] : memref<4x8x1xf32, #tpu.memory_space<vmem>>, vector<4x8x1xf32>
      tpu.vector_store %arg10[%c0_109, %c0_110, %c0_111], %186 {strides = array<i32>} : memref<4x8x1xf32, #tpu.memory_space<vmem>>, vector<4x8x1xf32>,
      %cst_112 = arith.constant 0.000000e+00 : f32
      %188 = vector.broadcast %cst_112 : f32 to vector<4x8x8xf32>
      %c0_113 = arith.constant 0 : index
      %c0_114 = arith.constant 0 : index
      %c0_115 = arith.constant 0 : index
      %189 = vector.load %arg11[%c0_113, %c0_114, %c0_115] : memref<4x8x8xf32, #tpu.memory_space<vmem>>, vector<4x8x8xf32>
      tpu.vector_store %arg11[%c0_113, %c0_114, %c0_115], %188 {strides = array<i32>} : memref<4x8x8xf32, #tpu.memory_space<vmem>>, vector<4x8x8xf32>,
    } else {
    }
    %c0 = arith.constant 0 : index
    %c0_1 = arith.constant 0 : index
    %c0_2 = arith.constant 0 : index
    %3 = vector.load %arg3[%c0, %c0_1, %c0_2] : memref<1x8x32xf32, #tpu.memory_space<vmem>>, vector<1x8x32xf32>
    %4 = vector.shape_cast %3 : vector<1x8x32xf32> to vector<8x32xf32>
    %c0_3 = arith.constant 0 : index
    %c0_4 = arith.constant 0 : index
    %c0_5 = arith.constant 0 : index
    %5 = vector.load %arg4[%c0_3, %c0_4, %c0_5] : memref<1x8x32xf32, #tpu.memory_space<vmem>>, vector<1x8x32xf32>
    %6 = vector.shape_cast %5 : vector<1x8x32xf32> to vector<8x32xf32>
    %c0_6 = arith.constant 0 : index
    %c0_7 = arith.constant 0 : index
    %c0_8 = arith.constant 0 : index
    %7 = vector.load %arg5[%c0_6, %c0_7, %c0_8] : memref<1x8x32xf32, #tpu.memory_space<vmem>>, vector<1x8x32xf32>
    %8 = vector.shape_cast %7 : vector<1x8x32xf32> to vector<8x32xf32>
    %c0_9 = arith.constant 0 : index
    %c0_10 = arith.constant 0 : index
    %c0_11 = arith.constant 0 : index
    %9 = vector.load %arg6[%c0_9, %c0_10, %c0_11] : memref<1x8x1xf32, #tpu.memory_space<vmem>>, vector<1x8x1xf32>
    %10 = vector.shape_cast %9 : vector<1x8x1xf32> to vector<8x1xf32>
    %c0_12 = arith.constant 0 : index
    %c0_13 = arith.constant 0 : index
    %c0_14 = arith.constant 0 : index
    %11 = vector.load %arg7[%c0_12, %c0_13, %c0_14] : memref<1x1x8xf32, #tpu.memory_space<vmem>>, vector<1x1x8xf32>
    %12 = vector.shape_cast %11 : vector<1x1x8xf32> to vector<1x8xf32>
    %13 = vector.broadcast %10 : vector<8x1xf32> to vector<8x8xf32>
    %14 = vector.broadcast %12 : vector<1x8xf32> to vector<8x8xf32>
    %15 = arith.mulf %13, %14 : vector<8x8xf32>
    %cst = arith.constant 0.000000e+00 : f32
    %16 = vector.broadcast %cst : f32 to vector<8x8xf32>
    %17 = arith.cmpf oeq, %15, %16 : vector<8x8xf32>
    %cst_15 = arith.constant -1.000000e+09 : f32
    %cst_16 = arith.constant 0.000000e+00 : f32
    %18 = vector.broadcast %cst_15 : f32 to vector<8x8xf32>
    %19 = vector.broadcast %cst_16 : f32 to vector<8x8xf32>
    %20 = arith.select %17, %18, %19 : vector<8x8xi1>, vector<8x8xf32>
    %21 = vector.extract_strided_slice %4 {offsets = [0, 0], sizes = [8, 8], strides = [1, 1]} : vector<8x32xf32> to vector<8x8xf32>
    %22 = arith.truncf %21 : vector<8x8xf32> to vector<8x8xbf16>
    %23 = vector.extract_strided_slice %6 {offsets = [0, 0], sizes = [8, 8], strides = [1, 1]} : vector<8x32xf32> to vector<8x8xf32>
    %24 = arith.truncf %23 : vector<8x8xf32> to vector<8x8xbf16>
    %25 = vector.extract_strided_slice %8 {offsets = [0, 0], sizes = [8, 8], strides = [1, 1]} : vector<8x32xf32> to vector<8x8xf32>
    %26 = arith.truncf %25 : vector<8x8xf32> to vector<8x8xbf16>
    %cst_17 = arith.constant dense<0.000000e+00> : vector<8x8xf32>
    %27 = tpu.matmul %22, %24, %cst_17 {dimension_numbers = #tpu.dot_dimension_numbers<[1], [1], [0], [0], [0, 0, 1, 0], [], []>} : vector<8x8xbf16>, vector<8x8xbf16>, vector<8x8xf32> -> vector<8x8xf32>
    %28 = arith.addf %27, %20 : vector<8x8xf32>
    %c0_18 = arith.constant 0 : index
    %c0_19 = arith.constant 0 : index
    %c0_20 = arith.constant 0 : index
    %29 = vector.load %arg9[%c0_18, %c0_19, %c0_20] : memref<4x8x1xf32, #tpu.memory_space<vmem>>, vector<1x8x1xf32>
    %30 = vector.shape_cast %29 : vector<1x8x1xf32> to vector<8x1xf32>
    %cst_21 = arith.constant dense<0xFF800000> : vector<8xf32>
    %31 = vector.multi_reduction <maximumf>, %28, %cst_21 [1] : vector<8x8xf32> to vector<8xf32>
    %32 = vector.shape_cast %31 : vector<8xf32> to vector<8x1xf32>
    %33 = arith.maximumf %30, %32 : vector<8x1xf32>
    %34 = arith.subf %30, %33 : vector<8x1xf32>
    %35 = math.exp %34 : vector<8x1xf32>
    %36 = vector.broadcast %33 : vector<8x1xf32> to vector<8x8xf32>
    %37 = arith.subf %28, %36 : vector<8x8xf32>
    %38 = math.exp %37 : vector<8x8xf32>
    %c0_22 = arith.constant 0 : index
    %c0_23 = arith.constant 0 : index
    %c0_24 = arith.constant 0 : index
    %39 = vector.load %arg10[%c0_22, %c0_23, %c0_24] : memref<4x8x1xf32, #tpu.memory_space<vmem>>, vector<1x8x1xf32>
    %40 = vector.shape_cast %39 : vector<1x8x1xf32> to vector<8x1xf32>
    %41 = arith.mulf %35, %40 : vector<8x1xf32>
    %cst_25 = arith.constant dense<0.000000e+00> : vector<8xf32>
    %42 = vector.multi_reduction <add>, %38, %cst_25 [1] : vector<8x8xf32> to vector<8xf32>
    %43 = vector.shape_cast %42 : vector<8xf32> to vector<8x1xf32>
    %44 = arith.addf %41, %43 : vector<8x1xf32>
    %c0_26 = arith.constant 0 : index
    %c0_27 = arith.constant 0 : index
    %c0_28 = arith.constant 0 : index
    %45 = vector.load %arg10[%c0_26, %c0_27, %c0_28] : memref<4x8x1xf32, #tpu.memory_space<vmem>>, vector<1x8x1xf32>
    %46 = vector.shape_cast %45 : vector<1x8x1xf32> to vector<8x1xf32>
    %47 = vector.shape_cast %44 : vector<8x1xf32> to vector<1x8x1xf32>
    tpu.vector_store %arg10[%c0_26, %c0_27, %c0_28], %47 {strides = array<i32>} : memref<4x8x1xf32, #tpu.memory_space<vmem>>, vector<1x8x1xf32>,
    %c0_29 = arith.constant 0 : index
    %c0_30 = arith.constant 0 : index
    %c0_31 = arith.constant 0 : index
    %48 = vector.load %arg11[%c0_29, %c0_30, %c0_31] : memref<4x8x8xf32, #tpu.memory_space<vmem>>, vector<1x8x8xf32>
    %49 = vector.shape_cast %48 : vector<1x8x8xf32> to vector<8x8xf32>
    %50 = vector.broadcast %35 : vector<8x1xf32> to vector<8x8xf32>
    %51 = arith.mulf %50, %49 : vector<8x8xf32>
    %52 = arith.truncf %38 : vector<8x8xf32> to vector<8x8xbf16>
    %cst_32 = arith.constant dense<0.000000e+00> : vector<8x8xf32>
    %53 = tpu.matmul %52, %26, %cst_32 {dimension_numbers = #tpu.dot_dimension_numbers<[1], [0], [0], [1], [0, 0, 1, 1], [], []>} : vector<8x8xbf16>, vector<8x8xbf16>, vector<8x8xf32> -> vector<8x8xf32>
    %54 = arith.addf %51, %53 : vector<8x8xf32>
    %c0_33 = arith.constant 0 : index
    %c0_34 = arith.constant 0 : index
    %c0_35 = arith.constant 0 : index
    %55 = vector.load %arg11[%c0_33, %c0_34, %c0_35] : memref<4x8x8xf32, #tpu.memory_space<vmem>>, vector<1x8x8xf32>
    %56 = vector.shape_cast %55 : vector<1x8x8xf32> to vector<8x8xf32>
    %57 = vector.shape_cast %54 : vector<8x8xf32> to vector<1x8x8xf32>
    tpu.vector_store %arg11[%c0_33, %c0_34, %c0_35], %57 {strides = array<i32>} : memref<4x8x8xf32, #tpu.memory_space<vmem>>, vector<1x8x8xf32>,
    %c0_36 = arith.constant 0 : index
    %c0_37 = arith.constant 0 : index
    %c0_38 = arith.constant 0 : index
    %58 = vector.load %arg9[%c0_36, %c0_37, %c0_38] : memref<4x8x1xf32, #tpu.memory_space<vmem>>, vector<1x8x1xf32>
    %59 = vector.shape_cast %58 : vector<1x8x1xf32> to vector<8x1xf32>
    %60 = vector.shape_cast %33 : vector<8x1xf32> to vector<1x8x1xf32>
    tpu.vector_store %arg9[%c0_36, %c0_37, %c0_38], %60 {strides = array<i32>} : memref<4x8x1xf32, #tpu.memory_space<vmem>>, vector<1x8x1xf32>,
    %61 = vector.extract_strided_slice %4 {offsets = [0, 8], sizes = [8, 8], strides = [1, 1]} : vector<8x32xf32> to vector<8x8xf32>
    %62 = arith.truncf %61 : vector<8x8xf32> to vector<8x8xbf16>
    %63 = vector.extract_strided_slice %6 {offsets = [0, 8], sizes = [8, 8], strides = [1, 1]} : vector<8x32xf32> to vector<8x8xf32>
    %64 = arith.truncf %63 : vector<8x8xf32> to vector<8x8xbf16>
    %65 = vector.extract_strided_slice %8 {offsets = [0, 8], sizes = [8, 8], strides = [1, 1]} : vector<8x32xf32> to vector<8x8xf32>
    %66 = arith.truncf %65 : vector<8x8xf32> to vector<8x8xbf16>
    %cst_39 = arith.constant dense<0.000000e+00> : vector<8x8xf32>
    %67 = tpu.matmul %62, %64, %cst_39 {dimension_numbers = #tpu.dot_dimension_numbers<[1], [1], [0], [0], [0, 0, 1, 0], [], []>} : vector<8x8xbf16>, vector<8x8xbf16>, vector<8x8xf32> -> vector<8x8xf32>
    %68 = arith.addf %67, %20 : vector<8x8xf32>
    %c1 = arith.constant 1 : index
    %c0_40 = arith.constant 0 : index
    %c0_41 = arith.constant 0 : index
    %69 = vector.load %arg9[%c1, %c0_40, %c0_41] : memref<4x8x1xf32, #tpu.memory_space<vmem>>, vector<1x8x1xf32>
    %70 = vector.shape_cast %69 : vector<1x8x1xf32> to vector<8x1xf32>
    %cst_42 = arith.constant dense<0xFF800000> : vector<8xf32>
    %71 = vector.multi_reduction <maximumf>, %68, %cst_42 [1] : vector<8x8xf32> to vector<8xf32>
    %72 = vector.shape_cast %71 : vector<8xf32> to vector<8x1xf32>
    %73 = arith.maximumf %70, %72 : vector<8x1xf32>
    %74 = arith.subf %70, %73 : vector<8x1xf32>
    %75 = math.exp %74 : vector<8x1xf32>
    %76 = vector.broadcast %73 : vector<8x1xf32> to vector<8x8xf32>
    %77 = arith.subf %68, %76 : vector<8x8xf32>
    %78 = math.exp %77 : vector<8x8xf32>
    %c1_43 = arith.constant 1 : index
    %c0_44 = arith.constant 0 : index
    %c0_45 = arith.constant 0 : index
    %79 = vector.load %arg10[%c1_43, %c0_44, %c0_45] : memref<4x8x1xf32, #tpu.memory_space<vmem>>, vector<1x8x1xf32>
    %80 = vector.shape_cast %79 : vector<1x8x1xf32> to vector<8x1xf32>
    %81 = arith.mulf %75, %80 : vector<8x1xf32>
    %cst_46 = arith.constant dense<0.000000e+00> : vector<8xf32>
    %82 = vector.multi_reduction <add>, %78, %cst_46 [1] : vector<8x8xf32> to vector<8xf32>
    %83 = vector.shape_cast %82 : vector<8xf32> to vector<8x1xf32>
    %84 = arith.addf %81, %83 : vector<8x1xf32>
    %c1_47 = arith.constant 1 : index
    %c0_48 = arith.constant 0 : index
    %c0_49 = arith.constant 0 : index
    %85 = vector.load %arg10[%c1_47, %c0_48, %c0_49] : memref<4x8x1xf32, #tpu.memory_space<vmem>>, vector<1x8x1xf32>
    %86 = vector.shape_cast %85 : vector<1x8x1xf32> to vector<8x1xf32>
    %87 = vector.shape_cast %84 : vector<8x1xf32> to vector<1x8x1xf32>
    tpu.vector_store %arg10[%c1_47, %c0_48, %c0_49], %87 {strides = array<i32>} : memref<4x8x1xf32, #tpu.memory_space<vmem>>, vector<1x8x1xf32>,
    %c1_50 = arith.constant 1 : index
    %c0_51 = arith.constant 0 : index
    %c0_52 = arith.constant 0 : index
    %88 = vector.load %arg11[%c1_50, %c0_51, %c0_52] : memref<4x8x8xf32, #tpu.memory_space<vmem>>, vector<1x8x8xf32>
    %89 = vector.shape_cast %88 : vector<1x8x8xf32> to vector<8x8xf32>
    %90 = vector.broadcast %75 : vector<8x1xf32> to vector<8x8xf32>
    %91 = arith.mulf %90, %89 : vector<8x8xf32>
    %92 = arith.truncf %78 : vector<8x8xf32> to vector<8x8xbf16>
    %cst_53 = arith.constant dense<0.000000e+00> : vector<8x8xf32>
    %93 = tpu.matmul %92, %66, %cst_53 {dimension_numbers = #tpu.dot_dimension_numbers<[1], [0], [0], [1], [0, 0, 1, 1], [], []>} : vector<8x8xbf16>, vector<8x8xbf16>, vector<8x8xf32> -> vector<8x8xf32>
    %94 = arith.addf %91, %93 : vector<8x8xf32>
    %c1_54 = arith.constant 1 : index
    %c0_55 = arith.constant 0 : index
    %c0_56 = arith.constant 0 : index
    %95 = vector.load %arg11[%c1_54, %c0_55, %c0_56] : memref<4x8x8xf32, #tpu.memory_space<vmem>>, vector<1x8x8xf32>
    %96 = vector.shape_cast %95 : vector<1x8x8xf32> to vector<8x8xf32>
    %97 = vector.shape_cast %94 : vector<8x8xf32> to vector<1x8x8xf32>
    tpu.vector_store %arg11[%c1_54, %c0_55, %c0_56], %97 {strides = array<i32>} : memref<4x8x8xf32, #tpu.memory_space<vmem>>, vector<1x8x8xf32>,
    %c1_57 = arith.constant 1 : index
    %c0_58 = arith.constant 0 : index
    %c0_59 = arith.constant 0 : index
    %98 = vector.load %arg9[%c1_57, %c0_58, %c0_59] : memref<4x8x1xf32, #tpu.memory_space<vmem>>, vector<1x8x1xf32>
    %99 = vector.shape_cast %98 : vector<1x8x1xf32> to vector<8x1xf32>
    %100 = vector.shape_cast %73 : vector<8x1xf32> to vector<1x8x1xf32>
    tpu.vector_store %arg9[%c1_57, %c0_58, %c0_59], %100 {strides = array<i32>} : memref<4x8x1xf32, #tpu.memory_space<vmem>>, vector<1x8x1xf32>,
    %101 = vector.extract_strided_slice %4 {offsets = [0, 16], sizes = [8, 8], strides = [1, 1]} : vector<8x32xf32> to vector<8x8xf32>
    %102 = arith.truncf %101 : vector<8x8xf32> to vector<8x8xbf16>
    %103 = vector.extract_strided_slice %6 {offsets = [0, 16], sizes = [8, 8], strides = [1, 1]} : vector<8x32xf32> to vector<8x8xf32>
    %104 = arith.truncf %103 : vector<8x8xf32> to vector<8x8xbf16>
    %105 = vector.extract_strided_slice %8 {offsets = [0, 16], sizes = [8, 8], strides = [1, 1]} : vector<8x32xf32> to vector<8x8xf32>
    %106 = arith.truncf %105 : vector<8x8xf32> to vector<8x8xbf16>
    %cst_60 = arith.constant dense<0.000000e+00> : vector<8x8xf32>
    %107 = tpu.matmul %102, %104, %cst_60 {dimension_numbers = #tpu.dot_dimension_numbers<[1], [1], [0], [0], [0, 0, 1, 0], [], []>} : vector<8x8xbf16>, vector<8x8xbf16>, vector<8x8xf32> -> vector<8x8xf32>
    %108 = arith.addf %107, %20 : vector<8x8xf32>
    %c2 = arith.constant 2 : index
    %c0_61 = arith.constant 0 : index
    %c0_62 = arith.constant 0 : index
    %109 = vector.load %arg9[%c2, %c0_61, %c0_62] : memref<4x8x1xf32, #tpu.memory_space<vmem>>, vector<1x8x1xf32>
    %110 = vector.shape_cast %109 : vector<1x8x1xf32> to vector<8x1xf32>
    %cst_63 = arith.constant dense<0xFF800000> : vector<8xf32>
    %111 = vector.multi_reduction <maximumf>, %108, %cst_63 [1] : vector<8x8xf32> to vector<8xf32>
    %112 = vector.shape_cast %111 : vector<8xf32> to vector<8x1xf32>
    %113 = arith.maximumf %110, %112 : vector<8x1xf32>
    %114 = arith.subf %110, %113 : vector<8x1xf32>
    %115 = math.exp %114 : vector<8x1xf32>
    %116 = vector.broadcast %113 : vector<8x1xf32> to vector<8x8xf32>
    %117 = arith.subf %108, %116 : vector<8x8xf32>
    %118 = math.exp %117 : vector<8x8xf32>
    %c2_64 = arith.constant 2 : index
    %c0_65 = arith.constant 0 : index
    %c0_66 = arith.constant 0 : index
    %119 = vector.load %arg10[%c2_64, %c0_65, %c0_66] : memref<4x8x1xf32, #tpu.memory_space<vmem>>, vector<1x8x1xf32>
    %120 = vector.shape_cast %119 : vector<1x8x1xf32> to vector<8x1xf32>
    %121 = arith.mulf %115, %120 : vector<8x1xf32>
    %cst_67 = arith.constant dense<0.000000e+00> : vector<8xf32>
    %122 = vector.multi_reduction <add>, %118, %cst_67 [1] : vector<8x8xf32> to vector<8xf32>
    %123 = vector.shape_cast %122 : vector<8xf32> to vector<8x1xf32>
    %124 = arith.addf %121, %123 : vector<8x1xf32>
    %c2_68 = arith.constant 2 : index
    %c0_69 = arith.constant 0 : index
    %c0_70 = arith.constant 0 : index
    %125 = vector.load %arg10[%c2_68, %c0_69, %c0_70] : memref<4x8x1xf32, #tpu.memory_space<vmem>>, vector<1x8x1xf32>
    %126 = vector.shape_cast %125 : vector<1x8x1xf32> to vector<8x1xf32>
    %127 = vector.shape_cast %124 : vector<8x1xf32> to vector<1x8x1xf32>
    tpu.vector_store %arg10[%c2_68, %c0_69, %c0_70], %127 {strides = array<i32>} : memref<4x8x1xf32, #tpu.memory_space<vmem>>, vector<1x8x1xf32>,
    %c2_71 = arith.constant 2 : index
    %c0_72 = arith.constant 0 : index
    %c0_73 = arith.constant 0 : index
    %128 = vector.load %arg11[%c2_71, %c0_72, %c0_73] : memref<4x8x8xf32, #tpu.memory_space<vmem>>, vector<1x8x8xf32>
    %129 = vector.shape_cast %128 : vector<1x8x8xf32> to vector<8x8xf32>
    %130 = vector.broadcast %115 : vector<8x1xf32> to vector<8x8xf32>
    %131 = arith.mulf %130, %129 : vector<8x8xf32>
    %132 = arith.truncf %118 : vector<8x8xf32> to vector<8x8xbf16>
    %cst_74 = arith.constant dense<0.000000e+00> : vector<8x8xf32>
    %133 = tpu.matmul %132, %106, %cst_74 {dimension_numbers = #tpu.dot_dimension_numbers<[1], [0], [0], [1], [0, 0, 1, 1], [], []>} : vector<8x8xbf16>, vector<8x8xbf16>, vector<8x8xf32> -> vector<8x8xf32>
    %134 = arith.addf %131, %133 : vector<8x8xf32>
    %c2_75 = arith.constant 2 : index
    %c0_76 = arith.constant 0 : index
    %c0_77 = arith.constant 0 : index
    %135 = vector.load %arg11[%c2_75, %c0_76, %c0_77] : memref<4x8x8xf32, #tpu.memory_space<vmem>>, vector<1x8x8xf32>
    %136 = vector.shape_cast %135 : vector<1x8x8xf32> to vector<8x8xf32>
    %137 = vector.shape_cast %134 : vector<8x8xf32> to vector<1x8x8xf32>
    tpu.vector_store %arg11[%c2_75, %c0_76, %c0_77], %137 {strides = array<i32>} : memref<4x8x8xf32, #tpu.memory_space<vmem>>, vector<1x8x8xf32>,
    %c2_78 = arith.constant 2 : index
    %c0_79 = arith.constant 0 : index
    %c0_80 = arith.constant 0 : index
    %138 = vector.load %arg9[%c2_78, %c0_79, %c0_80] : memref<4x8x1xf32, #tpu.memory_space<vmem>>, vector<1x8x1xf32>
    %139 = vector.shape_cast %138 : vector<1x8x1xf32> to vector<8x1xf32>
    %140 = vector.shape_cast %113 : vector<8x1xf32> to vector<1x8x1xf32>
    tpu.vector_store %arg9[%c2_78, %c0_79, %c0_80], %140 {strides = array<i32>} : memref<4x8x1xf32, #tpu.memory_space<vmem>>, vector<1x8x1xf32>,
    %141 = vector.extract_strided_slice %4 {offsets = [0, 24], sizes = [8, 8], strides = [1, 1]} : vector<8x32xf32> to vector<8x8xf32>
    %142 = arith.truncf %141 : vector<8x8xf32> to vector<8x8xbf16>
    %143 = vector.extract_strided_slice %6 {offsets = [0, 24], sizes = [8, 8], strides = [1, 1]} : vector<8x32xf32> to vector<8x8xf32>
    %144 = arith.truncf %143 : vector<8x8xf32> to vector<8x8xbf16>
    %145 = vector.extract_strided_slice %8 {offsets = [0, 24], sizes = [8, 8], strides = [1, 1]} : vector<8x32xf32> to vector<8x8xf32>
    %146 = arith.truncf %145 : vector<8x8xf32> to vector<8x8xbf16>
    %cst_81 = arith.constant dense<0.000000e+00> : vector<8x8xf32>
    %147 = tpu.matmul %142, %144, %cst_81 {dimension_numbers = #tpu.dot_dimension_numbers<[1], [1], [0], [0], [0, 0, 1, 0], [], []>} : vector<8x8xbf16>, vector<8x8xbf16>, vector<8x8xf32> -> vector<8x8xf32>
    %148 = arith.addf %147, %20 : vector<8x8xf32>
    %c3 = arith.constant 3 : index
    %c0_82 = arith.constant 0 : index
    %c0_83 = arith.constant 0 : index
    %149 = vector.load %arg9[%c3, %c0_82, %c0_83] : memref<4x8x1xf32, #tpu.memory_space<vmem>>, vector<1x8x1xf32>
    %150 = vector.shape_cast %149 : vector<1x8x1xf32> to vector<8x1xf32>
    %cst_84 = arith.constant dense<0xFF800000> : vector<8xf32>
    %151 = vector.multi_reduction <maximumf>, %148, %cst_84 [1] : vector<8x8xf32> to vector<8xf32>
    %152 = vector.shape_cast %151 : vector<8xf32> to vector<8x1xf32>
    %153 = arith.maximumf %150, %152 : vector<8x1xf32>
    %154 = arith.subf %150, %153 : vector<8x1xf32>
    %155 = math.exp %154 : vector<8x1xf32>
    %156 = vector.broadcast %153 : vector<8x1xf32> to vector<8x8xf32>
    %157 = arith.subf %148, %156 : vector<8x8xf32>
    %158 = math.exp %157 : vector<8x8xf32>
    %c3_85 = arith.constant 3 : index
    %c0_86 = arith.constant 0 : index
    %c0_87 = arith.constant 0 : index
    %159 = vector.load %arg10[%c3_85, %c0_86, %c0_87] : memref<4x8x1xf32, #tpu.memory_space<vmem>>, vector<1x8x1xf32>
    %160 = vector.shape_cast %159 : vector<1x8x1xf32> to vector<8x1xf32>
    %161 = arith.mulf %155, %160 : vector<8x1xf32>
    %cst_88 = arith.constant dense<0.000000e+00> : vector<8xf32>
    %162 = vector.multi_reduction <add>, %158, %cst_88 [1] : vector<8x8xf32> to vector<8xf32>
    %163 = vector.shape_cast %162 : vector<8xf32> to vector<8x1xf32>
    %164 = arith.addf %161, %163 : vector<8x1xf32>
    %c3_89 = arith.constant 3 : index
    %c0_90 = arith.constant 0 : index
    %c0_91 = arith.constant 0 : index
    %165 = vector.load %arg10[%c3_89, %c0_90, %c0_91] : memref<4x8x1xf32, #tpu.memory_space<vmem>>, vector<1x8x1xf32>
    %166 = vector.shape_cast %165 : vector<1x8x1xf32> to vector<8x1xf32>
    %167 = vector.shape_cast %164 : vector<8x1xf32> to vector<1x8x1xf32>
    tpu.vector_store %arg10[%c3_89, %c0_90, %c0_91], %167 {strides = array<i32>} : memref<4x8x1xf32, #tpu.memory_space<vmem>>, vector<1x8x1xf32>,
    %c3_92 = arith.constant 3 : index
    %c0_93 = arith.constant 0 : index
    %c0_94 = arith.constant 0 : index
    %168 = vector.load %arg11[%c3_92, %c0_93, %c0_94] : memref<4x8x8xf32, #tpu.memory_space<vmem>>, vector<1x8x8xf32>
    %169 = vector.shape_cast %168 : vector<1x8x8xf32> to vector<8x8xf32>
    %170 = vector.broadcast %155 : vector<8x1xf32> to vector<8x8xf32>
    %171 = arith.mulf %170, %169 : vector<8x8xf32>
    %172 = arith.truncf %158 : vector<8x8xf32> to vector<8x8xbf16>
    %cst_95 = arith.constant dense<0.000000e+00> : vector<8x8xf32>
    %173 = tpu.matmul %172, %146, %cst_95 {dimension_numbers = #tpu.dot_dimension_numbers<[1], [0], [0], [1], [0, 0, 1, 1], [], []>} : vector<8x8xbf16>, vector<8x8xbf16>, vector<8x8xf32> -> vector<8x8xf32>
    %174 = arith.addf %171, %173 : vector<8x8xf32>
    %c3_96 = arith.constant 3 : index
    %c0_97 = arith.constant 0 : index
    %c0_98 = arith.constant 0 : index
    %175 = vector.load %arg11[%c3_96, %c0_97, %c0_98] : memref<4x8x8xf32, #tpu.memory_space<vmem>>, vector<1x8x8xf32>
    %176 = vector.shape_cast %175 : vector<1x8x8xf32> to vector<8x8xf32>
    %177 = vector.shape_cast %174 : vector<8x8xf32> to vector<1x8x8xf32>
    tpu.vector_store %arg11[%c3_96, %c0_97, %c0_98], %177 {strides = array<i32>} : memref<4x8x8xf32, #tpu.memory_space<vmem>>, vector<1x8x8xf32>,
    %c3_99 = arith.constant 3 : index
    %c0_100 = arith.constant 0 : index
    %c0_101 = arith.constant 0 : index
    %178 = vector.load %arg9[%c3_99, %c0_100, %c0_101] : memref<4x8x1xf32, #tpu.memory_space<vmem>>, vector<1x8x1xf32>
    %179 = vector.shape_cast %178 : vector<1x8x1xf32> to vector<8x1xf32>
    %180 = vector.shape_cast %153 : vector<8x1xf32> to vector<1x8x1xf32>
    tpu.vector_store %arg9[%c3_99, %c0_100, %c0_101], %180 {strides = array<i32>} : memref<4x8x1xf32, #tpu.memory_space<vmem>>, vector<1x8x1xf32>,
    %c0_i32_102 = arith.constant 0 : i32
    %181 = arith.cmpi eq, %arg2, %c0_i32_102 : i32
    %182 = arith.extui %181 : i1 to i32
    %c0_i32_103 = arith.constant 0 : i32
    %183 = arith.cmpi ne, %182, %c0_i32_103 : i32
    scf.if %183 {
      %c0_104 = arith.constant 0 : index
      %c0_105 = arith.constant 0 : index
      %c0_106 = arith.constant 0 : index
      %184 = vector.load %arg11[%c0_104, %c0_105, %c0_106] : memref<4x8x8xf32, #tpu.memory_space<vmem>>, vector<1x8x8xf32>
      %185 = vector.shape_cast %184 : vector<1x8x8xf32> to vector<8x8xf32>
      %c0_107 = arith.constant 0 : index
      %c0_108 = arith.constant 0 : index
      %c0_109 = arith.constant 0 : index
      %186 = vector.load %arg10[%c0_107, %c0_108, %c0_109] : memref<4x8x1xf32, #tpu.memory_space<vmem>>, vector<1x8x1xf32>
      %187 = vector.shape_cast %186 : vector<1x8x1xf32> to vector<8x1xf32>
      %188 = vector.broadcast %187 : vector<8x1xf32> to vector<8x8xf32>
      %189 = arith.divf %185, %188 : vector<8x8xf32>
      %c1_110 = arith.constant 1 : index
      %c0_111 = arith.constant 0 : index
      %c0_112 = arith.constant 0 : index
      %190 = vector.load %arg11[%c1_110, %c0_111, %c0_112] : memref<4x8x8xf32, #tpu.memory_space<vmem>>, vector<1x8x8xf32>
      %191 = vector.shape_cast %190 : vector<1x8x8xf32> to vector<8x8xf32>
      %c1_113 = arith.constant 1 : index
      %c0_114 = arith.constant 0 : index
      %c0_115 = arith.constant 0 : index
      %192 = vector.load %arg10[%c1_113, %c0_114, %c0_115] : memref<4x8x1xf32, #tpu.memory_space<vmem>>, vector<1x8x1xf32>
      %193 = vector.shape_cast %192 : vector<1x8x1xf32> to vector<8x1xf32>
      %194 = vector.broadcast %193 : vector<8x1xf32> to vector<8x8xf32>
      %195 = arith.divf %191, %194 : vector<8x8xf32>
      %c2_116 = arith.constant 2 : index
      %c0_117 = arith.constant 0 : index
      %c0_118 = arith.constant 0 : index
      %196 = vector.load %arg11[%c2_116, %c0_117, %c0_118] : memref<4x8x8xf32, #tpu.memory_space<vmem>>, vector<1x8x8xf32>
      %197 = vector.shape_cast %196 : vector<1x8x8xf32> to vector<8x8xf32>
      %c2_119 = arith.constant 2 : index
      %c0_120 = arith.constant 0 : index
      %c0_121 = arith.constant 0 : index
      %198 = vector.load %arg10[%c2_119, %c0_120, %c0_121] : memref<4x8x1xf32, #tpu.memory_space<vmem>>, vector<1x8x1xf32>
      %199 = vector.shape_cast %198 : vector<1x8x1xf32> to vector<8x1xf32>
      %200 = vector.broadcast %199 : vector<8x1xf32> to vector<8x8xf32>
      %201 = arith.divf %197, %200 : vector<8x8xf32>
      %c3_122 = arith.constant 3 : index
      %c0_123 = arith.constant 0 : index
      %c0_124 = arith.constant 0 : index
      %202 = vector.load %arg11[%c3_122, %c0_123, %c0_124] : memref<4x8x8xf32, #tpu.memory_space<vmem>>, vector<1x8x8xf32>
      %203 = vector.shape_cast %202 : vector<1x8x8xf32> to vector<8x8xf32>
      %c3_125 = arith.constant 3 : index
      %c0_126 = arith.constant 0 : index
      %c0_127 = arith.constant 0 : index
      %204 = vector.load %arg10[%c3_125, %c0_126, %c0_127] : memref<4x8x1xf32, #tpu.memory_space<vmem>>, vector<1x8x1xf32>
      %205 = vector.shape_cast %204 : vector<1x8x1xf32> to vector<8x1xf32>
      %206 = vector.broadcast %205 : vector<8x1xf32> to vector<8x8xf32>
      %207 = arith.divf %203, %206 : vector<8x8xf32>
      %208 = tpu.concatenate %189, %195, %201, %207 in 1 : vector<8x8xf32>, vector<8x8xf32>, vector<8x8xf32>, vector<8x8xf32> -> vector<8x32xf32>
      %c0_128 = arith.constant 0 : index
      %c0_129 = arith.constant 0 : index
      %c0_130 = arith.constant 0 : index
      %209 = vector.load %arg8[%c0_128, %c0_129, %c0_130] : memref<1x8x32xf32, #tpu.memory_space<vmem>>, vector<1x8x32xf32>
      %210 = vector.shape_cast %209 : vector<1x8x32xf32> to vector<8x32xf32>
      %211 = vector.shape_cast %208 : vector<8x32xf32> to vector<1x8x32xf32>
      tpu.vector_store %arg8[%c0_128, %c0_129, %c0_130], %211 {strides = array<i32>} : memref<1x8x32xf32, #tpu.memory_space<vmem>>, vector<1x8x32xf32>,
    } else {
    }
    return
  }
  func.func @transform_0(%arg0: i32, %arg1: i32, %arg2: i32) -> (i32, i32, i32) {
    %c0_i32 = arith.constant 0 : i32
    %c0_i32_0 = arith.constant 0 : i32
    return %arg0, %arg1, %c0_i32 : i32, i32, i32
  }
  func.func @transform_1(%arg0: i32, %arg1: i32, %arg2: i32) -> (i32, i32, i32) {
    %c0_i32 = arith.constant 0 : i32
    %c0_i32_0 = arith.constant 0 : i32
    return %arg0, %arg2, %c0_i32 : i32, i32, i32
  }
  func.func @transform_2(%arg0: i32, %arg1: i32, %arg2: i32) -> (i32, i32, i32) {
    %c0_i32 = arith.constant 0 : i32
    %c0_i32_0 = arith.constant 0 : i32
    return %arg0, %arg2, %c0_i32 : i32, i32, i32
  }
  func.func @transform_3(%arg0: i32, %arg1: i32, %arg2: i32) -> (i32, i32, i32) {
    %c0_i32 = arith.constant 0 : i32
    %c0_i32_0 = arith.constant 0 : i32
    return %arg0, %arg1, %c0_i32 : i32, i32, i32
  }
  func.func @transform_4(%arg0: i32, %arg1: i32, %arg2: i32) -> (i32, i32, i32) {
    %c0_i32 = arith.constant 0 : i32
    %c0_i32_0 = arith.constant 0 : i32
    return %arg0, %c0_i32, %arg2 : i32, i32, i32
  }
  func.func @transform_5(%arg0: i32, %arg1: i32, %arg2: i32) -> (i32, i32, i32) {
    %c0_i32 = arith.constant 0 : i32
    %c0_i32_0 = arith.constant 0 : i32
    return %arg0, %arg1, %c0_i32 : i32, i32, i32
  }
}

module attributes {stable_mosaic.version = 11 : i64} {
  func.func @_linear_kernel(%arg0: i32, %arg1: i32, %arg2: i32, %arg3: memref<16x32xf32, #tpu.memory_space<vmem>>, %arg4: memref<32x64xbf16, #tpu.memory_space<vmem>>, %arg5: memref<1x64xf32, #tpu.memory_space<vmem>>, %arg6: memref<16x64xf32, #tpu.memory_space<vmem>>) attributes {dimension_semantics = [#tpu.dimension_semantics<parallel>, #tpu.dimension_semantics<parallel>, #tpu.dimension_semantics<arbitrary>], iteration_bounds = array<i64: 1, 1, 1>, scalar_prefetch = 0 : i64, scratch_operands = 0 : i64, tpu.core_type = #tpu.core_type<tc>, window_params = [{transform_indices = @transform_0, window_bounds = array<i64: 16, 32>}, {transform_indices = @transform_1, window_bounds = array<i64: 32, 64>}, {transform_indices = @transform_2, window_bounds = array<i64: 1, 64>}, {transform_indices = @transform_3, window_bounds = array<i64: 16, 64>}]} {
    %c0_i32 = arith.constant 0 : i32
    %0 = arith.cmpi eq, %arg2, %c0_i32 : i32
    %1 = arith.extui %0 : i1 to i32
    %c0_i32_0 = arith.constant 0 : i32
    %2 = arith.cmpi ne, %1, %c0_i32_0 : i32
    scf.if %2 {
      %cst_10 = arith.constant 0.000000e+00 : f32
      %13 = vector.broadcast %cst_10 : f32 to vector<16x64xf32>
      %c0_11 = arith.constant 0 : index
      %c0_12 = arith.constant 0 : index
      %14 = vector.load %arg6[%c0_11, %c0_12] : memref<16x64xf32, #tpu.memory_space<vmem>>, vector<16x64xf32>
      tpu.vector_store %arg6[%c0_11, %c0_12], %13 {strides = array<i32>} : memref<16x64xf32, #tpu.memory_space<vmem>>, vector<16x64xf32>,
    } else {
    }
    %c0 = arith.constant 0 : index
    %c0_1 = arith.constant 0 : index
    %3 = vector.load %arg6[%c0, %c0_1] : memref<16x64xf32, #tpu.memory_space<vmem>>, vector<16x64xf32>
    %c0_2 = arith.constant 0 : index
    %c0_3 = arith.constant 0 : index
    %4 = vector.load %arg3[%c0_2, %c0_3] : memref<16x32xf32, #tpu.memory_space<vmem>>, vector<16x32xf32>
    %5 = arith.truncf %4 : vector<16x32xf32> to vector<16x32xbf16>
    %c0_4 = arith.constant 0 : index
    %c0_5 = arith.constant 0 : index
    %6 = vector.load %arg4[%c0_4, %c0_5] : memref<32x64xbf16, #tpu.memory_space<vmem>>, vector<32x64xbf16>
    %cst = arith.constant dense<0.000000e+00> : vector<16x64xf32>
    %7 = tpu.matmul %5, %6, %cst {dimension_numbers = #tpu.dot_dimension_numbers<[1], [0], [0], [1], [0, 0, 1, 1], [], []>} : vector<16x32xbf16>, vector<32x64xbf16>, vector<16x64xf32> -> vector<16x64xf32>
    %8 = arith.addf %3, %7 : vector<16x64xf32>
    %c0_6 = arith.constant 0 : index
    %c0_7 = arith.constant 0 : index
    %9 = vector.load %arg6[%c0_6, %c0_7] : memref<16x64xf32, #tpu.memory_space<vmem>>, vector<16x64xf32>
    tpu.vector_store %arg6[%c0_6, %c0_7], %8 {strides = array<i32>} : memref<16x64xf32, #tpu.memory_space<vmem>>, vector<16x64xf32>,
    %c0_i32_8 = arith.constant 0 : i32
    %10 = arith.cmpi eq, %arg2, %c0_i32_8 : i32
    %11 = arith.extui %10 : i1 to i32
    %c0_i32_9 = arith.constant 0 : i32
    %12 = arith.cmpi ne, %11, %c0_i32_9 : i32
    scf.if %12 {
      %c0_10 = arith.constant 0 : index
      %c0_11 = arith.constant 0 : index
      %13 = vector.load %arg6[%c0_10, %c0_11] : memref<16x64xf32, #tpu.memory_space<vmem>>, vector<16x64xf32>
      %c0_12 = arith.constant 0 : index
      %c0_13 = arith.constant 0 : index
      %14 = vector.load %arg5[%c0_12, %c0_13] : memref<1x64xf32, #tpu.memory_space<vmem>>, vector<1x64xf32>
      %15 = vector.broadcast %14 : vector<1x64xf32> to vector<16x64xf32>
      %16 = arith.addf %13, %15 : vector<16x64xf32>
      %cst_14 = arith.constant 0.000000e+00 : f32
      %17 = vector.broadcast %cst_14 : f32 to vector<16x64xf32>
      %18 = arith.maximumf %16, %17 : vector<16x64xf32>
      %c0_15 = arith.constant 0 : index
      %c0_16 = arith.constant 0 : index
      %19 = vector.load %arg6[%c0_15, %c0_16] : memref<16x64xf32, #tpu.memory_space<vmem>>, vector<16x64xf32>
      tpu.vector_store %arg6[%c0_15, %c0_16], %18 {strides = array<i32>} : memref<16x64xf32, #tpu.memory_space<vmem>>, vector<16x64xf32>,
    } else {
    }
    return
  }
  func.func @transform_0(%arg0: i32, %arg1: i32, %arg2: i32) -> (i32, i32) {
    %c0_i32 = arith.constant 0 : i32
    return %arg0, %arg2 : i32, i32
  }
  func.func @transform_1(%arg0: i32, %arg1: i32, %arg2: i32) -> (i32, i32) {
    %c0_i32 = arith.constant 0 : i32
    return %arg2, %arg1 : i32, i32
  }
  func.func @transform_2(%arg0: i32, %arg1: i32, %arg2: i32) -> (i32, i32) {
    %c0_i32 = arith.constant 0 : i32
    %c0_i32_0 = arith.constant 0 : i32
    return %c0_i32, %arg1 : i32, i32
  }
  func.func @transform_3(%arg0: i32, %arg1: i32, %arg2: i32) -> (i32, i32) {
    %c0_i32 = arith.constant 0 : i32
    return %arg0, %arg1 : i32, i32
  }
}

module attributes {stable_mosaic.version = 11 : i64} {
  func.func @_linear_ln_kernel(%arg0: i32, %arg1: i32, %arg2: i32, %arg3: memref<16x32xf32, #tpu.memory_space<vmem>>, %arg4: memref<32x32xbf16, #tpu.memory_space<vmem>>, %arg5: memref<1x32xf32, #tpu.memory_space<vmem>>, %arg6: memref<16x32xf32, #tpu.memory_space<vmem>>, %arg7: memref<1x32xf32, #tpu.memory_space<vmem>>, %arg8: memref<1x32xf32, #tpu.memory_space<vmem>>, %arg9: memref<16x32xf32, #tpu.memory_space<vmem>>) attributes {dimension_semantics = [#tpu.dimension_semantics<parallel>, #tpu.dimension_semantics<parallel>, #tpu.dimension_semantics<arbitrary>], iteration_bounds = array<i64: 1, 1, 1>, scalar_prefetch = 0 : i64, scratch_operands = 0 : i64, tpu.core_type = #tpu.core_type<tc>, window_params = [{transform_indices = @transform_0, window_bounds = array<i64: 16, 32>}, {transform_indices = @transform_1, window_bounds = array<i64: 32, 32>}, {transform_indices = @transform_2, window_bounds = array<i64: 1, 32>}, {transform_indices = @transform_3, window_bounds = array<i64: 16, 32>}, {transform_indices = @transform_4, window_bounds = array<i64: 1, 32>}, {transform_indices = @transform_5, window_bounds = array<i64: 1, 32>}, {transform_indices = @transform_6, window_bounds = array<i64: 16, 32>}]} {
    %c0_i32 = arith.constant 0 : i32
    %0 = arith.cmpi eq, %arg2, %c0_i32 : i32
    %1 = arith.extui %0 : i1 to i32
    %c0_i32_0 = arith.constant 0 : i32
    %2 = arith.cmpi ne, %1, %c0_i32_0 : i32
    scf.if %2 {
      %cst_10 = arith.constant 0.000000e+00 : f32
      %13 = vector.broadcast %cst_10 : f32 to vector<16x32xf32>
      %c0_11 = arith.constant 0 : index
      %c0_12 = arith.constant 0 : index
      %14 = vector.load %arg9[%c0_11, %c0_12] : memref<16x32xf32, #tpu.memory_space<vmem>>, vector<16x32xf32>
      tpu.vector_store %arg9[%c0_11, %c0_12], %13 {strides = array<i32>} : memref<16x32xf32, #tpu.memory_space<vmem>>, vector<16x32xf32>,
    } else {
    }
    %c0 = arith.constant 0 : index
    %c0_1 = arith.constant 0 : index
    %3 = vector.load %arg9[%c0, %c0_1] : memref<16x32xf32, #tpu.memory_space<vmem>>, vector<16x32xf32>
    %c0_2 = arith.constant 0 : index
    %c0_3 = arith.constant 0 : index
    %4 = vector.load %arg3[%c0_2, %c0_3] : memref<16x32xf32, #tpu.memory_space<vmem>>, vector<16x32xf32>
    %5 = arith.truncf %4 : vector<16x32xf32> to vector<16x32xbf16>
    %c0_4 = arith.constant 0 : index
    %c0_5 = arith.constant 0 : index
    %6 = vector.load %arg4[%c0_4, %c0_5] : memref<32x32xbf16, #tpu.memory_space<vmem>>, vector<32x32xbf16>
    %cst = arith.constant dense<0.000000e+00> : vector<16x32xf32>
    %7 = tpu.matmul %5, %6, %cst {dimension_numbers = #tpu.dot_dimension_numbers<[1], [0], [0], [1], [0, 0, 1, 1], [], []>} : vector<16x32xbf16>, vector<32x32xbf16>, vector<16x32xf32> -> vector<16x32xf32>
    %8 = arith.addf %3, %7 : vector<16x32xf32>
    %c0_6 = arith.constant 0 : index
    %c0_7 = arith.constant 0 : index
    %9 = vector.load %arg9[%c0_6, %c0_7] : memref<16x32xf32, #tpu.memory_space<vmem>>, vector<16x32xf32>
    tpu.vector_store %arg9[%c0_6, %c0_7], %8 {strides = array<i32>} : memref<16x32xf32, #tpu.memory_space<vmem>>, vector<16x32xf32>,
    %c0_i32_8 = arith.constant 0 : i32
    %10 = arith.cmpi eq, %arg2, %c0_i32_8 : i32
    %11 = arith.extui %10 : i1 to i32
    %c0_i32_9 = arith.constant 0 : i32
    %12 = arith.cmpi ne, %11, %c0_i32_9 : i32
    scf.if %12 {
      %c0_10 = arith.constant 0 : index
      %c0_11 = arith.constant 0 : index
      %13 = vector.load %arg9[%c0_10, %c0_11] : memref<16x32xf32, #tpu.memory_space<vmem>>, vector<16x32xf32>
      %c0_12 = arith.constant 0 : index
      %c0_13 = arith.constant 0 : index
      %14 = vector.load %arg5[%c0_12, %c0_13] : memref<1x32xf32, #tpu.memory_space<vmem>>, vector<1x32xf32>
      %15 = vector.broadcast %14 : vector<1x32xf32> to vector<16x32xf32>
      %16 = arith.addf %13, %15 : vector<16x32xf32>
      %c0_14 = arith.constant 0 : index
      %c0_15 = arith.constant 0 : index
      %17 = vector.load %arg6[%c0_14, %c0_15] : memref<16x32xf32, #tpu.memory_space<vmem>>, vector<16x32xf32>
      %18 = arith.addf %16, %17 : vector<16x32xf32>
      %cst_16 = arith.constant dense<0.000000e+00> : vector<16xf32>
      %19 = vector.multi_reduction <add>, %18, %cst_16 [1] : vector<16x32xf32> to vector<16xf32>
      %20 = vector.shape_cast %19 : vector<16xf32> to vector<16x1xf32>
      %cst_17 = arith.constant 3.200000e+01 : f32
      %21 = vector.broadcast %cst_17 : f32 to vector<16x1xf32>
      %22 = arith.divf %20, %21 : vector<16x1xf32>
      %23 = vector.broadcast %22 : vector<16x1xf32> to vector<16x32xf32>
      %24 = arith.subf %18, %23 : vector<16x32xf32>
      %25 = arith.mulf %24, %24 : vector<16x32xf32>
      %cst_18 = arith.constant dense<0.000000e+00> : vector<16xf32>
      %26 = vector.multi_reduction <add>, %25, %cst_18 [1] : vector<16x32xf32> to vector<16xf32>
      %27 = vector.shape_cast %26 : vector<16xf32> to vector<16x1xf32>
      %cst_19 = arith.constant 3.200000e+01 : f32
      %28 = vector.broadcast %cst_19 : f32 to vector<16x1xf32>
      %29 = arith.divf %27, %28 : vector<16x1xf32>
      %cst_20 = arith.constant 9.99999974E-6 : f32
      %30 = vector.broadcast %cst_20 : f32 to vector<16x1xf32>
      %31 = arith.addf %29, %30 : vector<16x1xf32>
      %32 = math.rsqrt %31 : vector<16x1xf32>
      %33 = vector.broadcast %32 : vector<16x1xf32> to vector<16x32xf32>
      %34 = arith.mulf %24, %33 : vector<16x32xf32>
      %c0_21 = arith.constant 0 : index
      %c0_22 = arith.constant 0 : index
      %35 = vector.load %arg7[%c0_21, %c0_22] : memref<1x32xf32, #tpu.memory_space<vmem>>, vector<1x32xf32>
      %36 = vector.broadcast %35 : vector<1x32xf32> to vector<16x32xf32>
      %37 = arith.mulf %34, %36 : vector<16x32xf32>
      %c0_23 = arith.constant 0 : index
      %c0_24 = arith.constant 0 : index
      %38 = vector.load %arg8[%c0_23, %c0_24] : memref<1x32xf32, #tpu.memory_space<vmem>>, vector<1x32xf32>
      %39 = vector.broadcast %38 : vector<1x32xf32> to vector<16x32xf32>
      %40 = arith.addf %37, %39 : vector<16x32xf32>
      %c0_25 = arith.constant 0 : index
      %c0_26 = arith.constant 0 : index
      %41 = vector.load %arg9[%c0_25, %c0_26] : memref<16x32xf32, #tpu.memory_space<vmem>>, vector<16x32xf32>
      tpu.vector_store %arg9[%c0_25, %c0_26], %40 {strides = array<i32>} : memref<16x32xf32, #tpu.memory_space<vmem>>, vector<16x32xf32>,
    } else {
    }
    return
  }
  func.func @transform_0(%arg0: i32, %arg1: i32, %arg2: i32) -> (i32, i32) {
    %c0_i32 = arith.constant 0 : i32
    return %arg0, %arg2 : i32, i32
  }
  func.func @transform_1(%arg0: i32, %arg1: i32, %arg2: i32) -> (i32, i32) {
    %c0_i32 = arith.constant 0 : i32
    return %arg2, %arg1 : i32, i32
  }
  func.func @transform_2(%arg0: i32, %arg1: i32, %arg2: i32) -> (i32, i32) {
    %c0_i32 = arith.constant 0 : i32
    %c0_i32_0 = arith.constant 0 : i32
    return %c0_i32, %arg1 : i32, i32
  }
  func.func @transform_3(%arg0: i32, %arg1: i32, %arg2: i32) -> (i32, i32) {
    %c0_i32 = arith.constant 0 : i32
    return %arg0, %arg1 : i32, i32
  }
  func.func @transform_4(%arg0: i32, %arg1: i32, %arg2: i32) -> (i32, i32) {
    %c0_i32 = arith.constant 0 : i32
    %c0_i32_0 = arith.constant 0 : i32
    return %c0_i32, %arg1 : i32, i32
  }
  func.func @transform_5(%arg0: i32, %arg1: i32, %arg2: i32) -> (i32, i32) {
    %c0_i32 = arith.constant 0 : i32
    %c0_i32_0 = arith.constant 0 : i32
    return %c0_i32, %arg1 : i32, i32
  }
  func.func @transform_6(%arg0: i32, %arg1: i32, %arg2: i32) -> (i32, i32) {
    %c0_i32 = arith.constant 0 : i32
    return %arg0, %arg1 : i32, i32
  }
}

module attributes {stable_mosaic.version = 11 : i64} {
  func.func @_linear_ln_kernel(%arg0: i32, %arg1: i32, %arg2: i32, %arg3: memref<16x64xf32, #tpu.memory_space<vmem>>, %arg4: memref<64x32xbf16, #tpu.memory_space<vmem>>, %arg5: memref<1x32xf32, #tpu.memory_space<vmem>>, %arg6: memref<16x32xf32, #tpu.memory_space<vmem>>, %arg7: memref<1x32xf32, #tpu.memory_space<vmem>>, %arg8: memref<1x32xf32, #tpu.memory_space<vmem>>, %arg9: memref<16x32xf32, #tpu.memory_space<vmem>>) attributes {dimension_semantics = [#tpu.dimension_semantics<parallel>, #tpu.dimension_semantics<parallel>, #tpu.dimension_semantics<arbitrary>], iteration_bounds = array<i64: 1, 1, 1>, scalar_prefetch = 0 : i64, scratch_operands = 0 : i64, tpu.core_type = #tpu.core_type<tc>, window_params = [{transform_indices = @transform_0, window_bounds = array<i64: 16, 64>}, {transform_indices = @transform_1, window_bounds = array<i64: 64, 32>}, {transform_indices = @transform_2, window_bounds = array<i64: 1, 32>}, {transform_indices = @transform_3, window_bounds = array<i64: 16, 32>}, {transform_indices = @transform_4, window_bounds = array<i64: 1, 32>}, {transform_indices = @transform_5, window_bounds = array<i64: 1, 32>}, {transform_indices = @transform_6, window_bounds = array<i64: 16, 32>}]} {
    %c0_i32 = arith.constant 0 : i32
    %0 = arith.cmpi eq, %arg2, %c0_i32 : i32
    %1 = arith.extui %0 : i1 to i32
    %c0_i32_0 = arith.constant 0 : i32
    %2 = arith.cmpi ne, %1, %c0_i32_0 : i32
    scf.if %2 {
      %cst_10 = arith.constant 0.000000e+00 : f32
      %13 = vector.broadcast %cst_10 : f32 to vector<16x32xf32>
      %c0_11 = arith.constant 0 : index
      %c0_12 = arith.constant 0 : index
      %14 = vector.load %arg9[%c0_11, %c0_12] : memref<16x32xf32, #tpu.memory_space<vmem>>, vector<16x32xf32>
      tpu.vector_store %arg9[%c0_11, %c0_12], %13 {strides = array<i32>} : memref<16x32xf32, #tpu.memory_space<vmem>>, vector<16x32xf32>,
    } else {
    }
    %c0 = arith.constant 0 : index
    %c0_1 = arith.constant 0 : index
    %3 = vector.load %arg9[%c0, %c0_1] : memref<16x32xf32, #tpu.memory_space<vmem>>, vector<16x32xf32>
    %c0_2 = arith.constant 0 : index
    %c0_3 = arith.constant 0 : index
    %4 = vector.load %arg3[%c0_2, %c0_3] : memref<16x64xf32, #tpu.memory_space<vmem>>, vector<16x64xf32>
    %5 = arith.truncf %4 : vector<16x64xf32> to vector<16x64xbf16>
    %c0_4 = arith.constant 0 : index
    %c0_5 = arith.constant 0 : index
    %6 = vector.load %arg4[%c0_4, %c0_5] : memref<64x32xbf16, #tpu.memory_space<vmem>>, vector<64x32xbf16>
    %cst = arith.constant dense<0.000000e+00> : vector<16x32xf32>
    %7 = tpu.matmul %5, %6, %cst {dimension_numbers = #tpu.dot_dimension_numbers<[1], [0], [0], [1], [0, 0, 1, 1], [], []>} : vector<16x64xbf16>, vector<64x32xbf16>, vector<16x32xf32> -> vector<16x32xf32>
    %8 = arith.addf %3, %7 : vector<16x32xf32>
    %c0_6 = arith.constant 0 : index
    %c0_7 = arith.constant 0 : index
    %9 = vector.load %arg9[%c0_6, %c0_7] : memref<16x32xf32, #tpu.memory_space<vmem>>, vector<16x32xf32>
    tpu.vector_store %arg9[%c0_6, %c0_7], %8 {strides = array<i32>} : memref<16x32xf32, #tpu.memory_space<vmem>>, vector<16x32xf32>,
    %c0_i32_8 = arith.constant 0 : i32
    %10 = arith.cmpi eq, %arg2, %c0_i32_8 : i32
    %11 = arith.extui %10 : i1 to i32
    %c0_i32_9 = arith.constant 0 : i32
    %12 = arith.cmpi ne, %11, %c0_i32_9 : i32
    scf.if %12 {
      %c0_10 = arith.constant 0 : index
      %c0_11 = arith.constant 0 : index
      %13 = vector.load %arg9[%c0_10, %c0_11] : memref<16x32xf32, #tpu.memory_space<vmem>>, vector<16x32xf32>
      %c0_12 = arith.constant 0 : index
      %c0_13 = arith.constant 0 : index
      %14 = vector.load %arg5[%c0_12, %c0_13] : memref<1x32xf32, #tpu.memory_space<vmem>>, vector<1x32xf32>
      %15 = vector.broadcast %14 : vector<1x32xf32> to vector<16x32xf32>
      %16 = arith.addf %13, %15 : vector<16x32xf32>
      %c0_14 = arith.constant 0 : index
      %c0_15 = arith.constant 0 : index
      %17 = vector.load %arg6[%c0_14, %c0_15] : memref<16x32xf32, #tpu.memory_space<vmem>>, vector<16x32xf32>
      %18 = arith.addf %16, %17 : vector<16x32xf32>
      %cst_16 = arith.constant dense<0.000000e+00> : vector<16xf32>
      %19 = vector.multi_reduction <add>, %18, %cst_16 [1] : vector<16x32xf32> to vector<16xf32>
      %20 = vector.shape_cast %19 : vector<16xf32> to vector<16x1xf32>
      %cst_17 = arith.constant 3.200000e+01 : f32
      %21 = vector.broadcast %cst_17 : f32 to vector<16x1xf32>
      %22 = arith.divf %20, %21 : vector<16x1xf32>
      %23 = vector.broadcast %22 : vector<16x1xf32> to vector<16x32xf32>
      %24 = arith.subf %18, %23 : vector<16x32xf32>
      %25 = arith.mulf %24, %24 : vector<16x32xf32>
      %cst_18 = arith.constant dense<0.000000e+00> : vector<16xf32>
      %26 = vector.multi_reduction <add>, %25, %cst_18 [1] : vector<16x32xf32> to vector<16xf32>
      %27 = vector.shape_cast %26 : vector<16xf32> to vector<16x1xf32>
      %cst_19 = arith.constant 3.200000e+01 : f32
      %28 = vector.broadcast %cst_19 : f32 to vector<16x1xf32>
      %29 = arith.divf %27, %28 : vector<16x1xf32>
      %cst_20 = arith.constant 9.99999974E-6 : f32
      %30 = vector.broadcast %cst_20 : f32 to vector<16x1xf32>
      %31 = arith.addf %29, %30 : vector<16x1xf32>
      %32 = math.rsqrt %31 : vector<16x1xf32>
      %33 = vector.broadcast %32 : vector<16x1xf32> to vector<16x32xf32>
      %34 = arith.mulf %24, %33 : vector<16x32xf32>
      %c0_21 = arith.constant 0 : index
      %c0_22 = arith.constant 0 : index
      %35 = vector.load %arg7[%c0_21, %c0_22] : memref<1x32xf32, #tpu.memory_space<vmem>>, vector<1x32xf32>
      %36 = vector.broadcast %35 : vector<1x32xf32> to vector<16x32xf32>
      %37 = arith.mulf %34, %36 : vector<16x32xf32>
      %c0_23 = arith.constant 0 : index
      %c0_24 = arith.constant 0 : index
      %38 = vector.load %arg8[%c0_23, %c0_24] : memref<1x32xf32, #tpu.memory_space<vmem>>, vector<1x32xf32>
      %39 = vector.broadcast %38 : vector<1x32xf32> to vector<16x32xf32>
      %40 = arith.addf %37, %39 : vector<16x32xf32>
      %c0_25 = arith.constant 0 : index
      %c0_26 = arith.constant 0 : index
      %41 = vector.load %arg9[%c0_25, %c0_26] : memref<16x32xf32, #tpu.memory_space<vmem>>, vector<16x32xf32>
      tpu.vector_store %arg9[%c0_25, %c0_26], %40 {strides = array<i32>} : memref<16x32xf32, #tpu.memory_space<vmem>>, vector<16x32xf32>,
    } else {
    }
    return
  }
  func.func @transform_0(%arg0: i32, %arg1: i32, %arg2: i32) -> (i32, i32) {
    %c0_i32 = arith.constant 0 : i32
    return %arg0, %arg2 : i32, i32
  }
  func.func @transform_1(%arg0: i32, %arg1: i32, %arg2: i32) -> (i32, i32) {
    %c0_i32 = arith.constant 0 : i32
    return %arg2, %arg1 : i32, i32
  }
  func.func @transform_2(%arg0: i32, %arg1: i32, %arg2: i32) -> (i32, i32) {
    %c0_i32 = arith.constant 0 : i32
    %c0_i32_0 = arith.constant 0 : i32
    return %c0_i32, %arg1 : i32, i32
  }
  func.func @transform_3(%arg0: i32, %arg1: i32, %arg2: i32) -> (i32, i32) {
    %c0_i32 = arith.constant 0 : i32
    return %arg0, %arg1 : i32, i32
  }
  func.func @transform_4(%arg0: i32, %arg1: i32, %arg2: i32) -> (i32, i32) {
    %c0_i32 = arith.constant 0 : i32
    %c0_i32_0 = arith.constant 0 : i32
    return %c0_i32, %arg1 : i32, i32
  }
  func.func @transform_5(%arg0: i32, %arg1: i32, %arg2: i32) -> (i32, i32) {
    %c0_i32 = arith.constant 0 : i32
    %c0_i32_0 = arith.constant 0 : i32
    return %c0_i32, %arg1 : i32, i32
  }
  func.func @transform_6(%arg0: i32, %arg1: i32, %arg2: i32) -> (i32, i32) {
    %c0_i32 = arith.constant 0 : i32
    return %arg0, %arg1 : i32, i32
  }
}

module attributes {stable_mosaic.version = 11 : i64} {
  func.func @_linear_kernel(%arg0: i32, %arg1: i32, %arg2: i32, %arg3: memref<16x32xf32, #tpu.memory_space<vmem>>, %arg4: memref<32x64xbf16, #tpu.memory_space<vmem>>, %arg5: memref<1x64xf32, #tpu.memory_space<vmem>>, %arg6: memref<16x64xf32, #tpu.memory_space<vmem>>) attributes {dimension_semantics = [#tpu.dimension_semantics<parallel>, #tpu.dimension_semantics<parallel>, #tpu.dimension_semantics<arbitrary>], iteration_bounds = array<i64: 1, 1, 1>, scalar_prefetch = 0 : i64, scratch_operands = 0 : i64, tpu.core_type = #tpu.core_type<tc>, window_params = [{transform_indices = @transform_0, window_bounds = array<i64: 16, 32>}, {transform_indices = @transform_1, window_bounds = array<i64: 32, 64>}, {transform_indices = @transform_2, window_bounds = array<i64: 1, 64>}, {transform_indices = @transform_3, window_bounds = array<i64: 16, 64>}]} {
    %c0_i32 = arith.constant 0 : i32
    %0 = arith.cmpi eq, %arg2, %c0_i32 : i32
    %1 = arith.extui %0 : i1 to i32
    %c0_i32_0 = arith.constant 0 : i32
    %2 = arith.cmpi ne, %1, %c0_i32_0 : i32
    scf.if %2 {
      %cst_10 = arith.constant 0.000000e+00 : f32
      %13 = vector.broadcast %cst_10 : f32 to vector<16x64xf32>
      %c0_11 = arith.constant 0 : index
      %c0_12 = arith.constant 0 : index
      %14 = vector.load %arg6[%c0_11, %c0_12] : memref<16x64xf32, #tpu.memory_space<vmem>>, vector<16x64xf32>
      tpu.vector_store %arg6[%c0_11, %c0_12], %13 {strides = array<i32>} : memref<16x64xf32, #tpu.memory_space<vmem>>, vector<16x64xf32>,
    } else {
    }
    %c0 = arith.constant 0 : index
    %c0_1 = arith.constant 0 : index
    %3 = vector.load %arg6[%c0, %c0_1] : memref<16x64xf32, #tpu.memory_space<vmem>>, vector<16x64xf32>
    %c0_2 = arith.constant 0 : index
    %c0_3 = arith.constant 0 : index
    %4 = vector.load %arg3[%c0_2, %c0_3] : memref<16x32xf32, #tpu.memory_space<vmem>>, vector<16x32xf32>
    %5 = arith.truncf %4 : vector<16x32xf32> to vector<16x32xbf16>
    %c0_4 = arith.constant 0 : index
    %c0_5 = arith.constant 0 : index
    %6 = vector.load %arg4[%c0_4, %c0_5] : memref<32x64xbf16, #tpu.memory_space<vmem>>, vector<32x64xbf16>
    %cst = arith.constant dense<0.000000e+00> : vector<16x64xf32>
    %7 = tpu.matmul %5, %6, %cst {dimension_numbers = #tpu.dot_dimension_numbers<[1], [0], [0], [1], [0, 0, 1, 1], [], []>} : vector<16x32xbf16>, vector<32x64xbf16>, vector<16x64xf32> -> vector<16x64xf32>
    %8 = arith.addf %3, %7 : vector<16x64xf32>
    %c0_6 = arith.constant 0 : index
    %c0_7 = arith.constant 0 : index
    %9 = vector.load %arg6[%c0_6, %c0_7] : memref<16x64xf32, #tpu.memory_space<vmem>>, vector<16x64xf32>
    tpu.vector_store %arg6[%c0_6, %c0_7], %8 {strides = array<i32>} : memref<16x64xf32, #tpu.memory_space<vmem>>, vector<16x64xf32>,
    %c0_i32_8 = arith.constant 0 : i32
    %10 = arith.cmpi eq, %arg2, %c0_i32_8 : i32
    %11 = arith.extui %10 : i1 to i32
    %c0_i32_9 = arith.constant 0 : i32
    %12 = arith.cmpi ne, %11, %c0_i32_9 : i32
    scf.if %12 {
      %c0_10 = arith.constant 0 : index
      %c0_11 = arith.constant 0 : index
      %13 = vector.load %arg6[%c0_10, %c0_11] : memref<16x64xf32, #tpu.memory_space<vmem>>, vector<16x64xf32>
      %c0_12 = arith.constant 0 : index
      %c0_13 = arith.constant 0 : index
      %14 = vector.load %arg5[%c0_12, %c0_13] : memref<1x64xf32, #tpu.memory_space<vmem>>, vector<1x64xf32>
      %15 = vector.broadcast %14 : vector<1x64xf32> to vector<16x64xf32>
      %16 = arith.addf %13, %15 : vector<16x64xf32>
      %c0_14 = arith.constant 0 : index
      %c0_15 = arith.constant 0 : index
      %17 = vector.load %arg6[%c0_14, %c0_15] : memref<16x64xf32, #tpu.memory_space<vmem>>, vector<16x64xf32>
      tpu.vector_store %arg6[%c0_14, %c0_15], %16 {strides = array<i32>} : memref<16x64xf32, #tpu.memory_space<vmem>>, vector<16x64xf32>,
    } else {
    }
    return
  }
  func.func @transform_0(%arg0: i32, %arg1: i32, %arg2: i32) -> (i32, i32) {
    %c0_i32 = arith.constant 0 : i32
    return %arg0, %arg2 : i32, i32
  }
  func.func @transform_1(%arg0: i32, %arg1: i32, %arg2: i32) -> (i32, i32) {
    %c0_i32 = arith.constant 0 : i32
    return %arg2, %arg1 : i32, i32
  }
  func.func @transform_2(%arg0: i32, %arg1: i32, %arg2: i32) -> (i32, i32) {
    %c0_i32 = arith.constant 0 : i32
    %c0_i32_0 = arith.constant 0 : i32
    return %c0_i32, %arg1 : i32, i32
  }
  func.func @transform_3(%arg0: i32, %arg1: i32, %arg2: i32) -> (i32, i32) {
    %c0_i32 = arith.constant 0 : i32
    return %arg0, %arg1 : i32, i32
  }
}

module attributes {stable_mosaic.version = 11 : i64} {
  func.func @_flash_attn_kernel(%arg0: i32, %arg1: i32, %arg2: i32, %arg3: memref<1x8x32xf32, #tpu.memory_space<vmem>>, %arg4: memref<1x8x32xf32, #tpu.memory_space<vmem>>, %arg5: memref<1x8x32xf32, #tpu.memory_space<vmem>>, %arg6: memref<1x8x1xf32, #tpu.memory_space<vmem>>, %arg7: memref<1x1x8xf32, #tpu.memory_space<vmem>>, %arg8: memref<1x8x32xf32, #tpu.memory_space<vmem>>, %arg9: memref<4x8x1xf32, #tpu.memory_space<vmem>>, %arg10: memref<4x8x1xf32, #tpu.memory_space<vmem>>, %arg11: memref<4x8x8xf32, #tpu.memory_space<vmem>>) attributes {dimension_semantics = [#tpu.dimension_semantics<parallel>, #tpu.dimension_semantics<parallel>, #tpu.dimension_semantics<arbitrary>], iteration_bounds = array<i64: 2, 1, 1>, scalar_prefetch = 0 : i64, scratch_operands = 3 : i64, tpu.core_type = #tpu.core_type<tc>, window_params = [{transform_indices = @transform_0, window_bounds = array<i64: 1, 8, 32>}, {transform_indices = @transform_1, window_bounds = array<i64: 1, 8, 32>}, {transform_indices = @transform_2, window_bounds = array<i64: 1, 8, 32>}, {transform_indices = @transform_3, window_bounds = array<i64: 1, 8, 1>}, {transform_indices = @transform_4, window_bounds = array<i64: 1, 1, 8>}, {transform_indices = @transform_5, window_bounds = array<i64: 1, 8, 32>}]} {
    %c0_i32 = arith.constant 0 : i32
    %0 = arith.cmpi eq, %arg2, %c0_i32 : i32
    %1 = arith.extui %0 : i1 to i32
    %c0_i32_0 = arith.constant 0 : i32
    %2 = arith.cmpi ne, %1, %c0_i32_0 : i32
    scf.if %2 {
      %cst_106 = arith.constant 0xFF800000 : f32
      %195 = vector.broadcast %cst_106 : f32 to vector<4x8x1xf32>
      %c0_107 = arith.constant 0 : index
      %c0_108 = arith.constant 0 : index
      %c0_109 = arith.constant 0 : index
      %196 = vector.load %arg9[%c0_107, %c0_108, %c0_109] : memref<4x8x1xf32, #tpu.memory_space<vmem>>, vector<4x8x1xf32>
      tpu.vector_store %arg9[%c0_107, %c0_108, %c0_109], %195 {strides = array<i32>} : memref<4x8x1xf32, #tpu.memory_space<vmem>>, vector<4x8x1xf32>,
      %cst_110 = arith.constant 0.000000e+00 : f32
      %197 = vector.broadcast %cst_110 : f32 to vector<4x8x1xf32>
      %c0_111 = arith.constant 0 : index
      %c0_112 = arith.constant 0 : index
      %c0_113 = arith.constant 0 : index
      %198 = vector.load %arg10[%c0_111, %c0_112, %c0_113] : memref<4x8x1xf32, #tpu.memory_space<vmem>>, vector<4x8x1xf32>
      tpu.vector_store %arg10[%c0_111, %c0_112, %c0_113], %197 {strides = array<i32>} : memref<4x8x1xf32, #tpu.memory_space<vmem>>, vector<4x8x1xf32>,
      %cst_114 = arith.constant 0.000000e+00 : f32
      %199 = vector.broadcast %cst_114 : f32 to vector<4x8x8xf32>
      %c0_115 = arith.constant 0 : index
      %c0_116 = arith.constant 0 : index
      %c0_117 = arith.constant 0 : index
      %200 = vector.load %arg11[%c0_115, %c0_116, %c0_117] : memref<4x8x8xf32, #tpu.memory_space<vmem>>, vector<4x8x8xf32>
      tpu.vector_store %arg11[%c0_115, %c0_116, %c0_117], %199 {strides = array<i32>} : memref<4x8x8xf32, #tpu.memory_space<vmem>>, vector<4x8x8xf32>,
    } else {
    }
    %c0 = arith.constant 0 : index
    %c0_1 = arith.constant 0 : index
    %c0_2 = arith.constant 0 : index
    %3 = vector.load %arg3[%c0, %c0_1, %c0_2] : memref<1x8x32xf32, #tpu.memory_space<vmem>>, vector<1x8x32xf32>
    %4 = vector.shape_cast %3 : vector<1x8x32xf32> to vector<8x32xf32>
    %c0_3 = arith.constant 0 : index
    %c0_4 = arith.constant 0 : index
    %c0_5 = arith.constant 0 : index
    %5 = vector.load %arg4[%c0_3, %c0_4, %c0_5] : memref<1x8x32xf32, #tpu.memory_space<vmem>>, vector<1x8x32xf32>
    %6 = vector.shape_cast %5 : vector<1x8x32xf32> to vector<8x32xf32>
    %c0_6 = arith.constant 0 : index
    %c0_7 = arith.constant 0 : index
    %c0_8 = arith.constant 0 : index
    %7 = vector.load %arg5[%c0_6, %c0_7, %c0_8] : memref<1x8x32xf32, #tpu.memory_space<vmem>>, vector<1x8x32xf32>
    %8 = vector.shape_cast %7 : vector<1x8x32xf32> to vector<8x32xf32>
    %c0_9 = arith.constant 0 : index
    %c0_10 = arith.constant 0 : index
    %c0_11 = arith.constant 0 : index
    %9 = vector.load %arg6[%c0_9, %c0_10, %c0_11] : memref<1x8x1xf32, #tpu.memory_space<vmem>>, vector<1x8x1xf32>
    %10 = vector.shape_cast %9 : vector<1x8x1xf32> to vector<8x1xf32>
    %c0_12 = arith.constant 0 : index
    %c0_13 = arith.constant 0 : index
    %c0_14 = arith.constant 0 : index
    %11 = vector.load %arg7[%c0_12, %c0_13, %c0_14] : memref<1x1x8xf32, #tpu.memory_space<vmem>>, vector<1x1x8xf32>
    %12 = vector.shape_cast %11 : vector<1x1x8xf32> to vector<1x8xf32>
    %13 = vector.broadcast %10 : vector<8x1xf32> to vector<8x8xf32>
    %14 = vector.broadcast %12 : vector<1x8xf32> to vector<8x8xf32>
    %15 = arith.mulf %13, %14 : vector<8x8xf32>
    %cst = arith.constant 0.000000e+00 : f32
    %16 = vector.broadcast %cst : f32 to vector<8x8xf32>
    %17 = arith.cmpf oeq, %15, %16 : vector<8x8xf32>
    %cst_15 = arith.constant -1.000000e+09 : f32
    %cst_16 = arith.constant 0.000000e+00 : f32
    %18 = vector.broadcast %cst_15 : f32 to vector<8x8xf32>
    %19 = vector.broadcast %cst_16 : f32 to vector<8x8xf32>
    %20 = arith.select %17, %18, %19 : vector<8x8xi1>, vector<8x8xf32>
    %21 = tpu.iota {dimensions = array<i32: 0>} : vector<8x8xi32>
    %c8_i32 = arith.constant 8 : i32
    %22 = arith.muli %arg1, %c8_i32 : i32
    %23 = vector.broadcast %22 : i32 to vector<8x8xi32>
    %24 = arith.addi %21, %23 : vector<8x8xi32>
    %25 = tpu.iota {dimensions = array<i32: 1>} : vector<8x8xi32>
    %c8_i32_17 = arith.constant 8 : i32
    %26 = arith.muli %arg2, %c8_i32_17 : i32
    %27 = vector.broadcast %26 : i32 to vector<8x8xi32>
    %28 = arith.addi %25, %27 : vector<8x8xi32>
    %29 = arith.cmpi sgt, %28, %24 : vector<8x8xi32>
    %cst_18 = arith.constant -1.000000e+09 : f32
    %30 = vector.broadcast %cst_18 : f32 to vector<8x8xf32>
    %31 = arith.select %29, %30, %20 : vector<8x8xi1>, vector<8x8xf32>
    %32 = vector.extract_strided_slice %4 {offsets = [0, 0], sizes = [8, 8], strides = [1, 1]} : vector<8x32xf32> to vector<8x8xf32>
    %33 = arith.truncf %32 : vector<8x8xf32> to vector<8x8xbf16>
    %34 = vector.extract_strided_slice %6 {offsets = [0, 0], sizes = [8, 8], strides = [1, 1]} : vector<8x32xf32> to vector<8x8xf32>
    %35 = arith.truncf %34 : vector<8x8xf32> to vector<8x8xbf16>
    %36 = vector.extract_strided_slice %8 {offsets = [0, 0], sizes = [8, 8], strides = [1, 1]} : vector<8x32xf32> to vector<8x8xf32>
    %37 = arith.truncf %36 : vector<8x8xf32> to vector<8x8xbf16>
    %cst_19 = arith.constant dense<0.000000e+00> : vector<8x8xf32>
    %38 = tpu.matmul %33, %35, %cst_19 {dimension_numbers = #tpu.dot_dimension_numbers<[1], [1], [0], [0], [0, 0, 1, 0], [], []>} : vector<8x8xbf16>, vector<8x8xbf16>, vector<8x8xf32> -> vector<8x8xf32>
    %39 = arith.addf %38, %31 : vector<8x8xf32>
    %c0_20 = arith.constant 0 : index
    %c0_21 = arith.constant 0 : index
    %c0_22 = arith.constant 0 : index
    %40 = vector.load %arg9[%c0_20, %c0_21, %c0_22] : memref<4x8x1xf32, #tpu.memory_space<vmem>>, vector<1x8x1xf32>
    %41 = vector.shape_cast %40 : vector<1x8x1xf32> to vector<8x1xf32>
    %cst_23 = arith.constant dense<0xFF800000> : vector<8xf32>
    %42 = vector.multi_reduction <maximumf>, %39, %cst_23 [1] : vector<8x8xf32> to vector<8xf32>
    %43 = vector.shape_cast %42 : vector<8xf32> to vector<8x1xf32>
    %44 = arith.maximumf %41, %43 : vector<8x1xf32>
    %45 = arith.subf %41, %44 : vector<8x1xf32>
    %46 = math.exp %45 : vector<8x1xf32>
    %47 = vector.broadcast %44 : vector<8x1xf32> to vector<8x8xf32>
    %48 = arith.subf %39, %47 : vector<8x8xf32>
    %49 = math.exp %48 : vector<8x8xf32>
    %c0_24 = arith.constant 0 : index
    %c0_25 = arith.constant 0 : index
    %c0_26 = arith.constant 0 : index
    %50 = vector.load %arg10[%c0_24, %c0_25, %c0_26] : memref<4x8x1xf32, #tpu.memory_space<vmem>>, vector<1x8x1xf32>
    %51 = vector.shape_cast %50 : vector<1x8x1xf32> to vector<8x1xf32>
    %52 = arith.mulf %46, %51 : vector<8x1xf32>
    %cst_27 = arith.constant dense<0.000000e+00> : vector<8xf32>
    %53 = vector.multi_reduction <add>, %49, %cst_27 [1] : vector<8x8xf32> to vector<8xf32>
    %54 = vector.shape_cast %53 : vector<8xf32> to vector<8x1xf32>
    %55 = arith.addf %52, %54 : vector<8x1xf32>
    %c0_28 = arith.constant 0 : index
    %c0_29 = arith.constant 0 : index
    %c0_30 = arith.constant 0 : index
    %56 = vector.load %arg10[%c0_28, %c0_29, %c0_30] : memref<4x8x1xf32, #tpu.memory_space<vmem>>, vector<1x8x1xf32>
    %57 = vector.shape_cast %56 : vector<1x8x1xf32> to vector<8x1xf32>
    %58 = vector.shape_cast %55 : vector<8x1xf32> to vector<1x8x1xf32>
    tpu.vector_store %arg10[%c0_28, %c0_29, %c0_30], %58 {strides = array<i32>} : memref<4x8x1xf32, #tpu.memory_space<vmem>>, vector<1x8x1xf32>,
    %c0_31 = arith.constant 0 : index
    %c0_32 = arith.constant 0 : index
    %c0_33 = arith.constant 0 : index
    %59 = vector.load %arg11[%c0_31, %c0_32, %c0_33] : memref<4x8x8xf32, #tpu.memory_space<vmem>>, vector<1x8x8xf32>
    %60 = vector.shape_cast %59 : vector<1x8x8xf32> to vector<8x8xf32>
    %61 = vector.broadcast %46 : vector<8x1xf32> to vector<8x8xf32>
    %62 = arith.mulf %61, %60 : vector<8x8xf32>
    %63 = arith.truncf %49 : vector<8x8xf32> to vector<8x8xbf16>
    %cst_34 = arith.constant dense<0.000000e+00> : vector<8x8xf32>
    %64 = tpu.matmul %63, %37, %cst_34 {dimension_numbers = #tpu.dot_dimension_numbers<[1], [0], [0], [1], [0, 0, 1, 1], [], []>} : vector<8x8xbf16>, vector<8x8xbf16>, vector<8x8xf32> -> vector<8x8xf32>
    %65 = arith.addf %62, %64 : vector<8x8xf32>
    %c0_35 = arith.constant 0 : index
    %c0_36 = arith.constant 0 : index
    %c0_37 = arith.constant 0 : index
    %66 = vector.load %arg11[%c0_35, %c0_36, %c0_37] : memref<4x8x8xf32, #tpu.memory_space<vmem>>, vector<1x8x8xf32>
    %67 = vector.shape_cast %66 : vector<1x8x8xf32> to vector<8x8xf32>
    %68 = vector.shape_cast %65 : vector<8x8xf32> to vector<1x8x8xf32>
    tpu.vector_store %arg11[%c0_35, %c0_36, %c0_37], %68 {strides = array<i32>} : memref<4x8x8xf32, #tpu.memory_space<vmem>>, vector<1x8x8xf32>,
    %c0_38 = arith.constant 0 : index
    %c0_39 = arith.constant 0 : index
    %c0_40 = arith.constant 0 : index
    %69 = vector.load %arg9[%c0_38, %c0_39, %c0_40] : memref<4x8x1xf32, #tpu.memory_space<vmem>>, vector<1x8x1xf32>
    %70 = vector.shape_cast %69 : vector<1x8x1xf32> to vector<8x1xf32>
    %71 = vector.shape_cast %44 : vector<8x1xf32> to vector<1x8x1xf32>
    tpu.vector_store %arg9[%c0_38, %c0_39, %c0_40], %71 {strides = array<i32>} : memref<4x8x1xf32, #tpu.memory_space<vmem>>, vector<1x8x1xf32>,
    %72 = vector.extract_strided_slice %4 {offsets = [0, 8], sizes = [8, 8], strides = [1, 1]} : vector<8x32xf32> to vector<8x8xf32>
    %73 = arith.truncf %72 : vector<8x8xf32> to vector<8x8xbf16>
    %74 = vector.extract_strided_slice %6 {offsets = [0, 8], sizes = [8, 8], strides = [1, 1]} : vector<8x32xf32> to vector<8x8xf32>
    %75 = arith.truncf %74 : vector<8x8xf32> to vector<8x8xbf16>
    %76 = vector.extract_strided_slice %8 {offsets = [0, 8], sizes = [8, 8], strides = [1, 1]} : vector<8x32xf32> to vector<8x8xf32>
    %77 = arith.truncf %76 : vector<8x8xf32> to vector<8x8xbf16>
    %cst_41 = arith.constant dense<0.000000e+00> : vector<8x8xf32>
    %78 = tpu.matmul %73, %75, %cst_41 {dimension_numbers = #tpu.dot_dimension_numbers<[1], [1], [0], [0], [0, 0, 1, 0], [], []>} : vector<8x8xbf16>, vector<8x8xbf16>, vector<8x8xf32> -> vector<8x8xf32>
    %79 = arith.addf %78, %31 : vector<8x8xf32>
    %c1 = arith.constant 1 : index
    %c0_42 = arith.constant 0 : index
    %c0_43 = arith.constant 0 : index
    %80 = vector.load %arg9[%c1, %c0_42, %c0_43] : memref<4x8x1xf32, #tpu.memory_space<vmem>>, vector<1x8x1xf32>
    %81 = vector.shape_cast %80 : vector<1x8x1xf32> to vector<8x1xf32>
    %cst_44 = arith.constant dense<0xFF800000> : vector<8xf32>
    %82 = vector.multi_reduction <maximumf>, %79, %cst_44 [1] : vector<8x8xf32> to vector<8xf32>
    %83 = vector.shape_cast %82 : vector<8xf32> to vector<8x1xf32>
    %84 = arith.maximumf %81, %83 : vector<8x1xf32>
    %85 = arith.subf %81, %84 : vector<8x1xf32>
    %86 = math.exp %85 : vector<8x1xf32>
    %87 = vector.broadcast %84 : vector<8x1xf32> to vector<8x8xf32>
    %88 = arith.subf %79, %87 : vector<8x8xf32>
    %89 = math.exp %88 : vector<8x8xf32>
    %c1_45 = arith.constant 1 : index
    %c0_46 = arith.constant 0 : index
    %c0_47 = arith.constant 0 : index
    %90 = vector.load %arg10[%c1_45, %c0_46, %c0_47] : memref<4x8x1xf32, #tpu.memory_space<vmem>>, vector<1x8x1xf32>
    %91 = vector.shape_cast %90 : vector<1x8x1xf32> to vector<8x1xf32>
    %92 = arith.mulf %86, %91 : vector<8x1xf32>
    %cst_48 = arith.constant dense<0.000000e+00> : vector<8xf32>
    %93 = vector.multi_reduction <add>, %89, %cst_48 [1] : vector<8x8xf32> to vector<8xf32>
    %94 = vector.shape_cast %93 : vector<8xf32> to vector<8x1xf32>
    %95 = arith.addf %92, %94 : vector<8x1xf32>
    %c1_49 = arith.constant 1 : index
    %c0_50 = arith.constant 0 : index
    %c0_51 = arith.constant 0 : index
    %96 = vector.load %arg10[%c1_49, %c0_50, %c0_51] : memref<4x8x1xf32, #tpu.memory_space<vmem>>, vector<1x8x1xf32>
    %97 = vector.shape_cast %96 : vector<1x8x1xf32> to vector<8x1xf32>
    %98 = vector.shape_cast %95 : vector<8x1xf32> to vector<1x8x1xf32>
    tpu.vector_store %arg10[%c1_49, %c0_50, %c0_51], %98 {strides = array<i32>} : memref<4x8x1xf32, #tpu.memory_space<vmem>>, vector<1x8x1xf32>,
    %c1_52 = arith.constant 1 : index
    %c0_53 = arith.constant 0 : index
    %c0_54 = arith.constant 0 : index
    %99 = vector.load %arg11[%c1_52, %c0_53, %c0_54] : memref<4x8x8xf32, #tpu.memory_space<vmem>>, vector<1x8x8xf32>
    %100 = vector.shape_cast %99 : vector<1x8x8xf32> to vector<8x8xf32>
    %101 = vector.broadcast %86 : vector<8x1xf32> to vector<8x8xf32>
    %102 = arith.mulf %101, %100 : vector<8x8xf32>
    %103 = arith.truncf %89 : vector<8x8xf32> to vector<8x8xbf16>
    %cst_55 = arith.constant dense<0.000000e+00> : vector<8x8xf32>
    %104 = tpu.matmul %103, %77, %cst_55 {dimension_numbers = #tpu.dot_dimension_numbers<[1], [0], [0], [1], [0, 0, 1, 1], [], []>} : vector<8x8xbf16>, vector<8x8xbf16>, vector<8x8xf32> -> vector<8x8xf32>
    %105 = arith.addf %102, %104 : vector<8x8xf32>
    %c1_56 = arith.constant 1 : index
    %c0_57 = arith.constant 0 : index
    %c0_58 = arith.constant 0 : index
    %106 = vector.load %arg11[%c1_56, %c0_57, %c0_58] : memref<4x8x8xf32, #tpu.memory_space<vmem>>, vector<1x8x8xf32>
    %107 = vector.shape_cast %106 : vector<1x8x8xf32> to vector<8x8xf32>
    %108 = vector.shape_cast %105 : vector<8x8xf32> to vector<1x8x8xf32>
    tpu.vector_store %arg11[%c1_56, %c0_57, %c0_58], %108 {strides = array<i32>} : memref<4x8x8xf32, #tpu.memory_space<vmem>>, vector<1x8x8xf32>,
    %c1_59 = arith.constant 1 : index
    %c0_60 = arith.constant 0 : index
    %c0_61 = arith.constant 0 : index
    %109 = vector.load %arg9[%c1_59, %c0_60, %c0_61] : memref<4x8x1xf32, #tpu.memory_space<vmem>>, vector<1x8x1xf32>
    %110 = vector.shape_cast %109 : vector<1x8x1xf32> to vector<8x1xf32>
    %111 = vector.shape_cast %84 : vector<8x1xf32> to vector<1x8x1xf32>
    tpu.vector_store %arg9[%c1_59, %c0_60, %c0_61], %111 {strides = array<i32>} : memref<4x8x1xf32, #tpu.memory_space<vmem>>, vector<1x8x1xf32>,
    %112 = vector.extract_strided_slice %4 {offsets = [0, 16], sizes = [8, 8], strides = [1, 1]} : vector<8x32xf32> to vector<8x8xf32>
    %113 = arith.truncf %112 : vector<8x8xf32> to vector<8x8xbf16>
    %114 = vector.extract_strided_slice %6 {offsets = [0, 16], sizes = [8, 8], strides = [1, 1]} : vector<8x32xf32> to vector<8x8xf32>
    %115 = arith.truncf %114 : vector<8x8xf32> to vector<8x8xbf16>
    %116 = vector.extract_strided_slice %8 {offsets = [0, 16], sizes = [8, 8], strides = [1, 1]} : vector<8x32xf32> to vector<8x8xf32>
    %117 = arith.truncf %116 : vector<8x8xf32> to vector<8x8xbf16>
    %cst_62 = arith.constant dense<0.000000e+00> : vector<8x8xf32>
    %118 = tpu.matmul %113, %115, %cst_62 {dimension_numbers = #tpu.dot_dimension_numbers<[1], [1], [0], [0], [0, 0, 1, 0], [], []>} : vector<8x8xbf16>, vector<8x8xbf16>, vector<8x8xf32> -> vector<8x8xf32>
    %119 = arith.addf %118, %31 : vector<8x8xf32>
    %c2 = arith.constant 2 : index
    %c0_63 = arith.constant 0 : index
    %c0_64 = arith.constant 0 : index
    %120 = vector.load %arg9[%c2, %c0_63, %c0_64] : memref<4x8x1xf32, #tpu.memory_space<vmem>>, vector<1x8x1xf32>
    %121 = vector.shape_cast %120 : vector<1x8x1xf32> to vector<8x1xf32>
    %cst_65 = arith.constant dense<0xFF800000> : vector<8xf32>
    %122 = vector.multi_reduction <maximumf>, %119, %cst_65 [1] : vector<8x8xf32> to vector<8xf32>
    %123 = vector.shape_cast %122 : vector<8xf32> to vector<8x1xf32>
    %124 = arith.maximumf %121, %123 : vector<8x1xf32>
    %125 = arith.subf %121, %124 : vector<8x1xf32>
    %126 = math.exp %125 : vector<8x1xf32>
    %127 = vector.broadcast %124 : vector<8x1xf32> to vector<8x8xf32>
    %128 = arith.subf %119, %127 : vector<8x8xf32>
    %129 = math.exp %128 : vector<8x8xf32>
    %c2_66 = arith.constant 2 : index
    %c0_67 = arith.constant 0 : index
    %c0_68 = arith.constant 0 : index
    %130 = vector.load %arg10[%c2_66, %c0_67, %c0_68] : memref<4x8x1xf32, #tpu.memory_space<vmem>>, vector<1x8x1xf32>
    %131 = vector.shape_cast %130 : vector<1x8x1xf32> to vector<8x1xf32>
    %132 = arith.mulf %126, %131 : vector<8x1xf32>
    %cst_69 = arith.constant dense<0.000000e+00> : vector<8xf32>
    %133 = vector.multi_reduction <add>, %129, %cst_69 [1] : vector<8x8xf32> to vector<8xf32>
    %134 = vector.shape_cast %133 : vector<8xf32> to vector<8x1xf32>
    %135 = arith.addf %132, %134 : vector<8x1xf32>
    %c2_70 = arith.constant 2 : index
    %c0_71 = arith.constant 0 : index
    %c0_72 = arith.constant 0 : index
    %136 = vector.load %arg10[%c2_70, %c0_71, %c0_72] : memref<4x8x1xf32, #tpu.memory_space<vmem>>, vector<1x8x1xf32>
    %137 = vector.shape_cast %136 : vector<1x8x1xf32> to vector<8x1xf32>
    %138 = vector.shape_cast %135 : vector<8x1xf32> to vector<1x8x1xf32>
    tpu.vector_store %arg10[%c2_70, %c0_71, %c0_72], %138 {strides = array<i32>} : memref<4x8x1xf32, #tpu.memory_space<vmem>>, vector<1x8x1xf32>,
    %c2_73 = arith.constant 2 : index
    %c0_74 = arith.constant 0 : index
    %c0_75 = arith.constant 0 : index
    %139 = vector.load %arg11[%c2_73, %c0_74, %c0_75] : memref<4x8x8xf32, #tpu.memory_space<vmem>>, vector<1x8x8xf32>
    %140 = vector.shape_cast %139 : vector<1x8x8xf32> to vector<8x8xf32>
    %141 = vector.broadcast %126 : vector<8x1xf32> to vector<8x8xf32>
    %142 = arith.mulf %141, %140 : vector<8x8xf32>
    %143 = arith.truncf %129 : vector<8x8xf32> to vector<8x8xbf16>
    %cst_76 = arith.constant dense<0.000000e+00> : vector<8x8xf32>
    %144 = tpu.matmul %143, %117, %cst_76 {dimension_numbers = #tpu.dot_dimension_numbers<[1], [0], [0], [1], [0, 0, 1, 1], [], []>} : vector<8x8xbf16>, vector<8x8xbf16>, vector<8x8xf32> -> vector<8x8xf32>
    %145 = arith.addf %142, %144 : vector<8x8xf32>
    %c2_77 = arith.constant 2 : index
    %c0_78 = arith.constant 0 : index
    %c0_79 = arith.constant 0 : index
    %146 = vector.load %arg11[%c2_77, %c0_78, %c0_79] : memref<4x8x8xf32, #tpu.memory_space<vmem>>, vector<1x8x8xf32>
    %147 = vector.shape_cast %146 : vector<1x8x8xf32> to vector<8x8xf32>
    %148 = vector.shape_cast %145 : vector<8x8xf32> to vector<1x8x8xf32>
    tpu.vector_store %arg11[%c2_77, %c0_78, %c0_79], %148 {strides = array<i32>} : memref<4x8x8xf32, #tpu.memory_space<vmem>>, vector<1x8x8xf32>,
    %c2_80 = arith.constant 2 : index
    %c0_81 = arith.constant 0 : index
    %c0_82 = arith.constant 0 : index
    %149 = vector.load %arg9[%c2_80, %c0_81, %c0_82] : memref<4x8x1xf32, #tpu.memory_space<vmem>>, vector<1x8x1xf32>
    %150 = vector.shape_cast %149 : vector<1x8x1xf32> to vector<8x1xf32>
    %151 = vector.shape_cast %124 : vector<8x1xf32> to vector<1x8x1xf32>
    tpu.vector_store %arg9[%c2_80, %c0_81, %c0_82], %151 {strides = array<i32>} : memref<4x8x1xf32, #tpu.memory_space<vmem>>, vector<1x8x1xf32>,
    %152 = vector.extract_strided_slice %4 {offsets = [0, 24], sizes = [8, 8], strides = [1, 1]} : vector<8x32xf32> to vector<8x8xf32>
    %153 = arith.truncf %152 : vector<8x8xf32> to vector<8x8xbf16>
    %154 = vector.extract_strided_slice %6 {offsets = [0, 24], sizes = [8, 8], strides = [1, 1]} : vector<8x32xf32> to vector<8x8xf32>
    %155 = arith.truncf %154 : vector<8x8xf32> to vector<8x8xbf16>
    %156 = vector.extract_strided_slice %8 {offsets = [0, 24], sizes = [8, 8], strides = [1, 1]} : vector<8x32xf32> to vector<8x8xf32>
    %157 = arith.truncf %156 : vector<8x8xf32> to vector<8x8xbf16>
    %cst_83 = arith.constant dense<0.000000e+00> : vector<8x8xf32>
    %158 = tpu.matmul %153, %155, %cst_83 {dimension_numbers = #tpu.dot_dimension_numbers<[1], [1], [0], [0], [0, 0, 1, 0], [], []>} : vector<8x8xbf16>, vector<8x8xbf16>, vector<8x8xf32> -> vector<8x8xf32>
    %159 = arith.addf %158, %31 : vector<8x8xf32>
    %c3 = arith.constant 3 : index
    %c0_84 = arith.constant 0 : index
    %c0_85 = arith.constant 0 : index
    %160 = vector.load %arg9[%c3, %c0_84, %c0_85] : memref<4x8x1xf32, #tpu.memory_space<vmem>>, vector<1x8x1xf32>
    %161 = vector.shape_cast %160 : vector<1x8x1xf32> to vector<8x1xf32>
    %cst_86 = arith.constant dense<0xFF800000> : vector<8xf32>
    %162 = vector.multi_reduction <maximumf>, %159, %cst_86 [1] : vector<8x8xf32> to vector<8xf32>
    %163 = vector.shape_cast %162 : vector<8xf32> to vector<8x1xf32>
    %164 = arith.maximumf %161, %163 : vector<8x1xf32>
    %165 = arith.subf %161, %164 : vector<8x1xf32>
    %166 = math.exp %165 : vector<8x1xf32>
    %167 = vector.broadcast %164 : vector<8x1xf32> to vector<8x8xf32>
    %168 = arith.subf %159, %167 : vector<8x8xf32>
    %169 = math.exp %168 : vector<8x8xf32>
    %c3_87 = arith.constant 3 : index
    %c0_88 = arith.constant 0 : index
    %c0_89 = arith.constant 0 : index
    %170 = vector.load %arg10[%c3_87, %c0_88, %c0_89] : memref<4x8x1xf32, #tpu.memory_space<vmem>>, vector<1x8x1xf32>
    %171 = vector.shape_cast %170 : vector<1x8x1xf32> to vector<8x1xf32>
    %172 = arith.mulf %166, %171 : vector<8x1xf32>
    %cst_90 = arith.constant dense<0.000000e+00> : vector<8xf32>
    %173 = vector.multi_reduction <add>, %169, %cst_90 [1] : vector<8x8xf32> to vector<8xf32>
    %174 = vector.shape_cast %173 : vector<8xf32> to vector<8x1xf32>
    %175 = arith.addf %172, %174 : vector<8x1xf32>
    %c3_91 = arith.constant 3 : index
    %c0_92 = arith.constant 0 : index
    %c0_93 = arith.constant 0 : index
    %176 = vector.load %arg10[%c3_91, %c0_92, %c0_93] : memref<4x8x1xf32, #tpu.memory_space<vmem>>, vector<1x8x1xf32>
    %177 = vector.shape_cast %176 : vector<1x8x1xf32> to vector<8x1xf32>
    %178 = vector.shape_cast %175 : vector<8x1xf32> to vector<1x8x1xf32>
    tpu.vector_store %arg10[%c3_91, %c0_92, %c0_93], %178 {strides = array<i32>} : memref<4x8x1xf32, #tpu.memory_space<vmem>>, vector<1x8x1xf32>,
    %c3_94 = arith.constant 3 : index
    %c0_95 = arith.constant 0 : index
    %c0_96 = arith.constant 0 : index
    %179 = vector.load %arg11[%c3_94, %c0_95, %c0_96] : memref<4x8x8xf32, #tpu.memory_space<vmem>>, vector<1x8x8xf32>
    %180 = vector.shape_cast %179 : vector<1x8x8xf32> to vector<8x8xf32>
    %181 = vector.broadcast %166 : vector<8x1xf32> to vector<8x8xf32>
    %182 = arith.mulf %181, %180 : vector<8x8xf32>
    %183 = arith.truncf %169 : vector<8x8xf32> to vector<8x8xbf16>
    %cst_97 = arith.constant dense<0.000000e+00> : vector<8x8xf32>
    %184 = tpu.matmul %183, %157, %cst_97 {dimension_numbers = #tpu.dot_dimension_numbers<[1], [0], [0], [1], [0, 0, 1, 1], [], []>} : vector<8x8xbf16>, vector<8x8xbf16>, vector<8x8xf32> -> vector<8x8xf32>
    %185 = arith.addf %182, %184 : vector<8x8xf32>
    %c3_98 = arith.constant 3 : index
    %c0_99 = arith.constant 0 : index
    %c0_100 = arith.constant 0 : index
    %186 = vector.load %arg11[%c3_98, %c0_99, %c0_100] : memref<4x8x8xf32, #tpu.memory_space<vmem>>, vector<1x8x8xf32>
    %187 = vector.shape_cast %186 : vector<1x8x8xf32> to vector<8x8xf32>
    %188 = vector.shape_cast %185 : vector<8x8xf32> to vector<1x8x8xf32>
    tpu.vector_store %arg11[%c3_98, %c0_99, %c0_100], %188 {strides = array<i32>} : memref<4x8x8xf32, #tpu.memory_space<vmem>>, vector<1x8x8xf32>,
    %c3_101 = arith.constant 3 : index
    %c0_102 = arith.constant 0 : index
    %c0_103 = arith.constant 0 : index
    %189 = vector.load %arg9[%c3_101, %c0_102, %c0_103] : memref<4x8x1xf32, #tpu.memory_space<vmem>>, vector<1x8x1xf32>
    %190 = vector.shape_cast %189 : vector<1x8x1xf32> to vector<8x1xf32>
    %191 = vector.shape_cast %164 : vector<8x1xf32> to vector<1x8x1xf32>
    tpu.vector_store %arg9[%c3_101, %c0_102, %c0_103], %191 {strides = array<i32>} : memref<4x8x1xf32, #tpu.memory_space<vmem>>, vector<1x8x1xf32>,
    %c0_i32_104 = arith.constant 0 : i32
    %192 = arith.cmpi eq, %arg2, %c0_i32_104 : i32
    %193 = arith.extui %192 : i1 to i32
    %c0_i32_105 = arith.constant 0 : i32
    %194 = arith.cmpi ne, %193, %c0_i32_105 : i32
    scf.if %194 {
      %c0_106 = arith.constant 0 : index
      %c0_107 = arith.constant 0 : index
      %c0_108 = arith.constant 0 : index
      %195 = vector.load %arg11[%c0_106, %c0_107, %c0_108] : memref<4x8x8xf32, #tpu.memory_space<vmem>>, vector<1x8x8xf32>
      %196 = vector.shape_cast %195 : vector<1x8x8xf32> to vector<8x8xf32>
      %c0_109 = arith.constant 0 : index
      %c0_110 = arith.constant 0 : index
      %c0_111 = arith.constant 0 : index
      %197 = vector.load %arg10[%c0_109, %c0_110, %c0_111] : memref<4x8x1xf32, #tpu.memory_space<vmem>>, vector<1x8x1xf32>
      %198 = vector.shape_cast %197 : vector<1x8x1xf32> to vector<8x1xf32>
      %199 = vector.broadcast %198 : vector<8x1xf32> to vector<8x8xf32>
      %200 = arith.divf %196, %199 : vector<8x8xf32>
      %c1_112 = arith.constant 1 : index
      %c0_113 = arith.constant 0 : index
      %c0_114 = arith.constant 0 : index
      %201 = vector.load %arg11[%c1_112, %c0_113, %c0_114] : memref<4x8x8xf32, #tpu.memory_space<vmem>>, vector<1x8x8xf32>
      %202 = vector.shape_cast %201 : vector<1x8x8xf32> to vector<8x8xf32>
      %c1_115 = arith.constant 1 : index
      %c0_116 = arith.constant 0 : index
      %c0_117 = arith.constant 0 : index
      %203 = vector.load %arg10[%c1_115, %c0_116, %c0_117] : memref<4x8x1xf32, #tpu.memory_space<vmem>>, vector<1x8x1xf32>
      %204 = vector.shape_cast %203 : vector<1x8x1xf32> to vector<8x1xf32>
      %205 = vector.broadcast %204 : vector<8x1xf32> to vector<8x8xf32>
      %206 = arith.divf %202, %205 : vector<8x8xf32>
      %c2_118 = arith.constant 2 : index
      %c0_119 = arith.constant 0 : index
      %c0_120 = arith.constant 0 : index
      %207 = vector.load %arg11[%c2_118, %c0_119, %c0_120] : memref<4x8x8xf32, #tpu.memory_space<vmem>>, vector<1x8x8xf32>
      %208 = vector.shape_cast %207 : vector<1x8x8xf32> to vector<8x8xf32>
      %c2_121 = arith.constant 2 : index
      %c0_122 = arith.constant 0 : index
      %c0_123 = arith.constant 0 : index
      %209 = vector.load %arg10[%c2_121, %c0_122, %c0_123] : memref<4x8x1xf32, #tpu.memory_space<vmem>>, vector<1x8x1xf32>
      %210 = vector.shape_cast %209 : vector<1x8x1xf32> to vector<8x1xf32>
      %211 = vector.broadcast %210 : vector<8x1xf32> to vector<8x8xf32>
      %212 = arith.divf %208, %211 : vector<8x8xf32>
      %c3_124 = arith.constant 3 : index
      %c0_125 = arith.constant 0 : index
      %c0_126 = arith.constant 0 : index
      %213 = vector.load %arg11[%c3_124, %c0_125, %c0_126] : memref<4x8x8xf32, #tpu.memory_space<vmem>>, vector<1x8x8xf32>
      %214 = vector.shape_cast %213 : vector<1x8x8xf32> to vector<8x8xf32>
      %c3_127 = arith.constant 3 : index
      %c0_128 = arith.constant 0 : index
      %c0_129 = arith.constant 0 : index
      %215 = vector.load %arg10[%c3_127, %c0_128, %c0_129] : memref<4x8x1xf32, #tpu.memory_space<vmem>>, vector<1x8x1xf32>
      %216 = vector.shape_cast %215 : vector<1x8x1xf32> to vector<8x1xf32>
      %217 = vector.broadcast %216 : vector<8x1xf32> to vector<8x8xf32>
      %218 = arith.divf %214, %217 : vector<8x8xf32>
      %219 = tpu.concatenate %200, %206, %212, %218 in 1 : vector<8x8xf32>, vector<8x8xf32>, vector<8x8xf32>, vector<8x8xf32> -> vector<8x32xf32>
      %c0_130 = arith.constant 0 : index
      %c0_131 = arith.constant 0 : index
      %c0_132 = arith.constant 0 : index
      %220 = vector.load %arg8[%c0_130, %c0_131, %c0_132] : memref<1x8x32xf32, #tpu.memory_space<vmem>>, vector<1x8x32xf32>
      %221 = vector.shape_cast %220 : vector<1x8x32xf32> to vector<8x32xf32>
      %222 = vector.shape_cast %219 : vector<8x32xf32> to vector<1x8x32xf32>
      tpu.vector_store %arg8[%c0_130, %c0_131, %c0_132], %222 {strides = array<i32>} : memref<1x8x32xf32, #tpu.memory_space<vmem>>, vector<1x8x32xf32>,
    } else {
    }
    return
  }
  func.func @transform_0(%arg0: i32, %arg1: i32, %arg2: i32) -> (i32, i32, i32) {
    %c0_i32 = arith.constant 0 : i32
    %c0_i32_0 = arith.constant 0 : i32
    return %arg0, %arg1, %c0_i32 : i32, i32, i32
  }
  func.func @transform_1(%arg0: i32, %arg1: i32, %arg2: i32) -> (i32, i32, i32) {
    %c0_i32 = arith.constant 0 : i32
    %c0_i32_0 = arith.constant 0 : i32
    return %arg0, %arg2, %c0_i32 : i32, i32, i32
  }
  func.func @transform_2(%arg0: i32, %arg1: i32, %arg2: i32) -> (i32, i32, i32) {
    %c0_i32 = arith.constant 0 : i32
    %c0_i32_0 = arith.constant 0 : i32
    return %arg0, %arg2, %c0_i32 : i32, i32, i32
  }
  func.func @transform_3(%arg0: i32, %arg1: i32, %arg2: i32) -> (i32, i32, i32) {
    %c0_i32 = arith.constant 0 : i32
    %c0_i32_0 = arith.constant 0 : i32
    return %arg0, %arg1, %c0_i32 : i32, i32, i32
  }
  func.func @transform_4(%arg0: i32, %arg1: i32, %arg2: i32) -> (i32, i32, i32) {
    %c0_i32 = arith.constant 0 : i32
    %c0_i32_0 = arith.constant 0 : i32
    return %arg0, %c0_i32, %arg2 : i32, i32, i32
  }
  func.func @transform_5(%arg0: i32, %arg1: i32, %arg2: i32) -> (i32, i32, i32) {
    %c0_i32 = arith.constant 0 : i32
    %c0_i32_0 = arith.constant 0 : i32
    return %arg0, %arg1, %c0_i32 : i32, i32, i32
  }
}

module attributes {stable_mosaic.version = 11 : i64} {
  func.func @_linear_kernel(%arg0: i32, %arg1: i32, %arg2: i32, %arg3: memref<16x32xf32, #tpu.memory_space<vmem>>, %arg4: memref<32x32xbf16, #tpu.memory_space<vmem>>, %arg5: memref<1x32xf32, #tpu.memory_space<vmem>>, %arg6: memref<16x32xf32, #tpu.memory_space<vmem>>) attributes {dimension_semantics = [#tpu.dimension_semantics<parallel>, #tpu.dimension_semantics<parallel>, #tpu.dimension_semantics<arbitrary>], iteration_bounds = array<i64: 1, 1, 1>, scalar_prefetch = 0 : i64, scratch_operands = 0 : i64, tpu.core_type = #tpu.core_type<tc>, window_params = [{transform_indices = @transform_0, window_bounds = array<i64: 16, 32>}, {transform_indices = @transform_1, window_bounds = array<i64: 32, 32>}, {transform_indices = @transform_2, window_bounds = array<i64: 1, 32>}, {transform_indices = @transform_3, window_bounds = array<i64: 16, 32>}]} {
    %c0_i32 = arith.constant 0 : i32
    %0 = arith.cmpi eq, %arg2, %c0_i32 : i32
    %1 = arith.extui %0 : i1 to i32
    %c0_i32_0 = arith.constant 0 : i32
    %2 = arith.cmpi ne, %1, %c0_i32_0 : i32
    scf.if %2 {
      %cst_10 = arith.constant 0.000000e+00 : f32
      %13 = vector.broadcast %cst_10 : f32 to vector<16x32xf32>
      %c0_11 = arith.constant 0 : index
      %c0_12 = arith.constant 0 : index
      %14 = vector.load %arg6[%c0_11, %c0_12] : memref<16x32xf32, #tpu.memory_space<vmem>>, vector<16x32xf32>
      tpu.vector_store %arg6[%c0_11, %c0_12], %13 {strides = array<i32>} : memref<16x32xf32, #tpu.memory_space<vmem>>, vector<16x32xf32>,
    } else {
    }
    %c0 = arith.constant 0 : index
    %c0_1 = arith.constant 0 : index
    %3 = vector.load %arg6[%c0, %c0_1] : memref<16x32xf32, #tpu.memory_space<vmem>>, vector<16x32xf32>
    %c0_2 = arith.constant 0 : index
    %c0_3 = arith.constant 0 : index
    %4 = vector.load %arg3[%c0_2, %c0_3] : memref<16x32xf32, #tpu.memory_space<vmem>>, vector<16x32xf32>
    %5 = arith.truncf %4 : vector<16x32xf32> to vector<16x32xbf16>
    %c0_4 = arith.constant 0 : index
    %c0_5 = arith.constant 0 : index
    %6 = vector.load %arg4[%c0_4, %c0_5] : memref<32x32xbf16, #tpu.memory_space<vmem>>, vector<32x32xbf16>
    %cst = arith.constant dense<0.000000e+00> : vector<16x32xf32>
    %7 = tpu.matmul %5, %6, %cst {dimension_numbers = #tpu.dot_dimension_numbers<[1], [0], [0], [1], [0, 0, 1, 1], [], []>} : vector<16x32xbf16>, vector<32x32xbf16>, vector<16x32xf32> -> vector<16x32xf32>
    %8 = arith.addf %3, %7 : vector<16x32xf32>
    %c0_6 = arith.constant 0 : index
    %c0_7 = arith.constant 0 : index
    %9 = vector.load %arg6[%c0_6, %c0_7] : memref<16x32xf32, #tpu.memory_space<vmem>>, vector<16x32xf32>
    tpu.vector_store %arg6[%c0_6, %c0_7], %8 {strides = array<i32>} : memref<16x32xf32, #tpu.memory_space<vmem>>, vector<16x32xf32>,
    %c0_i32_8 = arith.constant 0 : i32
    %10 = arith.cmpi eq, %arg2, %c0_i32_8 : i32
    %11 = arith.extui %10 : i1 to i32
    %c0_i32_9 = arith.constant 0 : i32
    %12 = arith.cmpi ne, %11, %c0_i32_9 : i32
    scf.if %12 {
      %c0_10 = arith.constant 0 : index
      %c0_11 = arith.constant 0 : index
      %13 = vector.load %arg6[%c0_10, %c0_11] : memref<16x32xf32, #tpu.memory_space<vmem>>, vector<16x32xf32>
      %c0_12 = arith.constant 0 : index
      %c0_13 = arith.constant 0 : index
      %14 = vector.load %arg5[%c0_12, %c0_13] : memref<1x32xf32, #tpu.memory_space<vmem>>, vector<1x32xf32>
      %15 = vector.broadcast %14 : vector<1x32xf32> to vector<16x32xf32>
      %16 = arith.addf %13, %15 : vector<16x32xf32>
      %c0_14 = arith.constant 0 : index
      %c0_15 = arith.constant 0 : index
      %17 = vector.load %arg6[%c0_14, %c0_15] : memref<16x32xf32, #tpu.memory_space<vmem>>, vector<16x32xf32>
      tpu.vector_store %arg6[%c0_14, %c0_15], %16 {strides = array<i32>} : memref<16x32xf32, #tpu.memory_space<vmem>>, vector<16x32xf32>,
    } else {
    }
    return
  }
  func.func @transform_0(%arg0: i32, %arg1: i32, %arg2: i32) -> (i32, i32) {
    %c0_i32 = arith.constant 0 : i32
    return %arg0, %arg2 : i32, i32
  }
  func.func @transform_1(%arg0: i32, %arg1: i32, %arg2: i32) -> (i32, i32) {
    %c0_i32 = arith.constant 0 : i32
    return %arg2, %arg1 : i32, i32
  }
  func.func @transform_2(%arg0: i32, %arg1: i32, %arg2: i32) -> (i32, i32) {
    %c0_i32 = arith.constant 0 : i32
    %c0_i32_0 = arith.constant 0 : i32
    return %c0_i32, %arg1 : i32, i32
  }
  func.func @transform_3(%arg0: i32, %arg1: i32, %arg2: i32) -> (i32, i32) {
    %c0_i32 = arith.constant 0 : i32
    return %arg0, %arg1 : i32, i32
  }
}

module attributes {stable_mosaic.version = 11 : i64} {
  func.func @_linear_kernel(%arg0: i32, %arg1: i32, %arg2: i32, %arg3: memref<16x32xf32, #tpu.memory_space<vmem>>, %arg4: memref<32x50xbf16, #tpu.memory_space<vmem>>, %arg5: memref<1x50xf32, #tpu.memory_space<vmem>>, %arg6: memref<16x50xf32, #tpu.memory_space<vmem>>) attributes {dimension_semantics = [#tpu.dimension_semantics<parallel>, #tpu.dimension_semantics<parallel>, #tpu.dimension_semantics<arbitrary>], iteration_bounds = array<i64: 1, 1, 1>, scalar_prefetch = 0 : i64, scratch_operands = 0 : i64, tpu.core_type = #tpu.core_type<tc>, window_params = [{transform_indices = @transform_0, window_bounds = array<i64: 16, 32>}, {transform_indices = @transform_1, window_bounds = array<i64: 32, 50>}, {transform_indices = @transform_2, window_bounds = array<i64: 1, 50>}, {transform_indices = @transform_3, window_bounds = array<i64: 16, 50>}]} {
    %c0_i32 = arith.constant 0 : i32
    %0 = arith.cmpi eq, %arg2, %c0_i32 : i32
    %1 = arith.extui %0 : i1 to i32
    %c0_i32_0 = arith.constant 0 : i32
    %2 = arith.cmpi ne, %1, %c0_i32_0 : i32
    scf.if %2 {
      %cst_10 = arith.constant 0.000000e+00 : f32
      %13 = vector.broadcast %cst_10 : f32 to vector<16x50xf32>
      %c0_11 = arith.constant 0 : index
      %c0_12 = arith.constant 0 : index
      %14 = vector.load %arg6[%c0_11, %c0_12] : memref<16x50xf32, #tpu.memory_space<vmem>>, vector<16x50xf32>
      tpu.vector_store %arg6[%c0_11, %c0_12], %13 {strides = array<i32>} : memref<16x50xf32, #tpu.memory_space<vmem>>, vector<16x50xf32>,
    } else {
    }
    %c0 = arith.constant 0 : index
    %c0_1 = arith.constant 0 : index
    %3 = vector.load %arg6[%c0, %c0_1] : memref<16x50xf32, #tpu.memory_space<vmem>>, vector<16x50xf32>
    %c0_2 = arith.constant 0 : index
    %c0_3 = arith.constant 0 : index
    %4 = vector.load %arg3[%c0_2, %c0_3] : memref<16x32xf32, #tpu.memory_space<vmem>>, vector<16x32xf32>
    %5 = arith.truncf %4 : vector<16x32xf32> to vector<16x32xbf16>
    %c0_4 = arith.constant 0 : index
    %c0_5 = arith.constant 0 : index
    %6 = vector.load %arg4[%c0_4, %c0_5] : memref<32x50xbf16, #tpu.memory_space<vmem>>, vector<32x50xbf16>
    %cst = arith.constant dense<0.000000e+00> : vector<16x50xf32>
    %7 = tpu.matmul %5, %6, %cst {dimension_numbers = #tpu.dot_dimension_numbers<[1], [0], [0], [1], [0, 0, 1, 1], [], []>} : vector<16x32xbf16>, vector<32x50xbf16>, vector<16x50xf32> -> vector<16x50xf32>
    %8 = arith.addf %3, %7 : vector<16x50xf32>
    %c0_6 = arith.constant 0 : index
    %c0_7 = arith.constant 0 : index
    %9 = vector.load %arg6[%c0_6, %c0_7] : memref<16x50xf32, #tpu.memory_space<vmem>>, vector<16x50xf32>
    tpu.vector_store %arg6[%c0_6, %c0_7], %8 {strides = array<i32>} : memref<16x50xf32, #tpu.memory_space<vmem>>, vector<16x50xf32>,
    %c0_i32_8 = arith.constant 0 : i32
    %10 = arith.cmpi eq, %arg2, %c0_i32_8 : i32
    %11 = arith.extui %10 : i1 to i32
    %c0_i32_9 = arith.constant 0 : i32
    %12 = arith.cmpi ne, %11, %c0_i32_9 : i32
    scf.if %12 {
      %c0_10 = arith.constant 0 : index
      %c0_11 = arith.constant 0 : index
      %13 = vector.load %arg6[%c0_10, %c0_11] : memref<16x50xf32, #tpu.memory_space<vmem>>, vector<16x50xf32>
      %c0_12 = arith.constant 0 : index
      %c0_13 = arith.constant 0 : index
      %14 = vector.load %arg5[%c0_12, %c0_13] : memref<1x50xf32, #tpu.memory_space<vmem>>, vector<1x50xf32>
      %15 = vector.broadcast %14 : vector<1x50xf32> to vector<16x50xf32>
      %16 = arith.addf %13, %15 : vector<16x50xf32>
      %c0_14 = arith.constant 0 : index
      %c0_15 = arith.constant 0 : index
      %17 = vector.load %arg6[%c0_14, %c0_15] : memref<16x50xf32, #tpu.memory_space<vmem>>, vector<16x50xf32>
      tpu.vector_store %arg6[%c0_14, %c0_15], %16 {strides = array<i32>} : memref<16x50xf32, #tpu.memory_space<vmem>>, vector<16x50xf32>,
    } else {
    }
    return
  }
  func.func @transform_0(%arg0: i32, %arg1: i32, %arg2: i32) -> (i32, i32) {
    %c0_i32 = arith.constant 0 : i32
    return %arg0, %arg2 : i32, i32
  }
  func.func @transform_1(%arg0: i32, %arg1: i32, %arg2: i32) -> (i32, i32) {
    %c0_i32 = arith.constant 0 : i32
    return %arg2, %arg1 : i32, i32
  }
  func.func @transform_2(%arg0: i32, %arg1: i32, %arg2: i32) -> (i32, i32) {
    %c0_i32 = arith.constant 0 : i32
    %c0_i32_0 = arith.constant 0 : i32
    return %c0_i32, %arg1 : i32, i32
  }
  func.func @transform_3(%arg0: i32, %arg1: i32, %arg2: i32) -> (i32, i32) {
    %c0_i32 = arith.constant 0 : i32
    return %arg0, %arg1 : i32, i32
  }
}

</mosaic_0001>

<llo_original>
// kernel: transformer_forward.32
$region0: #{transformer_forward.32}
  #allocation0 [shape = 'u32[]', space=smem, size = 0x4, offset = 0x4, fixed_abs, tag = 'smem constant byte address 0x4 - core index']
  #allocation1 [shape = 'u32[72,128]{1,0:T(1,128)}', space=vmem, size = 0x9000, scoped, tag = 'internal scratch']
  %s0 = inlined_call_operand.vmem [shape: f32[16,32], index: 0, kind: input, shape index: {}]
  %s1 = inlined_call_operand.vmem [shape: bf16[32,64], index: 1, kind: input, shape index: {}]
  %s2 = inlined_call_operand.vmem [shape: f32[1,64], index: 2, kind: input, shape index: {}]
  %s3 = inlined_call_operand.vmem [shape: f32[16,64], index: 3, kind: output, shape index: {}]
  %s4 = sld [smem:[#allocation0]]
  $region30: #{transformer_forward.32} parent=0
    _
  %s6 = ssub.s32 1, %s4
  %s7 = scalar_select 0, %s6, %s4
  // Predicated region
  $region2: #{transformer_forward.32} parent=0 // pred_check
    _
  $region3: #{transformer_forward.32} parent=0 // pred_check_branch
    %9 = sbr.rel (0) target = $region5
  $region4: #{transformer_forward.32} parent=0 // pred_region
    _
  $region5: #{transformer_forward.32} parent=0 // pred_fallthru
    _
  // Predicated region
  $region6: #{transformer_forward.32} parent=0 // pred_check
    _
  $region7: #{transformer_forward.32} parent=0 // pred_check_branch
    %11 = sbr.rel (0) target = $region9
  $region8: #{transformer_forward.32} parent=0 // pred_region
    _
  $region9: #{transformer_forward.32} parent=0 // pred_fallthru
    _
  // Predicated region
  $region10: #{transformer_forward.32} parent=0 // pred_check
    _
  $region11: #{transformer_forward.32} parent=0 // pred_check_branch
    %13 = sbr.rel (0) target = $region13
  $region12: #{transformer_forward.32} parent=0 // pred_region
    _
  $region13: #{transformer_forward.32} parent=0 // pred_fallthru
    _
  %p15 = scmp.eq.s32.totalorder 0, 0
  // Predicated region
  $region14: #{transformer_forward.32} parent=0 // pred_check
    %p16 = pneg %p15
  $region15: #{transformer_forward.32} parent=0 // pred_check_branch
    %18 = sbr.rel (%p16) target = $region17
  $region16: #{transformer_forward.32} parent=0 // pred_region
    %vm19 = vcmask 523264
    %20 = vst.msk [vmem:[%s3] sm:$0xff] %vm19, 0.0
    %21 = vst.msk [vmem:[%s3 + $0x8] sm:$0xff] %vm19, 0.0
  $region17: #{transformer_forward.32} parent=0 // pred_fallthru
    _
  %v22 = vld [vmem:[%s3] sm:$0xff]
  %v23 = vld [vmem:[%s3 + $0x8] sm:$0xff]
  %v24 = vld [vmem:[%s0] sm:$0xff]
  %v25 = vld [vmem:[%s0 + $0x8] sm:$0xff]
  %v26 = vpack.c.bf16 %v25, %v24
  %v27 = vld [vmem:[%s1] sm:$0xf]
  %v28 = vld [vmem:[%s1 + $0x4] sm:$0xf]
  %v29 = vld [vmem:[%s1 + $0x8] sm:$0xf]
  %v30 = vld [vmem:[%s1 + $0xc] sm:$0xf]
  %v35 = vunpack.c.l.b16 %v27
  %v36 = vunpack.c.l.b16 %v28
  %v37 = vunpack.c.l.b16 %v29
  %v38 = vunpack.c.l.b16 %v30
  %v39 = vpack.c.b16 %v36, %v35
  %v40 = vpack.c.b16 %v38, %v37
  %vm43 = vcmask 261120
  %v45 = vsel %vm43, %v26, 0
  %47 = vmatpush.bf16.msra.mxu0 0
  %48 = vmatpush.bf16.msra.mxu0 0
  %49 = vmatpush.bf16.msra.mxu0 0
  %50 = vmatpush.bf16.msra.mxu0 0
  %51 = vmatpush.bf16.msra.mxu0 0
  %52 = vmatpush.bf16.msra.mxu0 0
  %53 = vmatpush.bf16.msra.mxu0 %v40
  %54 = vmatpush.bf16.msra.mxu0 %v39
  %55 = vmatmul.bf16.gmra.mxu0 %v45
  %v56 = vpop.f32.mrf.mxu0
  %v57 = vadd.f32 0.0, %v56
  %v58 = vpop.f32.mrf.mxu0
  %v59 = vadd.f32 0.0, %v58
  %60 = vdwg.mxu0
  %v61 = vadd.f32 %v22, %v57
  %v62 = vadd.f32 %v23, %v59
  %vm63 = vcmask 523264
  %64 = vst.msk [vmem:[%s3] sm:$0xff] %vm63, %v61
  %65 = vst.msk [vmem:[%s3 + $0x8] sm:$0xff] %vm63, %v62
  // Predicated region
  $region18: #{transformer_forward.32} parent=0 // pred_check
    %p66 = pneg %p15
  $region19: #{transformer_forward.32} parent=0 // pred_check_branch
    %68 = sbr.rel (%p66) target = $region21
  $region20: #{transformer_forward.32} parent=0 // pred_region
    %v69 = vld [vmem:[%s3] sm:$0xff]
    %v70 = vld [vmem:[%s3 + $0x8] sm:$0xff]
    %v71 = vld [vmem:[%s2] sm:$0x1]
    %v73 = vperm.slane %v71, 0
    %v75 = vadd.f32 %v69, %v73
    %v76 = vadd.f32 %v70, %v73
    %v77 = vmax.f32 %v75, 0.0
    %v78 = vmax.f32 %v76, 0.0
    %79 = vst.msk [vmem:[%s3] sm:$0xff] %vm63, %v77
    %80 = vst.msk [vmem:[%s3 + $0x8] sm:$0xff] %vm63, %v78
  $region21: #{transformer_forward.32} parent=0 // pred_fallthru
    _
  // Predicated region
  $region22: #{transformer_forward.32} parent=0 // pred_check
    _
  $region23: #{transformer_forward.32} parent=0 // pred_check_branch
    %82 = sbr.rel (0) target = $region25
  $region24: #{transformer_forward.32} parent=0 // pred_region
    _
  $region25: #{transformer_forward.32} parent=0 // pred_fallthru
    _
  // Predicated region
  $region26: #{transformer_forward.32} parent=0 // pred_check
    _
  $region27: #{transformer_forward.32} parent=0 // pred_check_branch
    %84 = sbr.rel (0) target = $region29
  $region28: #{transformer_forward.32} parent=0 // pred_region
    _
  $region29: #{transformer_forward.32} parent=0 // pred_fallthru
    _

// kernel: transformer_forward.29
$region0: #{transformer_forward.29}
  #allocation0 [shape = 'u32[]', space=smem, size = 0x4, offset = 0x4, fixed_abs, tag = 'smem constant byte address 0x4 - core index']
  #allocation1 [shape = 'u32[72,128]{1,0:T(1,128)}', space=vmem, size = 0x9000, scoped, tag = 'internal scratch']
  %s0 = inlined_call_operand.vmem [shape: f32[16,32], index: 0, kind: input, shape index: {}]
  %s1 = inlined_call_operand.vmem [shape: bf16[32,96], index: 1, kind: input, shape index: {}]
  %s2 = inlined_call_operand.vmem [shape: f32[1,96], index: 2, kind: input, shape index: {}]
  %s3 = inlined_call_operand.vmem [shape: f32[16,96], index: 3, kind: output, shape index: {}]
  %s4 = sld [smem:[#allocation0]]
  $region30: #{transformer_forward.29} parent=0
    _
  %s6 = ssub.s32 1, %s4
  %s7 = scalar_select 0, %s6, %s4
  // Predicated region
  $region2: #{transformer_forward.29} parent=0 // pred_check
    _
  $region3: #{transformer_forward.29} parent=0 // pred_check_branch
    %9 = sbr.rel (0) target = $region5
  $region4: #{transformer_forward.29} parent=0 // pred_region
    _
  $region5: #{transformer_forward.29} parent=0 // pred_fallthru
    _
  // Predicated region
  $region6: #{transformer_forward.29} parent=0 // pred_check
    _
  $region7: #{transformer_forward.29} parent=0 // pred_check_branch
    %11 = sbr.rel (0) target = $region9
  $region8: #{transformer_forward.29} parent=0 // pred_region
    _
  $region9: #{transformer_forward.29} parent=0 // pred_fallthru
    _
  // Predicated region
  $region10: #{transformer_forward.29} parent=0 // pred_check
    _
  $region11: #{transformer_forward.29} parent=0 // pred_check_branch
    %13 = sbr.rel (0) target = $region13
  $region12: #{transformer_forward.29} parent=0 // pred_region
    _
  $region13: #{transformer_forward.29} parent=0 // pred_fallthru
    _
  %p15 = scmp.eq.s32.totalorder 0, 0
  // Predicated region
  $region14: #{transformer_forward.29} parent=0 // pred_check
    %p16 = pneg %p15
  $region15: #{transformer_forward.29} parent=0 // pred_check_branch
    %18 = sbr.rel (%p16) target = $region17
  $region16: #{transformer_forward.29} parent=0 // pred_region
    %vm19 = vcmask 785408
    %20 = vst.msk [vmem:[%s3] sm:$0xff] %vm19, 0.0
    %21 = vst.msk [vmem:[%s3 + $0x8] sm:$0xff] %vm19, 0.0
  $region17: #{transformer_forward.29} parent=0 // pred_fallthru
    _
  %v22 = vld [vmem:[%s3] sm:$0xff]
  %v23 = vld [vmem:[%s3 + $0x8] sm:$0xff]
  %v24 = vld [vmem:[%s0] sm:$0xff]
  %v25 = vld [vmem:[%s0 + $0x8] sm:$0xff]
  %v26 = vpack.c.bf16 %v25, %v24
  %v27 = vld [vmem:[%s1] sm:$0xf]
  %v28 = vld [vmem:[%s1 + $0x4] sm:$0xf]
  %v29 = vld [vmem:[%s1 + $0x8] sm:$0xf]
  %v30 = vld [vmem:[%s1 + $0xc] sm:$0xf]
  %v35 = vunpack.c.l.b16 %v27
  %v36 = vunpack.c.l.b16 %v28
  %v37 = vunpack.c.l.b16 %v29
  %v38 = vunpack.c.l.b16 %v30
  %v39 = vpack.c.b16 %v36, %v35
  %v40 = vpack.c.b16 %v38, %v37
  %vm43 = vcmask 261120
  %v45 = vsel %vm43, %v26, 0
  %47 = vmatpush.bf16.msra.mxu0 0
  %48 = vmatpush.bf16.msra.mxu0 0
  %49 = vmatpush.bf16.msra.mxu0 0
  %50 = vmatpush.bf16.msra.mxu0 0
  %51 = vmatpush.bf16.msra.mxu0 0
  %52 = vmatpush.bf16.msra.mxu0 0
  %53 = vmatpush.bf16.msra.mxu0 %v40
  %54 = vmatpush.bf16.msra.mxu0 %v39
  %55 = vmatmul.bf16.gmra.mxu0 %v45
  %v56 = vpop.f32.mrf.mxu0
  %v57 = vadd.f32 0.0, %v56
  %v58 = vpop.f32.mrf.mxu0
  %v59 = vadd.f32 0.0, %v58
  %60 = vdwg.mxu0
  %v61 = vadd.f32 %v22, %v57
  %v62 = vadd.f32 %v23, %v59
  %vm63 = vcmask 785408
  %64 = vst.msk [vmem:[%s3] sm:$0xff] %vm63, %v61
  %65 = vst.msk [vmem:[%s3 + $0x8] sm:$0xff] %vm63, %v62
  // Predicated region
  $region18: #{transformer_forward.29} parent=0 // pred_check
    %p66 = pneg %p15
  $region19: #{transformer_forward.29} parent=0 // pred_check_branch
    %68 = sbr.rel (%p66) target = $region21
  $region20: #{transformer_forward.29} parent=0 // pred_region
    %v69 = vld [vmem:[%s3] sm:$0xff]
    %v70 = vld [vmem:[%s3 + $0x8] sm:$0xff]
    %v71 = vld [vmem:[%s2] sm:$0x1]
    %v73 = vperm.slane %v71, 0
    %v75 = vadd.f32 %v69, %v73
    %v76 = vadd.f32 %v70, %v73
    %77 = vst.msk [vmem:[%s3] sm:$0xff] %vm63, %v75
    %78 = vst.msk [vmem:[%s3 + $0x8] sm:$0xff] %vm63, %v76
  $region21: #{transformer_forward.29} parent=0 // pred_fallthru
    _
  // Predicated region
  $region22: #{transformer_forward.29} parent=0 // pred_check
    _
  $region23: #{transformer_forward.29} parent=0 // pred_check_branch
    %80 = sbr.rel (0) target = $region25
  $region24: #{transformer_forward.29} parent=0 // pred_region
    _
  $region25: #{transformer_forward.29} parent=0 // pred_fallthru
    _
  // Predicated region
  $region26: #{transformer_forward.29} parent=0 // pred_check
    _
  $region27: #{transformer_forward.29} parent=0 // pred_check_branch
    %82 = sbr.rel (0) target = $region29
  $region28: #{transformer_forward.29} parent=0 // pred_region
    _
  $region29: #{transformer_forward.29} parent=0 // pred_fallthru
    _

// kernel: transformer_forward.31
$region0: #{transformer_forward.31}
  #allocation0 [shape = 'u32[]', space=smem, size = 0x4, offset = 0x4, fixed_abs, tag = 'smem constant byte address 0x4 - core index']
  #allocation1 [shape = 'u32[72,128]{1,0:T(1,128)}', space=vmem, size = 0x9000, scoped, tag = 'internal scratch']
  %s0 = inlined_call_operand.vmem [shape: f32[16,32], index: 0, kind: input, shape index: {}]
  %s1 = inlined_call_operand.vmem [shape: bf16[32,32], index: 1, kind: input, shape index: {}]
  %s2 = inlined_call_operand.vmem [shape: f32[1,32], index: 2, kind: input, shape index: {}]
  %s3 = inlined_call_operand.vmem [shape: f32[16,32], index: 3, kind: input, shape index: {}]
  %s4 = inlined_call_operand.vmem [shape: f32[1,32], index: 4, kind: input, shape index: {}]
  %s5 = inlined_call_operand.vmem [shape: f32[1,32], index: 5, kind: input, shape index: {}]
  %s6 = inlined_call_operand.vmem [shape: f32[16,32], index: 6, kind: output, shape index: {}]
  %s7 = sld [smem:[#allocation0]]
  $region42: #{transformer_forward.31} parent=0
    _
  %s9 = ssub.s32 1, %s7
  %s10 = scalar_select 0, %s9, %s7
  // Predicated region
  $region2: #{transformer_forward.31} parent=0 // pred_check
    _
  $region3: #{transformer_forward.31} parent=0 // pred_check_branch
    %12 = sbr.rel (0) target = $region5
  $region4: #{transformer_forward.31} parent=0 // pred_region
    _
  $region5: #{transformer_forward.31} parent=0 // pred_fallthru
    _
  // Predicated region
  $region6: #{transformer_forward.31} parent=0 // pred_check
    _
  $region7: #{transformer_forward.31} parent=0 // pred_check_branch
    %14 = sbr.rel (0) target = $region9
  $region8: #{transformer_forward.31} parent=0 // pred_region
    _
  $region9: #{transformer_forward.31} parent=0 // pred_fallthru
    _
  // Predicated region
  $region10: #{transformer_forward.31} parent=0 // pred_check
    _
  $region11: #{transformer_forward.31} parent=0 // pred_check_branch
    %16 = sbr.rel (0) target = $region13
  $region12: #{transformer_forward.31} parent=0 // pred_region
    _
  $region13: #{transformer_forward.31} parent=0 // pred_fallthru
    _
  // Predicated region
  $region14: #{transformer_forward.31} parent=0 // pred_check
    _
  $region15: #{transformer_forward.31} parent=0 // pred_check_branch
    %18 = sbr.rel (0) target = $region17
  $region16: #{transformer_forward.31} parent=0 // pred_region
    _
  $region17: #{transformer_forward.31} parent=0 // pred_fallthru
    _
  // Predicated region
  $region18: #{transformer_forward.31} parent=0 // pred_check
    _
  $region19: #{transformer_forward.31} parent=0 // pred_check_branch
    %20 = sbr.rel (0) target = $region21
  $region20: #{transformer_forward.31} parent=0 // pred_region
    _
  $region21: #{transformer_forward.31} parent=0 // pred_fallthru
    _
  // Predicated region
  $region22: #{transformer_forward.31} parent=0 // pred_check
    _
  $region23: #{transformer_forward.31} parent=0 // pred_check_branch
    %22 = sbr.rel (0) target = $region25
  $region24: #{transformer_forward.31} parent=0 // pred_region
    _
  $region25: #{transformer_forward.31} parent=0 // pred_fallthru
    _
  %p24 = scmp.eq.s32.totalorder 0, 0
  // Predicated region
  $region26: #{transformer_forward.31} parent=0 // pred_check
    %p25 = pneg %p24
  $region27: #{transformer_forward.31} parent=0 // pred_check_branch
    %27 = sbr.rel (%p25) target = $region29
  $region28: #{transformer_forward.31} parent=0 // pred_region
    %vm28 = vcmask 261120
    %29 = vst.msk [vmem:[%s6] sm:$0xff] %vm28, 0.0
    %30 = vst.msk [vmem:[%s6 + $0x8] sm:$0xff] %vm28, 0.0
  $region29: #{transformer_forward.31} parent=0 // pred_fallthru
    _
  %v31 = vld [vmem:[%s6] sm:$0xff]
  %v32 = vld [vmem:[%s6 + $0x8] sm:$0xff]
  %v33 = vld [vmem:[%s0] sm:$0xff]
  %v34 = vld [vmem:[%s0 + $0x8] sm:$0xff]
  %v35 = vpack.c.bf16 %v34, %v33
  %v36 = vld [vmem:[%s1] sm:$0xf]
  %v37 = vld [vmem:[%s1 + $0x4] sm:$0xf]
  %v38 = vld [vmem:[%s1 + $0x8] sm:$0xf]
  %v39 = vld [vmem:[%s1 + $0xc] sm:$0xf]
  %v44 = vunpack.c.l.b16 %v36
  %v45 = vunpack.c.l.b16 %v37
  %v46 = vunpack.c.l.b16 %v38
  %v47 = vunpack.c.l.b16 %v39
  %v48 = vpack.c.b16 %v45, %v44
  %v49 = vpack.c.b16 %v47, %v46
  %vm52 = vcmask 261120
  %v54 = vsel %vm52, %v35, 0
  %56 = vmatpush.bf16.msra.mxu0 0
  %57 = vmatpush.bf16.msra.mxu0 0
  %58 = vmatpush.bf16.msra.mxu0 0
  %59 = vmatpush.bf16.msra.mxu0 0
  %60 = vmatpush.bf16.msra.mxu0 0
  %61 = vmatpush.bf16.msra.mxu0 0
  %62 = vmatpush.bf16.msra.mxu0 %v49
  %63 = vmatpush.bf16.msra.mxu0 %v48
  %64 = vmatmul.bf16.gmra.mxu0 %v54
  %v65 = vpop.f32.mrf.mxu0
  %v66 = vadd.f32 0.0, %v65
  %v67 = vpop.f32.mrf.mxu0
  %v68 = vadd.f32 0.0, %v67
  %69 = vdwg.mxu0
  %v70 = vadd.f32 %v31, %v66
  %v71 = vadd.f32 %v32, %v68
  %72 = vst.msk [vmem:[%s6] sm:$0xff] %vm52, %v70
  %73 = vst.msk [vmem:[%s6 + $0x8] sm:$0xff] %vm52, %v71
  // Predicated region
  $region30: #{transformer_forward.31} parent=0 // pred_check
    %p74 = pneg %p24
  $region31: #{transformer_forward.31} parent=0 // pred_check_branch
    %76 = sbr.rel (%p74) target = $region33
  $region32: #{transformer_forward.31} parent=0 // pred_region
    %v77 = vld [vmem:[%s6] sm:$0xff]
    %v78 = vld [vmem:[%s6 + $0x8] sm:$0xff]
    %v79 = vld [vmem:[%s2] sm:$0x1]
    %v81 = vperm.slane %v79, 0
    %v83 = vadd.f32 %v77, %v81
    %v84 = vadd.f32 %v78, %v81
    %v85 = vld [vmem:[%s3] sm:$0xff]
    %v86 = vld [vmem:[%s3 + $0x8] sm:$0xff]
    %v87 = vadd.f32 %v83, %v85
    %v88 = vadd.f32 %v84, %v86
    %v89 = vsel %vm52, %v87, 0.0
    %90 = vadd.xlane.f32.xlu0 %v89
    %v91 = vpop.xlane.xlu0 %90
    %v92 = vsel %vm52, %v88, 0.0
    %93 = vadd.xlane.f32.xlu0 %v92
    %v94 = vpop.xlane.xlu0 %93
    %v95 = vrcp.pop 32.0
    %v96 = vmul.f32 32.0, %v95
    %v97 = vsub.f32 1.0, %v96
    %v98 = vmul.f32 %v95, %v97
    %v99 = vadd.f32 %v95, %v98
    %vm100 = vweird.f32 %v95
    %v101 = vsel %vm100, %v95, %v99
    %v102 = vmul.f32 %v91, %v101
    %v103 = vmul.f32 %v94, %v101
    %v104 = vsub.f32 %v87, %v102
    %v105 = vsub.f32 %v88, %v103
    %v106 = vmul.f32 %v104, %v104
    %v107 = vmul.f32 %v105, %v105
    %v108 = vsel %vm52, %v106, 0.0
    %109 = vadd.xlane.f32.xlu0 %v108
    %v110 = vpop.xlane.xlu0 %109
    %v111 = vsel %vm52, %v107, 0.0
    %112 = vadd.xlane.f32.xlu0 %v111
    %v113 = vpop.xlane.xlu0 %112
    %v114 = vmul.f32 %v110, %v101
    %v115 = vmul.f32 %v113, %v101
    %v116 = vadd.f32 %v114, 1e-05
    %v117 = vadd.f32 %v115, 1e-05
    %v118 = vrsqrt.pop %v116
    %v119 = vmul.f32 %v118, %v116
    %v120 = vmul.f32 %v119, %v118
    %v121 = vmul.f32 0.5, %v120
    %v122 = vsub.f32 1.5, %v121
    %v123 = vmul.f32 %v118, %v122
    %vm124 = vweird.f32 %v116
    %vm125 = vweird.f32 %v118
    %vm126 = vmor %vm124, %vm125
    %v127 = vsel %vm126, %v118, %v123
    %v128 = vrsqrt.pop %v117
    %v129 = vmul.f32 %v128, %v117
    %v130 = vmul.f32 %v129, %v128
    %v131 = vmul.f32 0.5, %v130
    %v132 = vsub.f32 1.5, %v131
    %v133 = vmul.f32 %v128, %v132
    %vm134 = vweird.f32 %v117
    %vm135 = vweird.f32 %v128
    %vm136 = vmor %vm134, %vm135
    %v137 = vsel %vm136, %v128, %v133
    %v138 = vmul.f32 %v104, %v127
    %v139 = vmul.f32 %v105, %v137
    %v140 = vld [vmem:[%s4] sm:$0x1]
    %v142 = vperm.slane %v140, 0
    %v144 = vmul.f32 %v138, %v142
    %v145 = vmul.f32 %v139, %v142
    %v146 = vld [vmem:[%s5] sm:$0x1]
    %v148 = vperm.slane %v146, 0
    %v150 = vadd.f32 %v144, %v148
    %v151 = vadd.f32 %v145, %v148
    %152 = vst.msk [vmem:[%s6] sm:$0xff] %vm52, %v150
    %153 = vst.msk [vmem:[%s6 + $0x8] sm:$0xff] %vm52, %v151
  $region33: #{transformer_forward.31} parent=0 // pred_fallthru
    _
  // Predicated region
  $region34: #{transformer_forward.31} parent=0 // pred_check
    _
  $region35: #{transformer_forward.31} parent=0 // pred_check_branch
    %155 = sbr.rel (0) target = $region37
  $region36: #{transformer_forward.31} parent=0 // pred_region
    _
  $region37: #{transformer_forward.31} parent=0 // pred_fallthru
    _
  // Predicated region
  $region38: #{transformer_forward.31} parent=0 // pred_check
    _
  $region39: #{transformer_forward.31} parent=0 // pred_check_branch
    %157 = sbr.rel (0) target = $region41
  $region40: #{transformer_forward.31} parent=0 // pred_region
    _
  $region41: #{transformer_forward.31} parent=0 // pred_fallthru
    _

// kernel: transformer_forward.30
$region0: #{transformer_forward.30}
  #allocation0 [shape = 'u32[]', space=smem, size = 0x4, offset = 0x4, fixed_abs, tag = 'smem constant byte address 0x4 - core index']
  #allocation1 [shape = 'u32[72,128]{1,0:T(1,128)}', space=vmem, size = 0x9000, scoped, tag = 'internal scratch']
  #allocation2 [shape = 'f32[4,8,1]{2,1,0:T(8,128)}', space=vmem, size = 0x4000, scoped, tag = 'scratch operand']
  #allocation3 [shape = 'f32[4,8,1]{2,1,0:T(8,128)}', space=vmem, size = 0x4000, scoped, tag = 'scratch operand']
  #allocation4 [shape = 'f32[4,8,8]{2,1,0:T(8,128)}', space=vmem, size = 0x4000, scoped, tag = 'scratch operand']
  %s0 = inlined_call_operand.vmem [shape: f32[2,8,32], index: 0, kind: input, shape index: {}]
  %s1 = inlined_call_operand.vmem [shape: f32[2,8,32], index: 1, kind: input, shape index: {}]
  %s2 = inlined_call_operand.vmem [shape: f32[2,8,32], index: 2, kind: input, shape index: {}]
  %s3 = inlined_call_operand.vmem [shape: f32[2,8,1], index: 3, kind: input, shape index: {}]
  %s4 = inlined_call_operand.vmem [shape: f32[2,1,8], index: 4, kind: input, shape index: {}]
  %s5 = inlined_call_operand.vmem [shape: f32[2,8,32], index: 5, kind: output, shape index: {}]
  %s6 = sld [smem:[#allocation0]]
  $region61: #{transformer_forward.30} parent=0
    _
  %s8 = ssub.s32 1, %s6
  %s9 = scalar_select 0, %s8, %s6
  loop: start=0, step=1, limit=4
  $region2: #{transformer_forward.30} parent=0 // loop_pre_header
    _
  $region3: #{transformer_forward.30} parent=0 // loop_header
    %s11 = sphi 0, %s15
    %p12 = scmp.ge.s32.totalorder %s11, 4
    %s18 = sphi 0, %s37
    %s19 = sphi 0, %s33
    %s20 = sphi 0, %s29
    %s21 = sphi 0, %s18
    %s22 = sphi 0, %s19
    %s23 = sphi 0, %s20
    %s24 = sphi 0, %s21
    %s25 = sphi 0, %s22
    %s26 = sphi 0, %s23
    %s42 = sphi 0, %s44
    %s45 = sphi 0, %s42
    %s46 = sphi 0, %s45
    %s62 = sphi 0, %s46
    %s70 = sphi 0, %s72
    %s73 = sphi 0, %s70
    %s74 = sphi 0, %s73
    %s90 = sphi 0, %s74
    %s98 = sphi 0, %s100
    %s101 = sphi 0, %s98
    %s102 = sphi 0, %s101
    %s118 = sphi 0, %s102
    %s126 = sphi 0, %s128
    %s129 = sphi 0, %s126
    %s130 = sphi 0, %s129
    %s146 = sphi 0, %s130
    %s154 = sphi 0, %s156
    %s157 = sphi 0, %s154
    %s158 = sphi 0, %s157
    %s174 = sphi 0, %s158
    %s182 = sphi 0, %s184
    %s185 = sphi 0, %s182
    %s186 = sphi 0, %s185
    %s202 = sphi 0, %s186
  $region4: #{transformer_forward.30} parent=0 // loop_header_branch
    %14 = sbr.rel (%p12) target = $region8
  $region5: #{transformer_forward.30} parent=0 // loop_body
    %s16 = ssub.s32 %s11, 1
    %s17 = ssub.s32 %s11, 2
    %s27 = sadd.s32 1, %s20
    %p28 = scmp.ge.s32.totalorder %s27, 1
    %s29 = scalar_select %p28, 0, %s27
    %s30 = sadd.s32 1, %s19
    %s31 = scalar_select %p28, %s30, %s19
    %p32 = scmp.ge.s32.totalorder %s31, 1
    %s33 = scalar_select %p32, 0, %s31
    %s34 = sadd.s32 1, %s18
    %s35 = scalar_select %p32, %s34, %s18
    %p36 = scmp.ge.s32.totalorder %s35, 2
    %s37 = scalar_select %p36, 0, %s35
    %s38 = ssub.s32 %s18, %s37
    %s39 = ssub.s32 %s19, %s33
    %s40 = sor.u32 %s38, %s39
    %p41 = scmp.eq.s32.totalorder %s40, 0
    %s43 = sadd.s32 %s42, 1
    %s44 = scalar_select %p41, %s42, %s43
    %p47 = pneg %p41
    %p48 = scmp.eq.s32.totalorder %s11, 1
    %p49 = por %p47, %p48
    %p50 = scmp.ne.s32.totalorder %s42, %s45
    %p51 = scmp.eq.s32.totalorder %s11, 0
    %p52 = por %p50, %p51
    %p53 = scmp.ne.s32.totalorder %s42, %s45
    %p54 = scmp.eq.s32.totalorder %s16, 1
    %p55 = por %p53, %p54
    %p56 = scmp.ne.s32.totalorder %s45, %s46
    %p57 = scmp.eq.s32.totalorder %s16, 0
    %p58 = por %p56, %p57
    %p59 = scmp.ne.s32.totalorder %s45, %s46
    %p60 = scmp.eq.s32.totalorder %s17, 1
    %p61 = por %p59, %p60
    %p63 = scmp.ne.s32.totalorder %s46, %s62
    %p64 = scmp.eq.s32.totalorder %s17, 0
    %p65 = por %p63, %p64
    %s66 = ssub.s32 %s18, %s37
    %s67 = ssub.s32 %s20, %s29
    %s68 = sor.u32 %s66, %s67
    %p69 = scmp.eq.s32.totalorder %s68, 0
    %s71 = sadd.s32 %s70, 1
    %s72 = scalar_select %p69, %s70, %s71
    %p75 = pneg %p69
    %p76 = scmp.eq.s32.totalorder %s11, 1
    %p77 = por %p75, %p76
    %p78 = scmp.ne.s32.totalorder %s70, %s73
    %p79 = scmp.eq.s32.totalorder %s11, 0
    %p80 = por %p78, %p79
    %p81 = scmp.ne.s32.totalorder %s70, %s73
    %p82 = scmp.eq.s32.totalorder %s16, 1
    %p83 = por %p81, %p82
    %p84 = scmp.ne.s32.totalorder %s73, %s74
    %p85 = scmp.eq.s32.totalorder %s16, 0
    %p86 = por %p84, %p85
    %p87 = scmp.ne.s32.totalorder %s73, %s74
    %p88 = scmp.eq.s32.totalorder %s17, 1
    %p89 = por %p87, %p88
    %p91 = scmp.ne.s32.totalorder %s74, %s90
    %p92 = scmp.eq.s32.totalorder %s17, 0
    %p93 = por %p91, %p92
    %s94 = ssub.s32 %s18, %s37
    %s95 = ssub.s32 %s20, %s29
    %s96 = sor.u32 %s94, %s95
    %p97 = scmp.eq.s32.totalorder %s96, 0
    %s99 = sadd.s32 %s98, 1
    %s100 = scalar_select %p97, %s98, %s99
    %p103 = pneg %p97
    %p104 = scmp.eq.s32.totalorder %s11, 1
    %p105 = por %p103, %p104
    %p106 = scmp.ne.s32.totalorder %s98, %s101
    %p107 = scmp.eq.s32.totalorder %s11, 0
    %p108 = por %p106, %p107
    %p109 = scmp.ne.s32.totalorder %s98, %s101
    %p110 = scmp.eq.s32.totalorder %s16, 1
    %p111 = por %p109, %p110
    %p112 = scmp.ne.s32.totalorder %s101, %s102
    %p113 = scmp.eq.s32.totalorder %s16, 0
    %p114 = por %p112, %p113
    %p115 = scmp.ne.s32.totalorder %s101, %s102
    %p116 = scmp.eq.s32.totalorder %s17, 1
    %p117 = por %p115, %p116
    %p119 = scmp.ne.s32.totalorder %s102, %s118
    %p120 = scmp.eq.s32.totalorder %s17, 0
    %p121 = por %p119, %p120
    %s122 = ssub.s32 %s18, %s37
    %s123 = ssub.s32 %s19, %s33
    %s124 = sor.u32 %s122, %s123
    %p125 = scmp.eq.s32.totalorder %s124, 0
    %s127 = sadd.s32 %s126, 1
    %s128 = scalar_select %p125, %s126, %s127
    %p131 = pneg %p125
    %p132 = scmp.eq.s32.totalorder %s11, 1
    %p133 = por %p131, %p132
    %p134 = scmp.ne.s32.totalorder %s126, %s129
    %p135 = scmp.eq.s32.totalorder %s11, 0
    %p136 = por %p134, %p135
    %p137 = scmp.ne.s32.totalorder %s126, %s129
    %p138 = scmp.eq.s32.totalorder %s16, 1
    %p139 = por %p137, %p138
    %p140 = scmp.ne.s32.totalorder %s129, %s130
    %p141 = scmp.eq.s32.totalorder %s16, 0
    %p142 = por %p140, %p141
    %p143 = scmp.ne.s32.totalorder %s129, %s130
    %p144 = scmp.eq.s32.totalorder %s17, 1
    %p145 = por %p143, %p144
    %p147 = scmp.ne.s32.totalorder %s130, %s146
    %p148 = scmp.eq.s32.totalorder %s17, 0
    %p149 = por %p147, %p148
    %s150 = ssub.s32 %s18, %s37
    %s151 = ssub.s32 %s20, %s29
    %s152 = sor.u32 %s150, %s151
    %p153 = scmp.eq.s32.totalorder %s152, 0
    %s155 = sadd.s32 %s154, 1
    %s156 = scalar_select %p153, %s154, %s155
    %p159 = pneg %p153
    %p160 = scmp.eq.s32.totalorder %s11, 1
    %p161 = por %p159, %p160
    %p162 = scmp.ne.s32.totalorder %s154, %s157
    %p163 = scmp.eq.s32.totalorder %s11, 0
    %p164 = por %p162, %p163
    %p165 = scmp.ne.s32.totalorder %s154, %s157
    %p166 = scmp.eq.s32.totalorder %s16, 1
    %p167 = por %p165, %p166
    %p168 = scmp.ne.s32.totalorder %s157, %s158
    %p169 = scmp.eq.s32.totalorder %s16, 0
    %p170 = por %p168, %p169
    %p171 = scmp.ne.s32.totalorder %s157, %s158
    %p172 = scmp.eq.s32.totalorder %s17, 1
    %p173 = por %p171, %p172
    %p175 = scmp.ne.s32.totalorder %s158, %s174
    %p176 = scmp.eq.s32.totalorder %s17, 0
    %p177 = por %p175, %p176
    %s178 = ssub.s32 %s18, %s37
    %s179 = ssub.s32 %s19, %s33
    %s180 = sor.u32 %s178, %s179
    %p181 = scmp.eq.s32.totalorder %s180, 0
    %s183 = sadd.s32 %s182, 1
    %s184 = scalar_select %p181, %s182, %s183
    %p187 = pneg %p181
    %p188 = scmp.eq.s32.totalorder %s11, 1
    %p189 = por %p187, %p188
    %p190 = scmp.ne.s32.totalorder %s182, %s185
    %p191 = scmp.eq.s32.totalorder %s11, 0
    %p192 = por %p190, %p191
    %p193 = scmp.ne.s32.totalorder %s182, %s185
    %p194 = scmp.eq.s32.totalorder %s16, 1
    %p195 = por %p193, %p194
    %p196 = scmp.ne.s32.totalorder %s185, %s186
    %p197 = scmp.eq.s32.totalorder %s16, 0
    %p198 = por %p196, %p197
    %p199 = scmp.ne.s32.totalorder %s185, %s186
    %p200 = scmp.eq.s32.totalorder %s17, 1
    %p201 = por %p199, %p200
    %p203 = scmp.ne.s32.totalorder %s186, %s202
    %p204 = scmp.eq.s32.totalorder %s17, 0
    %p205 = por %p203, %p204
    %p206 = scmp.le.s32.totalorder 1, %s11
    %p207 = scmp.lt.s32.totalorder %s11, 3
    %p208 = pnand %p206, %p207
    %p209 = pneg %p208
    // Predicated region
    $region9: #{transformer_forward.30} parent=5 // pred_check
      _
    $region10: #{transformer_forward.30} parent=5 // pred_check_branch
      %211 = sbr.rel (%p208) target = $region12
    $region11: #{transformer_forward.30} parent=5 // pred_region
      %s212 = ssub.s32 %s11, 1
    $region12: #{transformer_forward.30} parent=5 // pred_fallthru
      _
    %p213 = scmp.lt.s32.totalorder %s11, 2
    // Predicated region
    $region13: #{transformer_forward.30} parent=5 // pred_check
      %p214 = pneg %p213
    $region14: #{transformer_forward.30} parent=5 // pred_check_branch
      %216 = sbr.rel (%p214) target = $region16
    $region15: #{transformer_forward.30} parent=5 // pred_region
      // Predicated region
      $region17: #{transformer_forward.30} parent=15 // pred_check
        %p217 = pneg %p52
      $region18: #{transformer_forward.30} parent=15 // pred_check_branch
        %219 = sbr.rel (%p217) target = $region20
      $region19: #{transformer_forward.30} parent=15 // pred_region
        %p220 = scmp.lt.s32.totalorder %s18, 1
        %s221 = scalar_select %p220, %s18, 1
        %p222 = scmp.lt.s32.totalorder %s19, 0
        %s223 = scalar_select %p222, %s19, 0
        %s224 = sadd.s32 %s223, %s221
        %s225 = smul.addr %s224, 8
        %s226 = scalar_lea.vmem %s0, %s225
      $region20: #{transformer_forward.30} parent=15 // pred_fallthru
        _
      // Predicated region
      $region21: #{transformer_forward.30} parent=15 // pred_check
        %p227 = pneg %p80
      $region22: #{transformer_forward.30} parent=15 // pred_check_branch
        %229 = sbr.rel (%p227) target = $region24
      $region23: #{transformer_forward.30} parent=15 // pred_region
        %p230 = scmp.lt.s32.totalorder %s18, 1
        %s231 = scalar_select %p230, %s18, 1
        %p232 = scmp.lt.s32.totalorder %s20, 0
        %s233 = scalar_select %p232, %s20, 0
        %s234 = sadd.s32 %s233, %s231
        %s235 = smul.addr %s234, 8
        %s236 = scalar_lea.vmem %s1, %s235
      $region24: #{transformer_forward.30} parent=15 // pred_fallthru
        _
      // Predicated region
      $region25: #{transformer_forward.30} parent=15 // pred_check
        %p237 = pneg %p108
      $region26: #{transformer_forward.30} parent=15 // pred_check_branch
        %239 = sbr.rel (%p237) target = $region28
      $region27: #{transformer_forward.30} parent=15 // pred_region
        %p240 = scmp.lt.s32.totalorder %s18, 1
        %s241 = scalar_select %p240, %s18, 1
        %p242 = scmp.lt.s32.totalorder %s20, 0
        %s243 = scalar_select %p242, %s20, 0
        %s244 = sadd.s32 %s243, %s241
        %s245 = smul.addr %s244, 8
        %s246 = scalar_lea.vmem %s2, %s245
      $region28: #{transformer_forward.30} parent=15 // pred_fallthru
        _
      // Predicated region
      $region29: #{transformer_forward.30} parent=15 // pred_check
        %p247 = pneg %p136
      $region30: #{transformer_forward.30} parent=15 // pred_check_branch
        %249 = sbr.rel (%p247) target = $region32
      $region31: #{transformer_forward.30} parent=15 // pred_region
        %p250 = scmp.lt.s32.totalorder %s18, 1
        %s251 = scalar_select %p250, %s18, 1
        %p252 = scmp.lt.s32.totalorder %s19, 0
        %s253 = scalar_select %p252, %s19, 0
        %s254 = sadd.s32 %s253, %s251
        %s255 = smul.addr %s254, 8
        %s256 = scalar_lea.vmem %s3, %s255
      $region32: #{transformer_forward.30} parent=15 // pred_fallthru
        _
      // Predicated region
      $region33: #{transformer_forward.30} parent=15 // pred_check
        %p257 = pneg %p164
      $region34: #{transformer_forward.30} parent=15 // pred_check_branch
        %259 = sbr.rel (%p257) target = $region36
      $region35: #{transformer_forward.30} parent=15 // pred_region
        %p260 = scmp.lt.s32.totalorder %s18, 1
        %s261 = scalar_select %p260, %s18, 1
        %p262 = scmp.lt.s32.totalorder %s20, 0
        %s263 = scalar_select %p262, %s20, 0
        %s264 = sadd.s32 %s263, %s261
        %s265 = scalar_lea.vmem %s4, %s264
      $region36: #{transformer_forward.30} parent=15 // pred_fallthru
        _
    $region16: #{transformer_forward.30} parent=5 // pred_fallthru
      _
    %p266 = scmp.le.s32.totalorder 1, %s11
    %p267 = scmp.lt.s32.totalorder %s11, 3
    %p268 = pnand %p266, %p267
    %p269 = pneg %p268
    // Predicated region
    $region37: #{transformer_forward.30} parent=5 // pred_check
      _
    $region38: #{transformer_forward.30} parent=5 // pred_check_branch
      %271 = sbr.rel (%p268) target = $region40
    $region39: #{transformer_forward.30} parent=5 // pred_region
      %s272 = ssub.s32 %s11, 1
      %p273 = scmp.lt.s32.totalorder %s21, 1
      %s274 = scalar_select %p273, %s21, 1
      %p275 = scmp.lt.s32.totalorder %s22, 0
      %s276 = scalar_select %p275, %s22, 0
      %s277 = sadd.s32 %s276, %s274
      %s278 = smul.addr %s277, 8
      %s279 = scalar_lea.vmem %s0, %s278
      %p280 = pneg %p58
      %p281 = pneg %p55
      %p282 = scmp.lt.s32.totalorder %s21, 1
      %s283 = scalar_select %p282, %s21, 1
      %p284 = scmp.lt.s32.totalorder %s23, 0
      %s285 = scalar_select %p284, %s23, 0
      %s286 = sadd.s32 %s285, %s283
      %s287 = smul.addr %s286, 8
      %s288 = scalar_lea.vmem %s1, %s287
      %p289 = pneg %p86
      %p290 = pneg %p83
      %p291 = scmp.lt.s32.totalorder %s21, 1
      %s292 = scalar_select %p291, %s21, 1
      %p293 = scmp.lt.s32.totalorder %s23, 0
      %s294 = scalar_select %p293, %s23, 0
      %s295 = sadd.s32 %s294, %s292
      %s296 = smul.addr %s295, 8
      %s297 = scalar_lea.vmem %s2, %s296
      %p298 = pneg %p114
      %p299 = pneg %p111
      %p300 = scmp.lt.s32.totalorder %s21, 1
      %s301 = scalar_select %p300, %s21, 1
      %p302 = scmp.lt.s32.totalorder %s22, 0
      %s303 = scalar_select %p302, %s22, 0
      %s304 = sadd.s32 %s303, %s301
      %s305 = smul.addr %s304, 8
      %s306 = scalar_lea.vmem %s3, %s305
      %p307 = pneg %p142
      %p308 = pneg %p139
      %p309 = scmp.lt.s32.totalorder %s21, 1
      %s310 = scalar_select %p309, %s21, 1
      %p311 = scmp.lt.s32.totalorder %s23, 0
      %s312 = scalar_select %p311, %s23, 0
      %s313 = sadd.s32 %s312, %s310
      %s314 = scalar_lea.vmem %s4, %s313
      %p315 = pneg %p170
      %p316 = pneg %p167
      %p317 = pneg %p198
      %p318 = pneg %p195
      %p319 = scmp.lt.s32.totalorder %s21, 1
      %s320 = scalar_select %p319, %s21, 1
      %p321 = scmp.lt.s32.totalorder %s22, 0
      %s322 = scalar_select %p321, %s22, 0
      %s323 = sadd.s32 %s322, %s320
      %s324 = smul.addr %s323, 8
      %s325 = scalar_lea.vmem %s5, %s324
      %p326 = scmp.lt.s32.totalorder %s21, 1
      %s327 = scalar_select %p326, %s21, 1
      %p328 = scmp.lt.s32.totalorder %s22, 0
      %s329 = scalar_select %p328, %s22, 0
      %s330 = sadd.s32 %s329, %s327
      %s331 = smul.addr %s330, 8
      %s332 = scalar_lea.vmem %s0, %s331
      %p333 = scmp.lt.s32.totalorder %s21, 1
      %s334 = scalar_select %p333, %s21, 1
      %p335 = scmp.lt.s32.totalorder %s23, 0
      %s336 = scalar_select %p335, %s23, 0
      %s337 = sadd.s32 %s336, %s334
      %s338 = smul.addr %s337, 8
      %s339 = scalar_lea.vmem %s1, %s338
      %p340 = scmp.lt.s32.totalorder %s21, 1
      %s341 = scalar_select %p340, %s21, 1
      %p342 = scmp.lt.s32.totalorder %s23, 0
      %s343 = scalar_select %p342, %s23, 0
      %s344 = sadd.s32 %s343, %s341
      %s345 = smul.addr %s344, 8
      %s346 = scalar_lea.vmem %s2, %s345
      %p347 = scmp.lt.s32.totalorder %s21, 1
      %s348 = scalar_select %p347, %s21, 1
      %p349 = scmp.lt.s32.totalorder %s22, 0
      %s350 = scalar_select %p349, %s22, 0
      %s351 = sadd.s32 %s350, %s348
      %s352 = smul.addr %s351, 8
      %s353 = scalar_lea.vmem %s3, %s352
      %p354 = scmp.lt.s32.totalorder %s21, 1
      %s355 = scalar_select %p354, %s21, 1
      %p356 = scmp.lt.s32.totalorder %s23, 0
      %s357 = scalar_select %p356, %s23, 0
      %s358 = sadd.s32 %s357, %s355
      %s359 = scalar_lea.vmem %s4, %s358
      %p360 = scmp.lt.s32.totalorder %s21, 1
      %s361 = scalar_select %p360, %s21, 1
      %p362 = scmp.lt.s32.totalorder %s22, 0
      %s363 = scalar_select %p362, %s22, 0
      %s364 = sadd.s32 %s363, %s361
      %s365 = smul.addr %s364, 8
      %s366 = scalar_lea.vmem %s5, %s365
      %p368 = scmp.eq.s32.totalorder %s23, 0
      // Predicated region
      $region41: #{transformer_forward.30} parent=39 // pred_check
        %p369 = pneg %p368
      $region42: #{transformer_forward.30} parent=39 // pred_check_branch
        %371 = sbr.rel (%p369) target = $region44
      $region43: #{transformer_forward.30} parent=39 // pred_region
        %vm372 = vcmask 7168
        %373 = vst.msk [vmem:[#allocation2] sm:$0xff] %vm372, -inf
        %374 = vst.msk [vmem:[#allocation2 + $0x8] sm:$0xff] %vm372, -inf
        %375 = vst.msk [vmem:[#allocation2 + $0x10] sm:$0xff] %vm372, -inf
        %376 = vst.msk [vmem:[#allocation2 + $0x18] sm:$0xff] %vm372, -inf
        %377 = vst.msk [vmem:[#allocation3] sm:$0xff] %vm372, 0.0
        %378 = vst.msk [vmem:[#allocation3 + $0x8] sm:$0xff] %vm372, 0.0
        %379 = vst.msk [vmem:[#allocation3 + $0x10] sm:$0xff] %vm372, 0.0
        %380 = vst.msk [vmem:[#allocation3 + $0x18] sm:$0xff] %vm372, 0.0
        %vm381 = vcmask 64512
        %382 = vst.msk [vmem:[#allocation4] sm:$0xff] %vm381, 0.0
        %383 = vst.msk [vmem:[#allocation4 + $0x8] sm:$0xff] %vm381, 0.0
        %384 = vst.msk [vmem:[#allocation4 + $0x10] sm:$0xff] %vm381, 0.0
        %385 = vst.msk [vmem:[#allocation4 + $0x18] sm:$0xff] %vm381, 0.0
      $region44: #{transformer_forward.30} parent=39 // pred_fallthru
        _
      %v386 = vld [vmem:[%s332] sm:$0xff]
      %v387 = vld [vmem:[%s339] sm:$0xff]
      %v388 = vld [vmem:[%s346] sm:$0xff]
      %v389 = vld [vmem:[%s353] sm:$0xff]
      %v390 = vld [vmem:[%s359] sm:$0x1]
      %392 = vset.pattern.permute.xlu0 0
      %393 = vperm.xlu0 %392, %v389
      %v394 = vpop.permute.xlu0 %393
      %v397 = vperm.slane %v390, 0
      %v399 = vmul.f32 %v394, %v397
      %vm400 = vcmp.eq.f32.partialorder %v399, 0.0
      %v401 = vsel %vm400, -1e+09, 0.0
      %v402 = vpack.c.bf16 %v386, %v386
      %v403 = vpack.c.bf16 %v387, %v387
      %v404 = vpack.c.bf16 %v388, %v388
      %vm405 = vcmask 64512
      %v407 = vsel %vm405, %v402, 0
      %v410 = vsel %vm405, %v403, 0
      %412 = vmatpush.bf16.xpose.msra.mxu0 0
      %413 = vmatpush.bf16.xpose.msra.mxu0 0
      %414 = vmatpush.bf16.xpose.msra.mxu0 0
      %415 = vmatpush.bf16.xpose.msra.mxu0 0
      %416 = vmatpush.bf16.xpose.msra.mxu0 0
      %417 = vmatpush.bf16.xpose.msra.mxu0 0
      %418 = vmatpush.bf16.xpose.msra.mxu0 0
      %419 = vmatpush.bf16.xpose.msra.mxu0 %v410
      %420 = vmatmul.bf16.gmra.mxu0 %v407
      %v421 = vpop.f32.mrf.mxu0
      %v422 = vadd.f32 %v401, %v421
      %v423 = vpop.f32.mrf.mxu0
      %424 = vdwg.mxu0
      %v425 = vld [vmem:[#allocation2] sm:$0xff]
      %v426 = vsel %vm405, %v422, -inf
      %427 = vmax.xlane.f32.xlu0 %v426
      %v428 = vpop.xlane.xlu0 %427
      %v429 = vmax.f32 %v425, %v428
      %v430 = vsub.f32 %v425, %v429
      %v431 = vmul.f32 %v430, 1.442695
      %v432 = vpow.pop %v431
      %434 = vset.pattern.permute.xlu0 0
      %435 = vperm.xlu0 %434, %v429
      %v436 = vpop.permute.xlu0 %435
      %v438 = vsub.f32 %v422, %v436
      %v439 = vmul.f32 %v438, 1.442695
      %v440 = vpow.pop %v439
      %v441 = vld [vmem:[#allocation3] sm:$0xff]
      %v442 = vmul.f32 %v432, %v441
      %v443 = vsel %vm405, %v440, 0.0
      %444 = vadd.xlane.f32.xlu0 %v443
      %v445 = vpop.xlane.xlu0 %444
      %v446 = vadd.f32 %v442, %v445
      %vm447 = vcmask 7168
      %448 = vst.msk [vmem:[#allocation3] sm:$0xff] %vm447, %v446
      %v449 = vld [vmem:[#allocation4] sm:$0xff]
      %451 = vset.pattern.permute.xlu0 0
      %452 = vperm.xlu0 %451, %v432
      %v453 = vpop.permute.xlu0 %452
      %v455 = vmul.f32 %v453, %v449
      %v456 = vpack.c.bf16 %v440, %v440
      %v458 = vsel %vm405, %v456, 0
      %vm460 = vcmask 1043456
      %v462 = vsel %vm460, %v404, 0
      %464 = vmatpush.bf16.msra.mxu0 0
      %465 = vmatpush.bf16.msra.mxu0 0
      %466 = vmatpush.bf16.msra.mxu0 0
      %467 = vmatpush.bf16.msra.mxu0 0
      %468 = vmatpush.bf16.msra.mxu0 0
      %469 = vmatpush.bf16.msra.mxu0 0
      %470 = vmatpush.bf16.msra.mxu0 0
      %471 = vmatpush.bf16.msra.mxu0 %v462
      %472 = vmatmul.bf16.gmra.mxu0 %v458
      %v473 = vpop.f32.mrf.mxu0
      %v474 = vadd.f32 0.0, %v473
      %v475 = vpop.f32.mrf.mxu0
      %476 = vdwg.mxu0
      %v477 = vadd.f32 %v455, %v474
      %478 = vst.msk [vmem:[#allocation4] sm:$0xff] %vm405, %v477
      %479 = vst.msk [vmem:[#allocation2] sm:$0xff] %vm447, %v429
      %481 = vrot.lane.b32.xlu0 %v402, 120
      %v482 = vpop.permute.xlu0 %481
      %484 = vrot.lane.b32.xlu0 %v403, 120
      %v485 = vpop.permute.xlu0 %484
      %v487 = vsel %vm405, %v482, 0
      %v490 = vsel %vm405, %v485, 0
      %492 = vmatpush.bf16.xpose.msra.mxu0 0
      %493 = vmatpush.bf16.xpose.msra.mxu0 0
      %494 = vmatpush.bf16.xpose.msra.mxu0 0
      %495 = vmatpush.bf16.xpose.msra.mxu0 0
      %496 = vmatpush.bf16.xpose.msra.mxu0 0
      %497 = vmatpush.bf16.xpose.msra.mxu0 0
      %498 = vmatpush.bf16.xpose.msra.mxu0 0
      %499 = vmatpush.bf16.xpose.msra.mxu0 %v490
      %500 = vmatmul.bf16.gmra.mxu0 %v487
      %v501 = vpop.f32.mrf.mxu0
      %v502 = vadd.f32 %v401, %v501
      %v503 = vpop.f32.mrf.mxu0
      %504 = vdwg.mxu0
      %s505 = scalar_lea.vmem [#allocation2], 8
      %v506 = vld [vmem:[%s505] sm:$0xff]
      %v507 = vsel %vm405, %v502, -inf
      %508 = vmax.xlane.f32.xlu0 %v507
      %v509 = vpop.xlane.xlu0 %508
      %v510 = vmax.f32 %v506, %v509
      %v511 = vsub.f32 %v506, %v510
      %v512 = vmul.f32 %v511, 1.442695
      %v513 = vpow.pop %v512
      %515 = vset.pattern.permute.xlu0 0
      %516 = vperm.xlu0 %515, %v510
      %v517 = vpop.permute.xlu0 %516
      %v519 = vsub.f32 %v502, %v517
      %v520 = vmul.f32 %v519, 1.442695
      %v521 = vpow.pop %v520
      %s522 = scalar_lea.vmem [#allocation3], 8
      %v523 = vld [vmem:[%s522] sm:$0xff]
      %v524 = vmul.f32 %v513, %v523
      %v525 = vsel %vm405, %v521, 0.0
      %526 = vadd.xlane.f32.xlu0 %v525
      %v527 = vpop.xlane.xlu0 %526
      %v528 = vadd.f32 %v524, %v527
      %529 = vst.msk [vmem:[%s522] sm:$0xff] %vm447, %v528
      %s530 = scalar_lea.vmem [#allocation4], 8
      %v531 = vld [vmem:[%s530] sm:$0xff]
      %533 = vset.pattern.permute.xlu0 0
      %534 = vperm.xlu0 %533, %v513
      %v535 = vpop.permute.xlu0 %534
      %v537 = vmul.f32 %v535, %v531
      %v538 = vpack.c.bf16 %v521, %v521
      %540 = vrot.lane.b32.xlu0 %v404, 120
      %v541 = vpop.permute.xlu0 %540
      %v543 = vsel %vm405, %v538, 0
      %v546 = vsel %vm460, %v541, 0
      %548 = vmatpush.bf16.msra.mxu0 0
      %549 = vmatpush.bf16.msra.mxu0 0
      %550 = vmatpush.bf16.msra.mxu0 0
      %551 = vmatpush.bf16.msra.mxu0 0
      %552 = vmatpush.bf16.msra.mxu0 0
      %553 = vmatpush.bf16.msra.mxu0 0
      %554 = vmatpush.bf16.msra.mxu0 0
      %555 = vmatpush.bf16.msra.mxu0 %v546
      %556 = vmatmul.bf16.gmra.mxu0 %v543
      %v557 = vpop.f32.mrf.mxu0
      %v558 = vadd.f32 0.0, %v557
      %v559 = vpop.f32.mrf.mxu0
      %560 = vdwg.mxu0
      %v561 = vadd.f32 %v537, %v558
      %562 = vst.msk [vmem:[%s530] sm:$0xff] %vm405, %v561
      %563 = vst.msk [vmem:[%s505] sm:$0xff] %vm447, %v510
      %564 = vrot.lane.b32.xlu0 %v402, 112
      %v565 = vpop.permute.xlu0 %564
      %566 = vrot.lane.b32.xlu0 %v403, 112
      %v567 = vpop.permute.xlu0 %566
      %v569 = vsel %vm405, %v565, 0
      %v572 = vsel %vm405, %v567, 0
      %574 = vmatpush.bf16.xpose.msra.mxu0 0
      %575 = vmatpush.bf16.xpose.msra.mxu0 0
      %576 = vmatpush.bf16.xpose.msra.mxu0 0
      %577 = vmatpush.bf16.xpose.msra.mxu0 0
      %578 = vmatpush.bf16.xpose.msra.mxu0 0
      %579 = vmatpush.bf16.xpose.msra.mxu0 0
      %580 = vmatpush.bf16.xpose.msra.mxu0 0
      %581 = vmatpush.bf16.xpose.msra.mxu0 %v572
      %582 = vmatmul.bf16.gmra.mxu0 %v569
      %v583 = vpop.f32.mrf.mxu0
      %v584 = vadd.f32 %v401, %v583
      %v585 = vpop.f32.mrf.mxu0
      %586 = vdwg.mxu0
      %s587 = scalar_lea.vmem [#allocation2], 16
      %v588 = vld [vmem:[%s587] sm:$0xff]
      %v589 = vsel %vm405, %v584, -inf
      %590 = vmax.xlane.f32.xlu0 %v589
      %v591 = vpop.xlane.xlu0 %590
      %v592 = vmax.f32 %v588, %v591
      %v593 = vsub.f32 %v588, %v592
      %v594 = vmul.f32 %v593, 1.442695
      %v595 = vpow.pop %v594
      %597 = vset.pattern.permute.xlu0 0
      %598 = vperm.xlu0 %597, %v592
      %v599 = vpop.permute.xlu0 %598
      %v601 = vsub.f32 %v584, %v599
      %v602 = vmul.f32 %v601, 1.442695
      %v603 = vpow.pop %v602
      %s604 = scalar_lea.vmem [#allocation3], 16
      %v605 = vld [vmem:[%s604] sm:$0xff]
      %v606 = vmul.f32 %v595, %v605
      %v607 = vsel %vm405, %v603, 0.0
      %608 = vadd.xlane.f32.xlu0 %v607
      %v609 = vpop.xlane.xlu0 %608
      %v610 = vadd.f32 %v606, %v609
      %611 = vst.msk [vmem:[%s604] sm:$0xff] %vm447, %v610
      %s612 = scalar_lea.vmem [#allocation4], 16
      %v613 = vld [vmem:[%s612] sm:$0xff]
      %615 = vset.pattern.permute.xlu0 0
      %616 = vperm.xlu0 %615, %v595
      %v617 = vpop.permute.xlu0 %616
      %v619 = vmul.f32 %v617, %v613
      %v620 = vpack.c.bf16 %v603, %v603
      %621 = vrot.lane.b32.xlu0 %v404, 112
      %v622 = vpop.permute.xlu0 %621
      %v624 = vsel %vm405, %v620, 0
      %v627 = vsel %vm460, %v622, 0
      %629 = vmatpush.bf16.msra.mxu0 0
      %630 = vmatpush.bf16.msra.mxu0 0
      %631 = vmatpush.bf16.msra.mxu0 0
      %632 = vmatpush.bf16.msra.mxu0 0
      %633 = vmatpush.bf16.msra.mxu0 0
      %634 = vmatpush.bf16.msra.mxu0 0
      %635 = vmatpush.bf16.msra.mxu0 0
      %636 = vmatpush.bf16.msra.mxu0 %v627
      %637 = vmatmul.bf16.gmra.mxu0 %v624
      %v638 = vpop.f32.mrf.mxu0
      %v639 = vadd.f32 0.0, %v638
      %v640 = vpop.f32.mrf.mxu0
      %641 = vdwg.mxu0
      %v642 = vadd.f32 %v619, %v639
      %643 = vst.msk [vmem:[%s612] sm:$0xff] %vm405, %v642
      %644 = vst.msk [vmem:[%s587] sm:$0xff] %vm447, %v592
      %645 = vrot.lane.b32.xlu0 %v402, 104
      %v646 = vpop.permute.xlu0 %645
      %647 = vrot.lane.b32.xlu0 %v403, 104
      %v648 = vpop.permute.xlu0 %647
      %v650 = vsel %vm405, %v646, 0
      %v653 = vsel %vm405, %v648, 0
      %655 = vmatpush.bf16.xpose.msra.mxu0 0
      %656 = vmatpush.bf16.xpose.msra.mxu0 0
      %657 = vmatpush.bf16.xpose.msra.mxu0 0
      %658 = vmatpush.bf16.xpose.msra.mxu0 0
      %659 = vmatpush.bf16.xpose.msra.mxu0 0
      %660 = vmatpush.bf16.xpose.msra.mxu0 0
      %661 = vmatpush.bf16.xpose.msra.mxu0 0
      %662 = vmatpush.bf16.xpose.msra.mxu0 %v653
      %663 = vmatmul.bf16.gmra.mxu0 %v650
      %v664 = vpop.f32.mrf.mxu0
      %v665 = vadd.f32 %v401, %v664
      %v666 = vpop.f32.mrf.mxu0
      %667 = vdwg.mxu0
      %s668 = scalar_lea.vmem [#allocation2], 24
      %v669 = vld [vmem:[%s668] sm:$0xff]
      %v670 = vsel %vm405, %v665, -inf
      %671 = vmax.xlane.f32.xlu0 %v670
      %v672 = vpop.xlane.xlu0 %671
      %v673 = vmax.f32 %v669, %v672
      %v674 = vsub.f32 %v669, %v673
      %v675 = vmul.f32 %v674, 1.442695
      %v676 = vpow.pop %v675
      %678 = vset.pattern.permute.xlu0 0
      %679 = vperm.xlu0 %678, %v673
      %v680 = vpop.permute.xlu0 %679
      %v682 = vsub.f32 %v665, %v680
      %v683 = vmul.f32 %v682, 1.442695
      %v684 = vpow.pop %v683
      %s685 = scalar_lea.vmem [#allocation3], 24
      %v686 = vld [vmem:[%s685] sm:$0xff]
      %v687 = vmul.f32 %v676, %v686
      %v688 = vsel %vm405, %v684, 0.0
      %689 = vadd.xlane.f32.xlu0 %v688
      %v690 = vpop.xlane.xlu0 %689
      %v691 = vadd.f32 %v687, %v690
      %692 = vst.msk [vmem:[%s685] sm:$0xff] %vm447, %v691
      %s693 = scalar_lea.vmem [#allocation4], 24
      %v694 = vld [vmem:[%s693] sm:$0xff]
      %696 = vset.pattern.permute.xlu0 0
      %697 = vperm.xlu0 %696, %v676
      %v698 = vpop.permute.xlu0 %697
      %v700 = vmul.f32 %v698, %v694
      %v701 = vpack.c.bf16 %v684, %v684
      %702 = vrot.lane.b32.xlu0 %v404, 104
      %v703 = vpop.permute.xlu0 %702
      %v705 = vsel %vm405, %v701, 0
      %v708 = vsel %vm460, %v703, 0
      %710 = vmatpush.bf16.msra.mxu0 0
      %711 = vmatpush.bf16.msra.mxu0 0
      %712 = vmatpush.bf16.msra.mxu0 0
      %713 = vmatpush.bf16.msra.mxu0 0
      %714 = vmatpush.bf16.msra.mxu0 0
      %715 = vmatpush.bf16.msra.mxu0 0
      %716 = vmatpush.bf16.msra.mxu0 0
      %717 = vmatpush.bf16.msra.mxu0 %v708
      %718 = vmatmul.bf16.gmra.mxu0 %v705
      %v719 = vpop.f32.mrf.mxu0
      %v720 = vadd.f32 0.0, %v719
      %v721 = vpop.f32.mrf.mxu0
      %722 = vdwg.mxu0
      %v723 = vadd.f32 %v700, %v720
      %724 = vst.msk [vmem:[%s693] sm:$0xff] %vm405, %v723
      %725 = vst.msk [vmem:[%s668] sm:$0xff] %vm447, %v673
      // Predicated region
      $region45: #{transformer_forward.30} parent=39 // pred_check
        %p726 = pneg %p368
      $region46: #{transformer_forward.30} parent=39 // pred_check_branch
        %728 = sbr.rel (%p726) target = $region48
      $region47: #{transformer_forward.30} parent=39 // pred_region
        %v729 = vld [vmem:[#allocation4] sm:$0xff]
        %v730 = vld [vmem:[#allocation3] sm:$0xff]
        %732 = vset.pattern.permute.xlu0 0
        %733 = vperm.xlu0 %732, %v730
        %v734 = vpop.permute.xlu0 %733
        %v736 = vrcp.pop %v734
        %v737 = vmul.f32 %v734, %v736
        %v738 = vsub.f32 1.0, %v737
        %v739 = vmul.f32 %v736, %v738
        %v740 = vadd.f32 %v736, %v739
        %vm741 = vweird.f32 %v734
        %vm742 = vweird.f32 %v736
        %vm743 = vmor %vm741, %vm742
        %v744 = vsel %vm743, %v736, %v740
        %v745 = vand.u32 2147483647, %v734
        %vm746 = vcmp.eq.f32.partialorder %v745, 8.507059e+37
        %v747 = vand.u32 %v734, 2147483648
        %v748 = vor.u32 1.1754944e-38, %v747
        %v749 = vsel %vm746, %v748, %v744
        %v750 = vmul.f32 %v729, %v749
        %v751 = vld [vmem:[%s530] sm:$0xff]
        %v752 = vld [vmem:[%s522] sm:$0xff]
        %754 = vset.pattern.permute.xlu0 0
        %755 = vperm.xlu0 %754, %v752
        %v756 = vpop.permute.xlu0 %755
        %v758 = vrcp.pop %v756
        %v759 = vmul.f32 %v756, %v758
        %v760 = vsub.f32 1.0, %v759
        %v761 = vmul.f32 %v758, %v760
        %v762 = vadd.f32 %v758, %v761
        %vm763 = vweird.f32 %v756
        %vm764 = vweird.f32 %v758
        %vm765 = vmor %vm763, %vm764
        %v766 = vsel %vm765, %v758, %v762
        %v767 = vand.u32 2147483647, %v756
        %vm768 = vcmp.eq.f32.partialorder %v767, 8.507059e+37
        %v769 = vand.u32 %v756, 2147483648
        %v770 = vor.u32 1.1754944e-38, %v769
        %v771 = vsel %vm768, %v770, %v766
        %v772 = vmul.f32 %v751, %v771
        %v773 = vld [vmem:[%s612] sm:$0xff]
        %v774 = vld [vmem:[%s604] sm:$0xff]
        %776 = vset.pattern.permute.xlu0 0
        %777 = vperm.xlu0 %776, %v774
        %v778 = vpop.permute.xlu0 %777
        %v780 = vrcp.pop %v778
        %v781 = vmul.f32 %v778, %v780
        %v782 = vsub.f32 1.0, %v781
        %v783 = vmul.f32 %v780, %v782
        %v784 = vadd.f32 %v780, %v783
        %vm785 = vweird.f32 %v778
        %vm786 = vweird.f32 %v780
        %vm787 = vmor %vm785, %vm786
        %v788 = vsel %vm787, %v780, %v784
        %v789 = vand.u32 2147483647, %v778
        %vm790 = vcmp.eq.f32.partialorder %v789, 8.507059e+37
        %v791 = vand.u32 %v778, 2147483648
        %v792 = vor.u32 1.1754944e-38, %v791
        %v793 = vsel %vm790, %v792, %v788
        %v794 = vmul.f32 %v773, %v793
        %v795 = vld [vmem:[%s693] sm:$0xff]
        %v796 = vld [vmem:[%s685] sm:$0xff]
        %798 = vset.pattern.permute.xlu0 0
        %799 = vperm.xlu0 %798, %v796
        %v800 = vpop.permute.xlu0 %799
        %v802 = vrcp.pop %v800
        %v803 = vmul.f32 %v800, %v802
        %v804 = vsub.f32 1.0, %v803
        %v805 = vmul.f32 %v802, %v804
        %v806 = vadd.f32 %v802, %v805
        %vm807 = vweird.f32 %v800
        %vm808 = vweird.f32 %v802
        %vm809 = vmor %vm807, %vm808
        %v810 = vsel %vm809, %v802, %v806
        %v811 = vand.u32 2147483647, %v800
        %vm812 = vcmp.eq.f32.partialorder %v811, 8.507059e+37
        %v813 = vand.u32 %v800, 2147483648
        %v814 = vor.u32 1.1754944e-38, %v813
        %v815 = vsel %vm812, %v814, %v810
        %v816 = vmul.f32 %v795, %v815
        %818 = vrot.lane.b32.xlu0 %v772, 8
        %v819 = vpop.permute.xlu0 %818
        %822 = vrot.lane.b32.xlu0 %v794, 16
        %v823 = vpop.permute.xlu0 %822
        %826 = vrot.lane.b32.xlu0 %v816, 24
        %v827 = vpop.permute.xlu0 %826
        %v829 = vsel %vm405, %v750, %v819
        %vm830 = vcmask 130048
        %v831 = vsel %vm830, %v829, %v823
        %vm832 = vcmask 195584
        %v833 = vsel %vm832, %v831, %v827
        %vm834 = vcmask 261120
        %835 = vst.msk [vmem:[%s366] sm:$0xff] %vm834, %v833
      $region48: #{transformer_forward.30} parent=39 // pred_fallthru
        _
      %p836 = scmp.lt.s32.totalorder %s21, 1
      %s837 = scalar_select %p836, %s21, 1
      %p838 = scmp.lt.s32.totalorder %s22, 0
      %s839 = scalar_select %p838, %s22, 0
      %s840 = sadd.s32 %s839, %s837
      %s841 = smul.addr %s840, 8
      %s842 = scalar_lea.vmem %s5, %s841
      // Predicated region
      $region49: #{transformer_forward.30} parent=39 // pred_check
        %p843 = pneg %p195
      $region50: #{transformer_forward.30} parent=39 // pred_check_branch
        %845 = sbr.rel (%p843) target = $region52
      $region51: #{transformer_forward.30} parent=39 // pred_region
        _
      $region52: #{transformer_forward.30} parent=39 // pred_fallthru
        _
    $region40: #{transformer_forward.30} parent=5 // pred_fallthru
      _
    %p846 = scmp.le.s32.totalorder 2, %s11
    // Predicated region
    $region53: #{transformer_forward.30} parent=5 // pred_check
      %p847 = pneg %p846
    $region54: #{transformer_forward.30} parent=5 // pred_check_branch
      %849 = sbr.rel (%p847) target = $region56
    $region55: #{transformer_forward.30} parent=5 // pred_region
      %s850 = ssub.s32 %s11, 2
      // Predicated region
      $region57: #{transformer_forward.30} parent=55 // pred_check
        %p851 = pneg %p201
      $region58: #{transformer_forward.30} parent=55 // pred_check_branch
        %853 = sbr.rel (%p851) target = $region60
      $region59: #{transformer_forward.30} parent=55 // pred_region
        %p854 = scmp.lt.s32.totalorder %s24, 1
        %s855 = scalar_select %p854, %s24, 1
        %p856 = scmp.lt.s32.totalorder %s25, 0
        %s857 = scalar_select %p856, %s25, 0
        %s858 = sadd.s32 %s857, %s855
        %s859 = smul.addr %s858, 8
        %s860 = scalar_lea.vmem %s5, %s859
      $region60: #{transformer_forward.30} parent=55 // pred_fallthru
        _
    $region56: #{transformer_forward.30} parent=5 // pred_fallthru
      _
  $region6: #{transformer_forward.30} parent=0 // loop_footer
    %s15 = sadd.s32 1, %s11
  $region7: #{transformer_forward.30} parent=0 // loop_footer_branch
    %10 = sbr.rel target = $region3
  $region8: #{transformer_forward.30} parent=0 // loop_exit
    _

// kernel: transformer_forward.43
$region0: #{transformer_forward.43}
  #allocation0 [shape = 'u32[]', space=smem, size = 0x4, offset = 0x4, fixed_abs, tag = 'smem constant byte address 0x4 - core index']
  #allocation1 [shape = 'u32[72,128]{1,0:T(1,128)}', space=vmem, size = 0x9000, scoped, tag = 'internal scratch']
  %s0 = inlined_call_operand.vmem [shape: f32[16,32], index: 0, kind: input, shape index: {}]
  %s1 = inlined_call_operand.vmem [shape: bf16[32,64], index: 1, kind: input, shape index: {}]
  %s2 = inlined_call_operand.vmem [shape: f32[1,64], index: 2, kind: input, shape index: {}]
  %s3 = inlined_call_operand.vmem [shape: f32[16,64], index: 3, kind: output, shape index: {}]
  %s4 = sld [smem:[#allocation0]]
  $region30: #{transformer_forward.43} parent=0
    _
  %s6 = ssub.s32 1, %s4
  %s7 = scalar_select 0, %s6, %s4
  // Predicated region
  $region2: #{transformer_forward.43} parent=0 // pred_check
    _
  $region3: #{transformer_forward.43} parent=0 // pred_check_branch
    %9 = sbr.rel (0) target = $region5
  $region4: #{transformer_forward.43} parent=0 // pred_region
    _
  $region5: #{transformer_forward.43} parent=0 // pred_fallthru
    _
  // Predicated region
  $region6: #{transformer_forward.43} parent=0 // pred_check
    _
  $region7: #{transformer_forward.43} parent=0 // pred_check_branch
    %11 = sbr.rel (0) target = $region9
  $region8: #{transformer_forward.43} parent=0 // pred_region
    _
  $region9: #{transformer_forward.43} parent=0 // pred_fallthru
    _
  // Predicated region
  $region10: #{transformer_forward.43} parent=0 // pred_check
    _
  $region11: #{transformer_forward.43} parent=0 // pred_check_branch
    %13 = sbr.rel (0) target = $region13
  $region12: #{transformer_forward.43} parent=0 // pred_region
    _
  $region13: #{transformer_forward.43} parent=0 // pred_fallthru
    _
  %p15 = scmp.eq.s32.totalorder 0, 0
  // Predicated region
  $region14: #{transformer_forward.43} parent=0 // pred_check
    %p16 = pneg %p15
  $region15: #{transformer_forward.43} parent=0 // pred_check_branch
    %18 = sbr.rel (%p16) target = $region17
  $region16: #{transformer_forward.43} parent=0 // pred_region
    %vm19 = vcmask 523264
    %20 = vst.msk [vmem:[%s3] sm:$0xff] %vm19, 0.0
    %21 = vst.msk [vmem:[%s3 + $0x8] sm:$0xff] %vm19, 0.0
  $region17: #{transformer_forward.43} parent=0 // pred_fallthru
    _
  %v22 = vld [vmem:[%s3] sm:$0xff]
  %v23 = vld [vmem:[%s3 + $0x8] sm:$0xff]
  %v24 = vld [vmem:[%s0] sm:$0xff]
  %v25 = vld [vmem:[%s0 + $0x8] sm:$0xff]
  %v26 = vpack.c.bf16 %v25, %v24
  %v27 = vld [vmem:[%s1] sm:$0xf]
  %v28 = vld [vmem:[%s1 + $0x4] sm:$0xf]
  %v29 = vld [vmem:[%s1 + $0x8] sm:$0xf]
  %v30 = vld [vmem:[%s1 + $0xc] sm:$0xf]
  %v35 = vunpack.c.l.b16 %v27
  %v36 = vunpack.c.l.b16 %v28
  %v37 = vunpack.c.l.b16 %v29
  %v38 = vunpack.c.l.b16 %v30
  %v39 = vpack.c.b16 %v36, %v35
  %v40 = vpack.c.b16 %v38, %v37
  %vm43 = vcmask 261120
  %v45 = vsel %vm43, %v26, 0
  %47 = vmatpush.bf16.msra.mxu0 0
  %48 = vmatpush.bf16.msra.mxu0 0
  %49 = vmatpush.bf16.msra.mxu0 0
  %50 = vmatpush.bf16.msra.mxu0 0
  %51 = vmatpush.bf16.msra.mxu0 0
  %52 = vmatpush.bf16.msra.mxu0 0
  %53 = vmatpush.bf16.msra.mxu0 %v40
  %54 = vmatpush.bf16.msra.mxu0 %v39
  %55 = vmatmul.bf16.gmra.mxu0 %v45
  %v56 = vpop.f32.mrf.mxu0
  %v57 = vadd.f32 0.0, %v56
  %v58 = vpop.f32.mrf.mxu0
  %v59 = vadd.f32 0.0, %v58
  %60 = vdwg.mxu0
  %v61 = vadd.f32 %v22, %v57
  %v62 = vadd.f32 %v23, %v59
  %vm63 = vcmask 523264
  %64 = vst.msk [vmem:[%s3] sm:$0xff] %vm63, %v61
  %65 = vst.msk [vmem:[%s3 + $0x8] sm:$0xff] %vm63, %v62
  // Predicated region
  $region18: #{transformer_forward.43} parent=0 // pred_check
    %p66 = pneg %p15
  $region19: #{transformer_forward.43} parent=0 // pred_check_branch
    %68 = sbr.rel (%p66) target = $region21
  $region20: #{transformer_forward.43} parent=0 // pred_region
    %v69 = vld [vmem:[%s3] sm:$0xff]
    %v70 = vld [vmem:[%s3 + $0x8] sm:$0xff]
    %v71 = vld [vmem:[%s2] sm:$0x1]
    %v73 = vperm.slane %v71, 0
    %v75 = vadd.f32 %v69, %v73
    %v76 = vadd.f32 %v70, %v73
    %77 = vst.msk [vmem:[%s3] sm:$0xff] %vm63, %v75
    %78 = vst.msk [vmem:[%s3 + $0x8] sm:$0xff] %vm63, %v76
  $region21: #{transformer_forward.43} parent=0 // pred_fallthru
    _
  // Predicated region
  $region22: #{transformer_forward.43} parent=0 // pred_check
    _
  $region23: #{transformer_forward.43} parent=0 // pred_check_branch
    %80 = sbr.rel (0) target = $region25
  $region24: #{transformer_forward.43} parent=0 // pred_region
    _
  $region25: #{transformer_forward.43} parent=0 // pred_fallthru
    _
  // Predicated region
  $region26: #{transformer_forward.43} parent=0 // pred_check
    _
  $region27: #{transformer_forward.43} parent=0 // pred_check_branch
    %82 = sbr.rel (0) target = $region29
  $region28: #{transformer_forward.43} parent=0 // pred_region
    _
  $region29: #{transformer_forward.43} parent=0 // pred_fallthru
    _

// kernel: transformer_forward.33
$region0: #{transformer_forward.33}
  #allocation0 [shape = 'u32[]', space=smem, size = 0x4, offset = 0x4, fixed_abs, tag = 'smem constant byte address 0x4 - core index']
  #allocation1 [shape = 'u32[72,128]{1,0:T(1,128)}', space=vmem, size = 0x9000, scoped, tag = 'internal scratch']
  %s0 = inlined_call_operand.vmem [shape: f32[16,64], index: 0, kind: input, shape index: {}]
  %s1 = inlined_call_operand.vmem [shape: bf16[64,32], index: 1, kind: input, shape index: {}]
  %s2 = inlined_call_operand.vmem [shape: f32[1,32], index: 2, kind: input, shape index: {}]
  %s3 = inlined_call_operand.vmem [shape: f32[16,32], index: 3, kind: input, shape index: {}]
  %s4 = inlined_call_operand.vmem [shape: f32[1,32], index: 4, kind: input, shape index: {}]
  %s5 = inlined_call_operand.vmem [shape: f32[1,32], index: 5, kind: input, shape index: {}]
  %s6 = inlined_call_operand.vmem [shape: f32[16,32], index: 6, kind: output, shape index: {}]
  %s7 = sld [smem:[#allocation0]]
  $region42: #{transformer_forward.33} parent=0
    _
  %s9 = ssub.s32 1, %s7
  %s10 = scalar_select 0, %s9, %s7
  // Predicated region
  $region2: #{transformer_forward.33} parent=0 // pred_check
    _
  $region3: #{transformer_forward.33} parent=0 // pred_check_branch
    %12 = sbr.rel (0) target = $region5
  $region4: #{transformer_forward.33} parent=0 // pred_region
    _
  $region5: #{transformer_forward.33} parent=0 // pred_fallthru
    _
  // Predicated region
  $region6: #{transformer_forward.33} parent=0 // pred_check
    _
  $region7: #{transformer_forward.33} parent=0 // pred_check_branch
    %14 = sbr.rel (0) target = $region9
  $region8: #{transformer_forward.33} parent=0 // pred_region
    _
  $region9: #{transformer_forward.33} parent=0 // pred_fallthru
    _
  // Predicated region
  $region10: #{transformer_forward.33} parent=0 // pred_check
    _
  $region11: #{transformer_forward.33} parent=0 // pred_check_branch
    %16 = sbr.rel (0) target = $region13
  $region12: #{transformer_forward.33} parent=0 // pred_region
    _
  $region13: #{transformer_forward.33} parent=0 // pred_fallthru
    _
  // Predicated region
  $region14: #{transformer_forward.33} parent=0 // pred_check
    _
  $region15: #{transformer_forward.33} parent=0 // pred_check_branch
    %18 = sbr.rel (0) target = $region17
  $region16: #{transformer_forward.33} parent=0 // pred_region
    _
  $region17: #{transformer_forward.33} parent=0 // pred_fallthru
    _
  // Predicated region
  $region18: #{transformer_forward.33} parent=0 // pred_check
    _
  $region19: #{transformer_forward.33} parent=0 // pred_check_branch
    %20 = sbr.rel (0) target = $region21
  $region20: #{transformer_forward.33} parent=0 // pred_region
    _
  $region21: #{transformer_forward.33} parent=0 // pred_fallthru
    _
  // Predicated region
  $region22: #{transformer_forward.33} parent=0 // pred_check
    _
  $region23: #{transformer_forward.33} parent=0 // pred_check_branch
    %22 = sbr.rel (0) target = $region25
  $region24: #{transformer_forward.33} parent=0 // pred_region
    _
  $region25: #{transformer_forward.33} parent=0 // pred_fallthru
    _
  %p24 = scmp.eq.s32.totalorder 0, 0
  // Predicated region
  $region26: #{transformer_forward.33} parent=0 // pred_check
    %p25 = pneg %p24
  $region27: #{transformer_forward.33} parent=0 // pred_check_branch
    %27 = sbr.rel (%p25) target = $region29
  $region28: #{transformer_forward.33} parent=0 // pred_region
    %vm28 = vcmask 261120
    %29 = vst.msk [vmem:[%s6] sm:$0xff] %vm28, 0.0
    %30 = vst.msk [vmem:[%s6 + $0x8] sm:$0xff] %vm28, 0.0
  $region29: #{transformer_forward.33} parent=0 // pred_fallthru
    _
  %v31 = vld [vmem:[%s6] sm:$0xff]
  %v32 = vld [vmem:[%s6 + $0x8] sm:$0xff]
  %v33 = vld [vmem:[%s0] sm:$0xff]
  %v34 = vld [vmem:[%s0 + $0x8] sm:$0xff]
  %v35 = vpack.c.bf16 %v34, %v33
  %v36 = vld [vmem:[%s1] sm:$0xf]
  %v37 = vld [vmem:[%s1 + $0x4] sm:$0xf]
  %v38 = vld [vmem:[%s1 + $0x8] sm:$0xf]
  %v39 = vld [vmem:[%s1 + $0xc] sm:$0xf]
  %v40 = vld [vmem:[%s1 + $0x10] sm:$0xf]
  %v41 = vld [vmem:[%s1 + $0x14] sm:$0xf]
  %v42 = vld [vmem:[%s1 + $0x18] sm:$0xf]
  %v43 = vld [vmem:[%s1 + $0x1c] sm:$0xf]
  %v52 = vunpack.c.l.b16 %v36
  %v53 = vunpack.c.l.b16 %v37
  %v54 = vunpack.c.l.b16 %v38
  %v55 = vunpack.c.l.b16 %v39
  %v56 = vunpack.c.l.b16 %v40
  %v57 = vunpack.c.l.b16 %v41
  %v58 = vunpack.c.l.b16 %v42
  %v59 = vunpack.c.l.b16 %v43
  %v60 = vpack.c.b16 %v53, %v52
  %v61 = vpack.c.b16 %v55, %v54
  %v62 = vpack.c.b16 %v57, %v56
  %v63 = vpack.c.b16 %v59, %v58
  %vm68 = vcmask 523264
  %v70 = vsel %vm68, %v35, 0
  %72 = vmatpush.bf16.msra.mxu0 0
  %73 = vmatpush.bf16.msra.mxu0 0
  %74 = vmatpush.bf16.msra.mxu0 0
  %75 = vmatpush.bf16.msra.mxu0 0
  %76 = vmatpush.bf16.msra.mxu0 %v63
  %77 = vmatpush.bf16.msra.mxu0 %v62
  %78 = vmatpush.bf16.msra.mxu0 %v61
  %79 = vmatpush.bf16.msra.mxu0 %v60
  %80 = vmatmul.bf16.gmra.mxu0 %v70
  %v81 = vpop.f32.mrf.mxu0
  %v82 = vadd.f32 0.0, %v81
  %v83 = vpop.f32.mrf.mxu0
  %v84 = vadd.f32 0.0, %v83
  %85 = vdwg.mxu0
  %v86 = vadd.f32 %v31, %v82
  %v87 = vadd.f32 %v32, %v84
  %vm88 = vcmask 261120
  %89 = vst.msk [vmem:[%s6] sm:$0xff] %vm88, %v86
  %90 = vst.msk [vmem:[%s6 + $0x8] sm:$0xff] %vm88, %v87
  // Predicated region
  $region30: #{transformer_forward.33} parent=0 // pred_check
    %p91 = pneg %p24
  $region31: #{transformer_forward.33} parent=0 // pred_check_branch
    %93 = sbr.rel (%p91) target = $region33
  $region32: #{transformer_forward.33} parent=0 // pred_region
    %v94 = vld [vmem:[%s6] sm:$0xff]
    %v95 = vld [vmem:[%s6 + $0x8] sm:$0xff]
    %v96 = vld [vmem:[%s2] sm:$0x1]
    %v98 = vperm.slane %v96, 0
    %v100 = vadd.f32 %v94, %v98
    %v101 = vadd.f32 %v95, %v98
    %v102 = vld [vmem:[%s3] sm:$0xff]
    %v103 = vld [vmem:[%s3 + $0x8] sm:$0xff]
    %v104 = vadd.f32 %v100, %v102
    %v105 = vadd.f32 %v101, %v103
    %v106 = vsel %vm88, %v104, 0.0
    %107 = vadd.xlane.f32.xlu0 %v106
    %v108 = vpop.xlane.xlu0 %107
    %v109 = vsel %vm88, %v105, 0.0
    %110 = vadd.xlane.f32.xlu0 %v109
    %v111 = vpop.xlane.xlu0 %110
    %v112 = vrcp.pop 32.0
    %v113 = vmul.f32 32.0, %v112
    %v114 = vsub.f32 1.0, %v113
    %v115 = vmul.f32 %v112, %v114
    %v116 = vadd.f32 %v112, %v115
    %vm117 = vweird.f32 %v112
    %v118 = vsel %vm117, %v112, %v116
    %v119 = vmul.f32 %v108, %v118
    %v120 = vmul.f32 %v111, %v118
    %v121 = vsub.f32 %v104, %v119
    %v122 = vsub.f32 %v105, %v120
    %v123 = vmul.f32 %v121, %v121
    %v124 = vmul.f32 %v122, %v122
    %v125 = vsel %vm88, %v123, 0.0
    %126 = vadd.xlane.f32.xlu0 %v125
    %v127 = vpop.xlane.xlu0 %126
    %v128 = vsel %vm88, %v124, 0.0
    %129 = vadd.xlane.f32.xlu0 %v128
    %v130 = vpop.xlane.xlu0 %129
    %v131 = vmul.f32 %v127, %v118
    %v132 = vmul.f32 %v130, %v118
    %v133 = vadd.f32 %v131, 1e-05
    %v134 = vadd.f32 %v132, 1e-05
    %v135 = vrsqrt.pop %v133
    %v136 = vmul.f32 %v135, %v133
    %v137 = vmul.f32 %v136, %v135
    %v138 = vmul.f32 0.5, %v137
    %v139 = vsub.f32 1.5, %v138
    %v140 = vmul.f32 %v135, %v139
    %vm141 = vweird.f32 %v133
    %vm142 = vweird.f32 %v135
    %vm143 = vmor %vm141, %vm142
    %v144 = vsel %vm143, %v135, %v140
    %v145 = vrsqrt.pop %v134
    %v146 = vmul.f32 %v145, %v134
    %v147 = vmul.f32 %v146, %v145
    %v148 = vmul.f32 0.5, %v147
    %v149 = vsub.f32 1.5, %v148
    %v150 = vmul.f32 %v145, %v149
    %vm151 = vweird.f32 %v134
    %vm152 = vweird.f32 %v145
    %vm153 = vmor %vm151, %vm152
    %v154 = vsel %vm153, %v145, %v150
    %v155 = vmul.f32 %v121, %v144
    %v156 = vmul.f32 %v122, %v154
    %v157 = vld [vmem:[%s4] sm:$0x1]
    %v159 = vperm.slane %v157, 0
    %v161 = vmul.f32 %v155, %v159
    %v162 = vmul.f32 %v156, %v159
    %v163 = vld [vmem:[%s5] sm:$0x1]
    %v165 = vperm.slane %v163, 0
    %v167 = vadd.f32 %v161, %v165
    %v168 = vadd.f32 %v162, %v165
    %169 = vst.msk [vmem:[%s6] sm:$0xff] %vm88, %v167
    %170 = vst.msk [vmem:[%s6 + $0x8] sm:$0xff] %vm88, %v168
  $region33: #{transformer_forward.33} parent=0 // pred_fallthru
    _
  // Predicated region
  $region34: #{transformer_forward.33} parent=0 // pred_check
    _
  $region35: #{transformer_forward.33} parent=0 // pred_check_branch
    %172 = sbr.rel (0) target = $region37
  $region36: #{transformer_forward.33} parent=0 // pred_region
    _
  $region37: #{transformer_forward.33} parent=0 // pred_fallthru
    _
  // Predicated region
  $region38: #{transformer_forward.33} parent=0 // pred_check
    _
  $region39: #{transformer_forward.33} parent=0 // pred_check_branch
    %174 = sbr.rel (0) target = $region41
  $region40: #{transformer_forward.33} parent=0 // pred_region
    _
  $region41: #{transformer_forward.33} parent=0 // pred_fallthru
    _

// kernel: transformer_forward.40
$region0: #{transformer_forward.40}
  #allocation0 [shape = 'u32[]', space=smem, size = 0x4, offset = 0x4, fixed_abs, tag = 'smem constant byte address 0x4 - core index']
  #allocation1 [shape = 'u32[72,128]{1,0:T(1,128)}', space=vmem, size = 0x9000, scoped, tag = 'internal scratch']
  #allocation2 [shape = 'f32[4,8,1]{2,1,0:T(8,128)}', space=vmem, size = 0x4000, scoped, tag = 'scratch operand']
  #allocation3 [shape = 'f32[4,8,1]{2,1,0:T(8,128)}', space=vmem, size = 0x4000, scoped, tag = 'scratch operand']
  #allocation4 [shape = 'f32[4,8,8]{2,1,0:T(8,128)}', space=vmem, size = 0x4000, scoped, tag = 'scratch operand']
  %s0 = inlined_call_operand.vmem [shape: f32[2,8,32], index: 0, kind: input, shape index: {}]
  %s1 = inlined_call_operand.vmem [shape: f32[2,8,32], index: 1, kind: input, shape index: {}]
  %s2 = inlined_call_operand.vmem [shape: f32[2,8,32], index: 2, kind: input, shape index: {}]
  %s3 = inlined_call_operand.vmem [shape: f32[2,8,1], index: 3, kind: input, shape index: {}]
  %s4 = inlined_call_operand.vmem [shape: f32[2,1,8], index: 4, kind: input, shape index: {}]
  %s5 = inlined_call_operand.vmem [shape: f32[2,8,32], index: 5, kind: output, shape index: {}]
  %s6 = sld [smem:[#allocation0]]
  $region61: #{transformer_forward.40} parent=0
    _
  %s8 = ssub.s32 1, %s6
  %s9 = scalar_select 0, %s8, %s6
  loop: start=0, step=1, limit=4
  $region2: #{transformer_forward.40} parent=0 // loop_pre_header
    _
  $region3: #{transformer_forward.40} parent=0 // loop_header
    %s11 = sphi 0, %s15
    %p12 = scmp.ge.s32.totalorder %s11, 4
    %s18 = sphi 0, %s37
    %s19 = sphi 0, %s33
    %s20 = sphi 0, %s29
    %s21 = sphi 0, %s18
    %s22 = sphi 0, %s19
    %s23 = sphi 0, %s20
    %s24 = sphi 0, %s21
    %s25 = sphi 0, %s22
    %s26 = sphi 0, %s23
    %s42 = sphi 0, %s44
    %s45 = sphi 0, %s42
    %s46 = sphi 0, %s45
    %s62 = sphi 0, %s46
    %s70 = sphi 0, %s72
    %s73 = sphi 0, %s70
    %s74 = sphi 0, %s73
    %s90 = sphi 0, %s74
    %s98 = sphi 0, %s100
    %s101 = sphi 0, %s98
    %s102 = sphi 0, %s101
    %s118 = sphi 0, %s102
    %s126 = sphi 0, %s128
    %s129 = sphi 0, %s126
    %s130 = sphi 0, %s129
    %s146 = sphi 0, %s130
    %s154 = sphi 0, %s156
    %s157 = sphi 0, %s154
    %s158 = sphi 0, %s157
    %s174 = sphi 0, %s158
    %s182 = sphi 0, %s184
    %s185 = sphi 0, %s182
    %s186 = sphi 0, %s185
    %s202 = sphi 0, %s186
  $region4: #{transformer_forward.40} parent=0 // loop_header_branch
    %14 = sbr.rel (%p12) target = $region8
  $region5: #{transformer_forward.40} parent=0 // loop_body
    %s16 = ssub.s32 %s11, 1
    %s17 = ssub.s32 %s11, 2
    %s27 = sadd.s32 1, %s20
    %p28 = scmp.ge.s32.totalorder %s27, 1
    %s29 = scalar_select %p28, 0, %s27
    %s30 = sadd.s32 1, %s19
    %s31 = scalar_select %p28, %s30, %s19
    %p32 = scmp.ge.s32.totalorder %s31, 1
    %s33 = scalar_select %p32, 0, %s31
    %s34 = sadd.s32 1, %s18
    %s35 = scalar_select %p32, %s34, %s18
    %p36 = scmp.ge.s32.totalorder %s35, 2
    %s37 = scalar_select %p36, 0, %s35
    %s38 = ssub.s32 %s18, %s37
    %s39 = ssub.s32 %s19, %s33
    %s40 = sor.u32 %s38, %s39
    %p41 = scmp.eq.s32.totalorder %s40, 0
    %s43 = sadd.s32 %s42, 1
    %s44 = scalar_select %p41, %s42, %s43
    %p47 = pneg %p41
    %p48 = scmp.eq.s32.totalorder %s11, 1
    %p49 = por %p47, %p48
    %p50 = scmp.ne.s32.totalorder %s42, %s45
    %p51 = scmp.eq.s32.totalorder %s11, 0
    %p52 = por %p50, %p51
    %p53 = scmp.ne.s32.totalorder %s42, %s45
    %p54 = scmp.eq.s32.totalorder %s16, 1
    %p55 = por %p53, %p54
    %p56 = scmp.ne.s32.totalorder %s45, %s46
    %p57 = scmp.eq.s32.totalorder %s16, 0
    %p58 = por %p56, %p57
    %p59 = scmp.ne.s32.totalorder %s45, %s46
    %p60 = scmp.eq.s32.totalorder %s17, 1
    %p61 = por %p59, %p60
    %p63 = scmp.ne.s32.totalorder %s46, %s62
    %p64 = scmp.eq.s32.totalorder %s17, 0
    %p65 = por %p63, %p64
    %s66 = ssub.s32 %s18, %s37
    %s67 = ssub.s32 %s20, %s29
    %s68 = sor.u32 %s66, %s67
    %p69 = scmp.eq.s32.totalorder %s68, 0
    %s71 = sadd.s32 %s70, 1
    %s72 = scalar_select %p69, %s70, %s71
    %p75 = pneg %p69
    %p76 = scmp.eq.s32.totalorder %s11, 1
    %p77 = por %p75, %p76
    %p78 = scmp.ne.s32.totalorder %s70, %s73
    %p79 = scmp.eq.s32.totalorder %s11, 0
    %p80 = por %p78, %p79
    %p81 = scmp.ne.s32.totalorder %s70, %s73
    %p82 = scmp.eq.s32.totalorder %s16, 1
    %p83 = por %p81, %p82
    %p84 = scmp.ne.s32.totalorder %s73, %s74
    %p85 = scmp.eq.s32.totalorder %s16, 0
    %p86 = por %p84, %p85
    %p87 = scmp.ne.s32.totalorder %s73, %s74
    %p88 = scmp.eq.s32.totalorder %s17, 1
    %p89 = por %p87, %p88
    %p91 = scmp.ne.s32.totalorder %s74, %s90
    %p92 = scmp.eq.s32.totalorder %s17, 0
    %p93 = por %p91, %p92
    %s94 = ssub.s32 %s18, %s37
    %s95 = ssub.s32 %s20, %s29
    %s96 = sor.u32 %s94, %s95
    %p97 = scmp.eq.s32.totalorder %s96, 0
    %s99 = sadd.s32 %s98, 1
    %s100 = scalar_select %p97, %s98, %s99
    %p103 = pneg %p97
    %p104 = scmp.eq.s32.totalorder %s11, 1
    %p105 = por %p103, %p104
    %p106 = scmp.ne.s32.totalorder %s98, %s101
    %p107 = scmp.eq.s32.totalorder %s11, 0
    %p108 = por %p106, %p107
    %p109 = scmp.ne.s32.totalorder %s98, %s101
    %p110 = scmp.eq.s32.totalorder %s16, 1
    %p111 = por %p109, %p110
    %p112 = scmp.ne.s32.totalorder %s101, %s102
    %p113 = scmp.eq.s32.totalorder %s16, 0
    %p114 = por %p112, %p113
    %p115 = scmp.ne.s32.totalorder %s101, %s102
    %p116 = scmp.eq.s32.totalorder %s17, 1
    %p117 = por %p115, %p116
    %p119 = scmp.ne.s32.totalorder %s102, %s118
    %p120 = scmp.eq.s32.totalorder %s17, 0
    %p121 = por %p119, %p120
    %s122 = ssub.s32 %s18, %s37
    %s123 = ssub.s32 %s19, %s33
    %s124 = sor.u32 %s122, %s123
    %p125 = scmp.eq.s32.totalorder %s124, 0
    %s127 = sadd.s32 %s126, 1
    %s128 = scalar_select %p125, %s126, %s127
    %p131 = pneg %p125
    %p132 = scmp.eq.s32.totalorder %s11, 1
    %p133 = por %p131, %p132
    %p134 = scmp.ne.s32.totalorder %s126, %s129
    %p135 = scmp.eq.s32.totalorder %s11, 0
    %p136 = por %p134, %p135
    %p137 = scmp.ne.s32.totalorder %s126, %s129
    %p138 = scmp.eq.s32.totalorder %s16, 1
    %p139 = por %p137, %p138
    %p140 = scmp.ne.s32.totalorder %s129, %s130
    %p141 = scmp.eq.s32.totalorder %s16, 0
    %p142 = por %p140, %p141
    %p143 = scmp.ne.s32.totalorder %s129, %s130
    %p144 = scmp.eq.s32.totalorder %s17, 1
    %p145 = por %p143, %p144
    %p147 = scmp.ne.s32.totalorder %s130, %s146
    %p148 = scmp.eq.s32.totalorder %s17, 0
    %p149 = por %p147, %p148
    %s150 = ssub.s32 %s18, %s37
    %s151 = ssub.s32 %s20, %s29
    %s152 = sor.u32 %s150, %s151
    %p153 = scmp.eq.s32.totalorder %s152, 0
    %s155 = sadd.s32 %s154, 1
    %s156 = scalar_select %p153, %s154, %s155
    %p159 = pneg %p153
    %p160 = scmp.eq.s32.totalorder %s11, 1
    %p161 = por %p159, %p160
    %p162 = scmp.ne.s32.totalorder %s154, %s157
    %p163 = scmp.eq.s32.totalorder %s11, 0
    %p164 = por %p162, %p163
    %p165 = scmp.ne.s32.totalorder %s154, %s157
    %p166 = scmp.eq.s32.totalorder %s16, 1
    %p167 = por %p165, %p166
    %p168 = scmp.ne.s32.totalorder %s157, %s158
    %p169 = scmp.eq.s32.totalorder %s16, 0
    %p170 = por %p168, %p169
    %p171 = scmp.ne.s32.totalorder %s157, %s158
    %p172 = scmp.eq.s32.totalorder %s17, 1
    %p173 = por %p171, %p172
    %p175 = scmp.ne.s32.totalorder %s158, %s174
    %p176 = scmp.eq.s32.totalorder %s17, 0
    %p177 = por %p175, %p176
    %s178 = ssub.s32 %s18, %s37
    %s179 = ssub.s32 %s19, %s33
    %s180 = sor.u32 %s178, %s179
    %p181 = scmp.eq.s32.totalorder %s180, 0
    %s183 = sadd.s32 %s182, 1
    %s184 = scalar_select %p181, %s182, %s183
    %p187 = pneg %p181
    %p188 = scmp.eq.s32.totalorder %s11, 1
    %p189 = por %p187, %p188
    %p190 = scmp.ne.s32.totalorder %s182, %s185
    %p191 = scmp.eq.s32.totalorder %s11, 0
    %p192 = por %p190, %p191
    %p193 = scmp.ne.s32.totalorder %s182, %s185
    %p194 = scmp.eq.s32.totalorder %s16, 1
    %p195 = por %p193, %p194
    %p196 = scmp.ne.s32.totalorder %s185, %s186
    %p197 = scmp.eq.s32.totalorder %s16, 0
    %p198 = por %p196, %p197
    %p199 = scmp.ne.s32.totalorder %s185, %s186
    %p200 = scmp.eq.s32.totalorder %s17, 1
    %p201 = por %p199, %p200
    %p203 = scmp.ne.s32.totalorder %s186, %s202
    %p204 = scmp.eq.s32.totalorder %s17, 0
    %p205 = por %p203, %p204
    %p206 = scmp.le.s32.totalorder 1, %s11
    %p207 = scmp.lt.s32.totalorder %s11, 3
    %p208 = pnand %p206, %p207
    %p209 = pneg %p208
    // Predicated region
    $region9: #{transformer_forward.40} parent=5 // pred_check
      _
    $region10: #{transformer_forward.40} parent=5 // pred_check_branch
      %211 = sbr.rel (%p208) target = $region12
    $region11: #{transformer_forward.40} parent=5 // pred_region
      %s212 = ssub.s32 %s11, 1
    $region12: #{transformer_forward.40} parent=5 // pred_fallthru
      _
    %p213 = scmp.lt.s32.totalorder %s11, 2
    // Predicated region
    $region13: #{transformer_forward.40} parent=5 // pred_check
      %p214 = pneg %p213
    $region14: #{transformer_forward.40} parent=5 // pred_check_branch
      %216 = sbr.rel (%p214) target = $region16
    $region15: #{transformer_forward.40} parent=5 // pred_region
      // Predicated region
      $region17: #{transformer_forward.40} parent=15 // pred_check
        %p217 = pneg %p52
      $region18: #{transformer_forward.40} parent=15 // pred_check_branch
        %219 = sbr.rel (%p217) target = $region20
      $region19: #{transformer_forward.40} parent=15 // pred_region
        %p220 = scmp.lt.s32.totalorder %s18, 1
        %s221 = scalar_select %p220, %s18, 1
        %p222 = scmp.lt.s32.totalorder %s19, 0
        %s223 = scalar_select %p222, %s19, 0
        %s224 = sadd.s32 %s223, %s221
        %s225 = smul.addr %s224, 8
        %s226 = scalar_lea.vmem %s0, %s225
      $region20: #{transformer_forward.40} parent=15 // pred_fallthru
        _
      // Predicated region
      $region21: #{transformer_forward.40} parent=15 // pred_check
        %p227 = pneg %p80
      $region22: #{transformer_forward.40} parent=15 // pred_check_branch
        %229 = sbr.rel (%p227) target = $region24
      $region23: #{transformer_forward.40} parent=15 // pred_region
        %p230 = scmp.lt.s32.totalorder %s18, 1
        %s231 = scalar_select %p230, %s18, 1
        %p232 = scmp.lt.s32.totalorder %s20, 0
        %s233 = scalar_select %p232, %s20, 0
        %s234 = sadd.s32 %s233, %s231
        %s235 = smul.addr %s234, 8
        %s236 = scalar_lea.vmem %s1, %s235
      $region24: #{transformer_forward.40} parent=15 // pred_fallthru
        _
      // Predicated region
      $region25: #{transformer_forward.40} parent=15 // pred_check
        %p237 = pneg %p108
      $region26: #{transformer_forward.40} parent=15 // pred_check_branch
        %239 = sbr.rel (%p237) target = $region28
      $region27: #{transformer_forward.40} parent=15 // pred_region
        %p240 = scmp.lt.s32.totalorder %s18, 1
        %s241 = scalar_select %p240, %s18, 1
        %p242 = scmp.lt.s32.totalorder %s20, 0
        %s243 = scalar_select %p242, %s20, 0
        %s244 = sadd.s32 %s243, %s241
        %s245 = smul.addr %s244, 8
        %s246 = scalar_lea.vmem %s2, %s245
      $region28: #{transformer_forward.40} parent=15 // pred_fallthru
        _
      // Predicated region
      $region29: #{transformer_forward.40} parent=15 // pred_check
        %p247 = pneg %p136
      $region30: #{transformer_forward.40} parent=15 // pred_check_branch
        %249 = sbr.rel (%p247) target = $region32
      $region31: #{transformer_forward.40} parent=15 // pred_region
        %p250 = scmp.lt.s32.totalorder %s18, 1
        %s251 = scalar_select %p250, %s18, 1
        %p252 = scmp.lt.s32.totalorder %s19, 0
        %s253 = scalar_select %p252, %s19, 0
        %s254 = sadd.s32 %s253, %s251
        %s255 = smul.addr %s254, 8
        %s256 = scalar_lea.vmem %s3, %s255
      $region32: #{transformer_forward.40} parent=15 // pred_fallthru
        _
      // Predicated region
      $region33: #{transformer_forward.40} parent=15 // pred_check
        %p257 = pneg %p164
      $region34: #{transformer_forward.40} parent=15 // pred_check_branch
        %259 = sbr.rel (%p257) target = $region36
      $region35: #{transformer_forward.40} parent=15 // pred_region
        %p260 = scmp.lt.s32.totalorder %s18, 1
        %s261 = scalar_select %p260, %s18, 1
        %p262 = scmp.lt.s32.totalorder %s20, 0
        %s263 = scalar_select %p262, %s20, 0
        %s264 = sadd.s32 %s263, %s261
        %s265 = scalar_lea.vmem %s4, %s264
      $region36: #{transformer_forward.40} parent=15 // pred_fallthru
        _
    $region16: #{transformer_forward.40} parent=5 // pred_fallthru
      _
    %p266 = scmp.le.s32.totalorder 1, %s11
    %p267 = scmp.lt.s32.totalorder %s11, 3
    %p268 = pnand %p266, %p267
    %p269 = pneg %p268
    // Predicated region
    $region37: #{transformer_forward.40} parent=5 // pred_check
      _
    $region38: #{transformer_forward.40} parent=5 // pred_check_branch
      %271 = sbr.rel (%p268) target = $region40
    $region39: #{transformer_forward.40} parent=5 // pred_region
      %s272 = ssub.s32 %s11, 1
      %p273 = scmp.lt.s32.totalorder %s21, 1
      %s274 = scalar_select %p273, %s21, 1
      %p275 = scmp.lt.s32.totalorder %s22, 0
      %s276 = scalar_select %p275, %s22, 0
      %s277 = sadd.s32 %s276, %s274
      %s278 = smul.addr %s277, 8
      %s279 = scalar_lea.vmem %s0, %s278
      %p280 = pneg %p58
      %p281 = pneg %p55
      %p282 = scmp.lt.s32.totalorder %s21, 1
      %s283 = scalar_select %p282, %s21, 1
      %p284 = scmp.lt.s32.totalorder %s23, 0
      %s285 = scalar_select %p284, %s23, 0
      %s286 = sadd.s32 %s285, %s283
      %s287 = smul.addr %s286, 8
      %s288 = scalar_lea.vmem %s1, %s287
      %p289 = pneg %p86
      %p290 = pneg %p83
      %p291 = scmp.lt.s32.totalorder %s21, 1
      %s292 = scalar_select %p291, %s21, 1
      %p293 = scmp.lt.s32.totalorder %s23, 0
      %s294 = scalar_select %p293, %s23, 0
      %s295 = sadd.s32 %s294, %s292
      %s296 = smul.addr %s295, 8
      %s297 = scalar_lea.vmem %s2, %s296
      %p298 = pneg %p114
      %p299 = pneg %p111
      %p300 = scmp.lt.s32.totalorder %s21, 1
      %s301 = scalar_select %p300, %s21, 1
      %p302 = scmp.lt.s32.totalorder %s22, 0
      %s303 = scalar_select %p302, %s22, 0
      %s304 = sadd.s32 %s303, %s301
      %s305 = smul.addr %s304, 8
      %s306 = scalar_lea.vmem %s3, %s305
      %p307 = pneg %p142
      %p308 = pneg %p139
      %p309 = scmp.lt.s32.totalorder %s21, 1
      %s310 = scalar_select %p309, %s21, 1
      %p311 = scmp.lt.s32.totalorder %s23, 0
      %s312 = scalar_select %p311, %s23, 0
      %s313 = sadd.s32 %s312, %s310
      %s314 = scalar_lea.vmem %s4, %s313
      %p315 = pneg %p170
      %p316 = pneg %p167
      %p317 = pneg %p198
      %p318 = pneg %p195
      %p319 = scmp.lt.s32.totalorder %s21, 1
      %s320 = scalar_select %p319, %s21, 1
      %p321 = scmp.lt.s32.totalorder %s22, 0
      %s322 = scalar_select %p321, %s22, 0
      %s323 = sadd.s32 %s322, %s320
      %s324 = smul.addr %s323, 8
      %s325 = scalar_lea.vmem %s5, %s324
      %p326 = scmp.lt.s32.totalorder %s21, 1
      %s327 = scalar_select %p326, %s21, 1
      %p328 = scmp.lt.s32.totalorder %s22, 0
      %s329 = scalar_select %p328, %s22, 0
      %s330 = sadd.s32 %s329, %s327
      %s331 = smul.addr %s330, 8
      %s332 = scalar_lea.vmem %s0, %s331
      %p333 = scmp.lt.s32.totalorder %s21, 1
      %s334 = scalar_select %p333, %s21, 1
      %p335 = scmp.lt.s32.totalorder %s23, 0
      %s336 = scalar_select %p335, %s23, 0
      %s337 = sadd.s32 %s336, %s334
      %s338 = smul.addr %s337, 8
      %s339 = scalar_lea.vmem %s1, %s338
      %p340 = scmp.lt.s32.totalorder %s21, 1
      %s341 = scalar_select %p340, %s21, 1
      %p342 = scmp.lt.s32.totalorder %s23, 0
      %s343 = scalar_select %p342, %s23, 0
      %s344 = sadd.s32 %s343, %s341
      %s345 = smul.addr %s344, 8
      %s346 = scalar_lea.vmem %s2, %s345
      %p347 = scmp.lt.s32.totalorder %s21, 1
      %s348 = scalar_select %p347, %s21, 1
      %p349 = scmp.lt.s32.totalorder %s22, 0
      %s350 = scalar_select %p349, %s22, 0
      %s351 = sadd.s32 %s350, %s348
      %s352 = smul.addr %s351, 8
      %s353 = scalar_lea.vmem %s3, %s352
      %p354 = scmp.lt.s32.totalorder %s21, 1
      %s355 = scalar_select %p354, %s21, 1
      %p356 = scmp.lt.s32.totalorder %s23, 0
      %s357 = scalar_select %p356, %s23, 0
      %s358 = sadd.s32 %s357, %s355
      %s359 = scalar_lea.vmem %s4, %s358
      %p360 = scmp.lt.s32.totalorder %s21, 1
      %s361 = scalar_select %p360, %s21, 1
      %p362 = scmp.lt.s32.totalorder %s22, 0
      %s363 = scalar_select %p362, %s22, 0
      %s364 = sadd.s32 %s363, %s361
      %s365 = smul.addr %s364, 8
      %s366 = scalar_lea.vmem %s5, %s365
      %p368 = scmp.eq.s32.totalorder %s23, 0
      // Predicated region
      $region41: #{transformer_forward.40} parent=39 // pred_check
        %p369 = pneg %p368
      $region42: #{transformer_forward.40} parent=39 // pred_check_branch
        %371 = sbr.rel (%p369) target = $region44
      $region43: #{transformer_forward.40} parent=39 // pred_region
        %vm372 = vcmask 7168
        %373 = vst.msk [vmem:[#allocation2] sm:$0xff] %vm372, -inf
        %374 = vst.msk [vmem:[#allocation2 + $0x8] sm:$0xff] %vm372, -inf
        %375 = vst.msk [vmem:[#allocation2 + $0x10] sm:$0xff] %vm372, -inf
        %376 = vst.msk [vmem:[#allocation2 + $0x18] sm:$0xff] %vm372, -inf
        %377 = vst.msk [vmem:[#allocation3] sm:$0xff] %vm372, 0.0
        %378 = vst.msk [vmem:[#allocation3 + $0x8] sm:$0xff] %vm372, 0.0
        %379 = vst.msk [vmem:[#allocation3 + $0x10] sm:$0xff] %vm372, 0.0
        %380 = vst.msk [vmem:[#allocation3 + $0x18] sm:$0xff] %vm372, 0.0
        %vm381 = vcmask 64512
        %382 = vst.msk [vmem:[#allocation4] sm:$0xff] %vm381, 0.0
        %383 = vst.msk [vmem:[#allocation4 + $0x8] sm:$0xff] %vm381, 0.0
        %384 = vst.msk [vmem:[#allocation4 + $0x10] sm:$0xff] %vm381, 0.0
        %385 = vst.msk [vmem:[#allocation4 + $0x18] sm:$0xff] %vm381, 0.0
      $region44: #{transformer_forward.40} parent=39 // pred_fallthru
        _
      %v386 = vld [vmem:[%s332] sm:$0xff]
      %v387 = vld [vmem:[%s339] sm:$0xff]
      %v388 = vld [vmem:[%s346] sm:$0xff]
      %v389 = vld [vmem:[%s353] sm:$0xff]
      %v390 = vld [vmem:[%s359] sm:$0x1]
      %392 = vset.pattern.permute.xlu0 0
      %393 = vperm.xlu0 %392, %v389
      %v394 = vpop.permute.xlu0 %393
      %v397 = vperm.slane %v390, 0
      %v399 = vmul.f32 %v394, %v397
      %vm400 = vcmp.eq.f32.partialorder %v399, 0.0
      %v401 = vsel %vm400, -1e+09, 0.0
      %v402 = vlaneseq
      %v403 = vshrl.u32 %v402, 7
      %s404 = smul.u32 %s22, 8
      %v405 = vstv %s404
      %v406 = vadd.s32 %v403, %v405
      %v407 = vlaneseq
      %v408 = vand.u32 %v407, 127
      %s409 = smul.u32 %s23, 8
      %v410 = vstv %s409
      %v411 = vadd.s32 %v408, %v410
      %vm412 = vcmp.gt.s32.totalorder %v411, %v406
      %v413 = vsel %vm412, -1e+09, %v401
      %v414 = vpack.c.bf16 %v386, %v386
      %v415 = vpack.c.bf16 %v387, %v387
      %v416 = vpack.c.bf16 %v388, %v388
      %vm417 = vcmask 64512
      %v419 = vsel %vm417, %v414, 0
      %v422 = vsel %vm417, %v415, 0
      %424 = vmatpush.bf16.xpose.msra.mxu0 0
      %425 = vmatpush.bf16.xpose.msra.mxu0 0
      %426 = vmatpush.bf16.xpose.msra.mxu0 0
      %427 = vmatpush.bf16.xpose.msra.mxu0 0
      %428 = vmatpush.bf16.xpose.msra.mxu0 0
      %429 = vmatpush.bf16.xpose.msra.mxu0 0
      %430 = vmatpush.bf16.xpose.msra.mxu0 0
      %431 = vmatpush.bf16.xpose.msra.mxu0 %v422
      %432 = vmatmul.bf16.gmra.mxu0 %v419
      %v433 = vpop.f32.mrf.mxu0
      %v434 = vadd.f32 %v413, %v433
      %v435 = vpop.f32.mrf.mxu0
      %436 = vdwg.mxu0
      %v437 = vld [vmem:[#allocation2] sm:$0xff]
      %v438 = vsel %vm417, %v434, -inf
      %439 = vmax.xlane.f32.xlu0 %v438
      %v440 = vpop.xlane.xlu0 %439
      %v441 = vmax.f32 %v437, %v440
      %v442 = vsub.f32 %v437, %v441
      %v443 = vmul.f32 %v442, 1.442695
      %v444 = vpow.pop %v443
      %446 = vset.pattern.permute.xlu0 0
      %447 = vperm.xlu0 %446, %v441
      %v448 = vpop.permute.xlu0 %447
      %v450 = vsub.f32 %v434, %v448
      %v451 = vmul.f32 %v450, 1.442695
      %v452 = vpow.pop %v451
      %v453 = vld [vmem:[#allocation3] sm:$0xff]
      %v454 = vmul.f32 %v444, %v453
      %v455 = vsel %vm417, %v452, 0.0
      %456 = vadd.xlane.f32.xlu0 %v455
      %v457 = vpop.xlane.xlu0 %456
      %v458 = vadd.f32 %v454, %v457
      %vm459 = vcmask 7168
      %460 = vst.msk [vmem:[#allocation3] sm:$0xff] %vm459, %v458
      %v461 = vld [vmem:[#allocation4] sm:$0xff]
      %463 = vset.pattern.permute.xlu0 0
      %464 = vperm.xlu0 %463, %v444
      %v465 = vpop.permute.xlu0 %464
      %v467 = vmul.f32 %v465, %v461
      %v468 = vpack.c.bf16 %v452, %v452
      %v470 = vsel %vm417, %v468, 0
      %vm472 = vcmask 1043456
      %v474 = vsel %vm472, %v416, 0
      %476 = vmatpush.bf16.msra.mxu0 0
      %477 = vmatpush.bf16.msra.mxu0 0
      %478 = vmatpush.bf16.msra.mxu0 0
      %479 = vmatpush.bf16.msra.mxu0 0
      %480 = vmatpush.bf16.msra.mxu0 0
      %481 = vmatpush.bf16.msra.mxu0 0
      %482 = vmatpush.bf16.msra.mxu0 0
      %483 = vmatpush.bf16.msra.mxu0 %v474
      %484 = vmatmul.bf16.gmra.mxu0 %v470
      %v485 = vpop.f32.mrf.mxu0
      %v486 = vadd.f32 0.0, %v485
      %v487 = vpop.f32.mrf.mxu0
      %488 = vdwg.mxu0
      %v489 = vadd.f32 %v467, %v486
      %490 = vst.msk [vmem:[#allocation4] sm:$0xff] %vm417, %v489
      %491 = vst.msk [vmem:[#allocation2] sm:$0xff] %vm459, %v441
      %493 = vrot.lane.b32.xlu0 %v414, 120
      %v494 = vpop.permute.xlu0 %493
      %496 = vrot.lane.b32.xlu0 %v415, 120
      %v497 = vpop.permute.xlu0 %496
      %v499 = vsel %vm417, %v494, 0
      %v502 = vsel %vm417, %v497, 0
      %504 = vmatpush.bf16.xpose.msra.mxu0 0
      %505 = vmatpush.bf16.xpose.msra.mxu0 0
      %506 = vmatpush.bf16.xpose.msra.mxu0 0
      %507 = vmatpush.bf16.xpose.msra.mxu0 0
      %508 = vmatpush.bf16.xpose.msra.mxu0 0
      %509 = vmatpush.bf16.xpose.msra.mxu0 0
      %510 = vmatpush.bf16.xpose.msra.mxu0 0
      %511 = vmatpush.bf16.xpose.msra.mxu0 %v502
      %512 = vmatmul.bf16.gmra.mxu0 %v499
      %v513 = vpop.f32.mrf.mxu0
      %v514 = vadd.f32 %v413, %v513
      %v515 = vpop.f32.mrf.mxu0
      %516 = vdwg.mxu0
      %s517 = scalar_lea.vmem [#allocation2], 8
      %v518 = vld [vmem:[%s517] sm:$0xff]
      %v519 = vsel %vm417, %v514, -inf
      %520 = vmax.xlane.f32.xlu0 %v519
      %v521 = vpop.xlane.xlu0 %520
      %v522 = vmax.f32 %v518, %v521
      %v523 = vsub.f32 %v518, %v522
      %v524 = vmul.f32 %v523, 1.442695
      %v525 = vpow.pop %v524
      %527 = vset.pattern.permute.xlu0 0
      %528 = vperm.xlu0 %527, %v522
      %v529 = vpop.permute.xlu0 %528
      %v531 = vsub.f32 %v514, %v529
      %v532 = vmul.f32 %v531, 1.442695
      %v533 = vpow.pop %v532
      %s534 = scalar_lea.vmem [#allocation3], 8
      %v535 = vld [vmem:[%s534] sm:$0xff]
      %v536 = vmul.f32 %v525, %v535
      %v537 = vsel %vm417, %v533, 0.0
      %538 = vadd.xlane.f32.xlu0 %v537
      %v539 = vpop.xlane.xlu0 %538
      %v540 = vadd.f32 %v536, %v539
      %541 = vst.msk [vmem:[%s534] sm:$0xff] %vm459, %v540
      %s542 = scalar_lea.vmem [#allocation4], 8
      %v543 = vld [vmem:[%s542] sm:$0xff]
      %545 = vset.pattern.permute.xlu0 0
      %546 = vperm.xlu0 %545, %v525
      %v547 = vpop.permute.xlu0 %546
      %v549 = vmul.f32 %v547, %v543
      %v550 = vpack.c.bf16 %v533, %v533
      %552 = vrot.lane.b32.xlu0 %v416, 120
      %v553 = vpop.permute.xlu0 %552
      %v555 = vsel %vm417, %v550, 0
      %v558 = vsel %vm472, %v553, 0
      %560 = vmatpush.bf16.msra.mxu0 0
      %561 = vmatpush.bf16.msra.mxu0 0
      %562 = vmatpush.bf16.msra.mxu0 0
      %563 = vmatpush.bf16.msra.mxu0 0
      %564 = vmatpush.bf16.msra.mxu0 0
      %565 = vmatpush.bf16.msra.mxu0 0
      %566 = vmatpush.bf16.msra.mxu0 0
      %567 = vmatpush.bf16.msra.mxu0 %v558
      %568 = vmatmul.bf16.gmra.mxu0 %v555
      %v569 = vpop.f32.mrf.mxu0
      %v570 = vadd.f32 0.0, %v569
      %v571 = vpop.f32.mrf.mxu0
      %572 = vdwg.mxu0
      %v573 = vadd.f32 %v549, %v570
      %574 = vst.msk [vmem:[%s542] sm:$0xff] %vm417, %v573
      %575 = vst.msk [vmem:[%s517] sm:$0xff] %vm459, %v522
      %576 = vrot.lane.b32.xlu0 %v414, 112
      %v577 = vpop.permute.xlu0 %576
      %578 = vrot.lane.b32.xlu0 %v415, 112
      %v579 = vpop.permute.xlu0 %578
      %v581 = vsel %vm417, %v577, 0
      %v584 = vsel %vm417, %v579, 0
      %586 = vmatpush.bf16.xpose.msra.mxu0 0
      %587 = vmatpush.bf16.xpose.msra.mxu0 0
      %588 = vmatpush.bf16.xpose.msra.mxu0 0
      %589 = vmatpush.bf16.xpose.msra.mxu0 0
      %590 = vmatpush.bf16.xpose.msra.mxu0 0
      %591 = vmatpush.bf16.xpose.msra.mxu0 0
      %592 = vmatpush.bf16.xpose.msra.mxu0 0
      %593 = vmatpush.bf16.xpose.msra.mxu0 %v584
      %594 = vmatmul.bf16.gmra.mxu0 %v581
      %v595 = vpop.f32.mrf.mxu0
      %v596 = vadd.f32 %v413, %v595
      %v597 = vpop.f32.mrf.mxu0
      %598 = vdwg.mxu0
      %s599 = scalar_lea.vmem [#allocation2], 16
      %v600 = vld [vmem:[%s599] sm:$0xff]
      %v601 = vsel %vm417, %v596, -inf
      %602 = vmax.xlane.f32.xlu0 %v601
      %v603 = vpop.xlane.xlu0 %602
      %v604 = vmax.f32 %v600, %v603
      %v605 = vsub.f32 %v600, %v604
      %v606 = vmul.f32 %v605, 1.442695
      %v607 = vpow.pop %v606
      %609 = vset.pattern.permute.xlu0 0
      %610 = vperm.xlu0 %609, %v604
      %v611 = vpop.permute.xlu0 %610
      %v613 = vsub.f32 %v596, %v611
      %v614 = vmul.f32 %v613, 1.442695
      %v615 = vpow.pop %v614
      %s616 = scalar_lea.vmem [#allocation3], 16
      %v617 = vld [vmem:[%s616] sm:$0xff]
      %v618 = vmul.f32 %v607, %v617
      %v619 = vsel %vm417, %v615, 0.0
      %620 = vadd.xlane.f32.xlu0 %v619
      %v621 = vpop.xlane.xlu0 %620
      %v622 = vadd.f32 %v618, %v621
      %623 = vst.msk [vmem:[%s616] sm:$0xff] %vm459, %v622
      %s624 = scalar_lea.vmem [#allocation4], 16
      %v625 = vld [vmem:[%s624] sm:$0xff]
      %627 = vset.pattern.permute.xlu0 0
      %628 = vperm.xlu0 %627, %v607
      %v629 = vpop.permute.xlu0 %628
      %v631 = vmul.f32 %v629, %v625
      %v632 = vpack.c.bf16 %v615, %v615
      %633 = vrot.lane.b32.xlu0 %v416, 112
      %v634 = vpop.permute.xlu0 %633
      %v636 = vsel %vm417, %v632, 0
      %v639 = vsel %vm472, %v634, 0
      %641 = vmatpush.bf16.msra.mxu0 0
      %642 = vmatpush.bf16.msra.mxu0 0
      %643 = vmatpush.bf16.msra.mxu0 0
      %644 = vmatpush.bf16.msra.mxu0 0
      %645 = vmatpush.bf16.msra.mxu0 0
      %646 = vmatpush.bf16.msra.mxu0 0
      %647 = vmatpush.bf16.msra.mxu0 0
      %648 = vmatpush.bf16.msra.mxu0 %v639
      %649 = vmatmul.bf16.gmra.mxu0 %v636
      %v650 = vpop.f32.mrf.mxu0
      %v651 = vadd.f32 0.0, %v650
      %v652 = vpop.f32.mrf.mxu0
      %653 = vdwg.mxu0
      %v654 = vadd.f32 %v631, %v651
      %655 = vst.msk [vmem:[%s624] sm:$0xff] %vm417, %v654
      %656 = vst.msk [vmem:[%s599] sm:$0xff] %vm459, %v604
      %657 = vrot.lane.b32.xlu0 %v414, 104
      %v658 = vpop.permute.xlu0 %657
      %659 = vrot.lane.b32.xlu0 %v415, 104
      %v660 = vpop.permute.xlu0 %659
      %v662 = vsel %vm417, %v658, 0
      %v665 = vsel %vm417, %v660, 0
      %667 = vmatpush.bf16.xpose.msra.mxu0 0
      %668 = vmatpush.bf16.xpose.msra.mxu0 0
      %669 = vmatpush.bf16.xpose.msra.mxu0 0
      %670 = vmatpush.bf16.xpose.msra.mxu0 0
      %671 = vmatpush.bf16.xpose.msra.mxu0 0
      %672 = vmatpush.bf16.xpose.msra.mxu0 0
      %673 = vmatpush.bf16.xpose.msra.mxu0 0
      %674 = vmatpush.bf16.xpose.msra.mxu0 %v665
      %675 = vmatmul.bf16.gmra.mxu0 %v662
      %v676 = vpop.f32.mrf.mxu0
      %v677 = vadd.f32 %v413, %v676
      %v678 = vpop.f32.mrf.mxu0
      %679 = vdwg.mxu0
      %s680 = scalar_lea.vmem [#allocation2], 24
      %v681 = vld [vmem:[%s680] sm:$0xff]
      %v682 = vsel %vm417, %v677, -inf
      %683 = vmax.xlane.f32.xlu0 %v682
      %v684 = vpop.xlane.xlu0 %683
      %v685 = vmax.f32 %v681, %v684
      %v686 = vsub.f32 %v681, %v685
      %v687 = vmul.f32 %v686, 1.442695
      %v688 = vpow.pop %v687
      %690 = vset.pattern.permute.xlu0 0
      %691 = vperm.xlu0 %690, %v685
      %v692 = vpop.permute.xlu0 %691
      %v694 = vsub.f32 %v677, %v692
      %v695 = vmul.f32 %v694, 1.442695
      %v696 = vpow.pop %v695
      %s697 = scalar_lea.vmem [#allocation3], 24
      %v698 = vld [vmem:[%s697] sm:$0xff]
      %v699 = vmul.f32 %v688, %v698
      %v700 = vsel %vm417, %v696, 0.0
      %701 = vadd.xlane.f32.xlu0 %v700
      %v702 = vpop.xlane.xlu0 %701
      %v703 = vadd.f32 %v699, %v702
      %704 = vst.msk [vmem:[%s697] sm:$0xff] %vm459, %v703
      %s705 = scalar_lea.vmem [#allocation4], 24
      %v706 = vld [vmem:[%s705] sm:$0xff]
      %708 = vset.pattern.permute.xlu0 0
      %709 = vperm.xlu0 %708, %v688
      %v710 = vpop.permute.xlu0 %709
      %v712 = vmul.f32 %v710, %v706
      %v713 = vpack.c.bf16 %v696, %v696
      %714 = vrot.lane.b32.xlu0 %v416, 104
      %v715 = vpop.permute.xlu0 %714
      %v717 = vsel %vm417, %v713, 0
      %v720 = vsel %vm472, %v715, 0
      %722 = vmatpush.bf16.msra.mxu0 0
      %723 = vmatpush.bf16.msra.mxu0 0
      %724 = vmatpush.bf16.msra.mxu0 0
      %725 = vmatpush.bf16.msra.mxu0 0
      %726 = vmatpush.bf16.msra.mxu0 0
      %727 = vmatpush.bf16.msra.mxu0 0
      %728 = vmatpush.bf16.msra.mxu0 0
      %729 = vmatpush.bf16.msra.mxu0 %v720
      %730 = vmatmul.bf16.gmra.mxu0 %v717
      %v731 = vpop.f32.mrf.mxu0
      %v732 = vadd.f32 0.0, %v731
      %v733 = vpop.f32.mrf.mxu0
      %734 = vdwg.mxu0
      %v735 = vadd.f32 %v712, %v732
      %736 = vst.msk [vmem:[%s705] sm:$0xff] %vm417, %v735
      %737 = vst.msk [vmem:[%s680] sm:$0xff] %vm459, %v685
      // Predicated region
      $region45: #{transformer_forward.40} parent=39 // pred_check
        %p738 = pneg %p368
      $region46: #{transformer_forward.40} parent=39 // pred_check_branch
        %740 = sbr.rel (%p738) target = $region48
      $region47: #{transformer_forward.40} parent=39 // pred_region
        %v741 = vld [vmem:[#allocation4] sm:$0xff]
        %v742 = vld [vmem:[#allocation3] sm:$0xff]
        %744 = vset.pattern.permute.xlu0 0
        %745 = vperm.xlu0 %744, %v742
        %v746 = vpop.permute.xlu0 %745
        %v748 = vrcp.pop %v746
        %v749 = vmul.f32 %v746, %v748
        %v750 = vsub.f32 1.0, %v749
        %v751 = vmul.f32 %v748, %v750
        %v752 = vadd.f32 %v748, %v751
        %vm753 = vweird.f32 %v746
        %vm754 = vweird.f32 %v748
        %vm755 = vmor %vm753, %vm754
        %v756 = vsel %vm755, %v748, %v752
        %v757 = vand.u32 2147483647, %v746
        %vm758 = vcmp.eq.f32.partialorder %v757, 8.507059e+37
        %v759 = vand.u32 %v746, 2147483648
        %v760 = vor.u32 1.1754944e-38, %v759
        %v761 = vsel %vm758, %v760, %v756
        %v762 = vmul.f32 %v741, %v761
        %v763 = vld [vmem:[%s542] sm:$0xff]
        %v764 = vld [vmem:[%s534] sm:$0xff]
        %766 = vset.pattern.permute.xlu0 0
        %767 = vperm.xlu0 %766, %v764
        %v768 = vpop.permute.xlu0 %767
        %v770 = vrcp.pop %v768
        %v771 = vmul.f32 %v768, %v770
        %v772 = vsub.f32 1.0, %v771
        %v773 = vmul.f32 %v770, %v772
        %v774 = vadd.f32 %v770, %v773
        %vm775 = vweird.f32 %v768
        %vm776 = vweird.f32 %v770
        %vm777 = vmor %vm775, %vm776
        %v778 = vsel %vm777, %v770, %v774
        %v779 = vand.u32 2147483647, %v768
        %vm780 = vcmp.eq.f32.partialorder %v779, 8.507059e+37
        %v781 = vand.u32 %v768, 2147483648
        %v782 = vor.u32 1.1754944e-38, %v781
        %v783 = vsel %vm780, %v782, %v778
        %v784 = vmul.f32 %v763, %v783
        %v785 = vld [vmem:[%s624] sm:$0xff]
        %v786 = vld [vmem:[%s616] sm:$0xff]
        %788 = vset.pattern.permute.xlu0 0
        %789 = vperm.xlu0 %788, %v786
        %v790 = vpop.permute.xlu0 %789
        %v792 = vrcp.pop %v790
        %v793 = vmul.f32 %v790, %v792
        %v794 = vsub.f32 1.0, %v793
        %v795 = vmul.f32 %v792, %v794
        %v796 = vadd.f32 %v792, %v795
        %vm797 = vweird.f32 %v790
        %vm798 = vweird.f32 %v792
        %vm799 = vmor %vm797, %vm798
        %v800 = vsel %vm799, %v792, %v796
        %v801 = vand.u32 2147483647, %v790
        %vm802 = vcmp.eq.f32.partialorder %v801, 8.507059e+37
        %v803 = vand.u32 %v790, 2147483648
        %v804 = vor.u32 1.1754944e-38, %v803
        %v805 = vsel %vm802, %v804, %v800
        %v806 = vmul.f32 %v785, %v805
        %v807 = vld [vmem:[%s705] sm:$0xff]
        %v808 = vld [vmem:[%s697] sm:$0xff]
        %810 = vset.pattern.permute.xlu0 0
        %811 = vperm.xlu0 %810, %v808
        %v812 = vpop.permute.xlu0 %811
        %v814 = vrcp.pop %v812
        %v815 = vmul.f32 %v812, %v814
        %v816 = vsub.f32 1.0, %v815
        %v817 = vmul.f32 %v814, %v816
        %v818 = vadd.f32 %v814, %v817
        %vm819 = vweird.f32 %v812
        %vm820 = vweird.f32 %v814
        %vm821 = vmor %vm819, %vm820
        %v822 = vsel %vm821, %v814, %v818
        %v823 = vand.u32 2147483647, %v812
        %vm824 = vcmp.eq.f32.partialorder %v823, 8.507059e+37
        %v825 = vand.u32 %v812, 2147483648
        %v826 = vor.u32 1.1754944e-38, %v825
        %v827 = vsel %vm824, %v826, %v822
        %v828 = vmul.f32 %v807, %v827
        %830 = vrot.lane.b32.xlu0 %v784, 8
        %v831 = vpop.permute.xlu0 %830
        %834 = vrot.lane.b32.xlu0 %v806, 16
        %v835 = vpop.permute.xlu0 %834
        %838 = vrot.lane.b32.xlu0 %v828, 24
        %v839 = vpop.permute.xlu0 %838
        %v841 = vsel %vm417, %v762, %v831
        %vm842 = vcmask 130048
        %v843 = vsel %vm842, %v841, %v835
        %vm844 = vcmask 195584
        %v845 = vsel %vm844, %v843, %v839
        %vm846 = vcmask 261120
        %847 = vst.msk [vmem:[%s366] sm:$0xff] %vm846, %v845
      $region48: #{transformer_forward.40} parent=39 // pred_fallthru
        _
      %p848 = scmp.lt.s32.totalorder %s21, 1
      %s849 = scalar_select %p848, %s21, 1
      %p850 = scmp.lt.s32.totalorder %s22, 0
      %s851 = scalar_select %p850, %s22, 0
      %s852 = sadd.s32 %s851, %s849
      %s853 = smul.addr %s852, 8
      %s854 = scalar_lea.vmem %s5, %s853
      // Predicated region
      $region49: #{transformer_forward.40} parent=39 // pred_check
        %p855 = pneg %p195
      $region50: #{transformer_forward.40} parent=39 // pred_check_branch
        %857 = sbr.rel (%p855) target = $region52
      $region51: #{transformer_forward.40} parent=39 // pred_region
        _
      $region52: #{transformer_forward.40} parent=39 // pred_fallthru
        _
    $region40: #{transformer_forward.40} parent=5 // pred_fallthru
      _
    %p858 = scmp.le.s32.totalorder 2, %s11
    // Predicated region
    $region53: #{transformer_forward.40} parent=5 // pred_check
      %p859 = pneg %p858
    $region54: #{transformer_forward.40} parent=5 // pred_check_branch
      %861 = sbr.rel (%p859) target = $region56
    $region55: #{transformer_forward.40} parent=5 // pred_region
      %s862 = ssub.s32 %s11, 2
      // Predicated region
      $region57: #{transformer_forward.40} parent=55 // pred_check
        %p863 = pneg %p201
      $region58: #{transformer_forward.40} parent=55 // pred_check_branch
        %865 = sbr.rel (%p863) target = $region60
      $region59: #{transformer_forward.40} parent=55 // pred_region
        %p866 = scmp.lt.s32.totalorder %s24, 1
        %s867 = scalar_select %p866, %s24, 1
        %p868 = scmp.lt.s32.totalorder %s25, 0
        %s869 = scalar_select %p868, %s25, 0
        %s870 = sadd.s32 %s869, %s867
        %s871 = smul.addr %s870, 8
        %s872 = scalar_lea.vmem %s5, %s871
      $region60: #{transformer_forward.40} parent=55 // pred_fallthru
        _
    $region56: #{transformer_forward.40} parent=5 // pred_fallthru
      _
  $region6: #{transformer_forward.40} parent=0 // loop_footer
    %s15 = sadd.s32 1, %s11
  $region7: #{transformer_forward.40} parent=0 // loop_footer_branch
    %10 = sbr.rel target = $region3
  $region8: #{transformer_forward.40} parent=0 // loop_exit
    _

// kernel: transformer_forward.42
$region0: #{transformer_forward.42}
  #allocation0 [shape = 'u32[]', space=smem, size = 0x4, offset = 0x4, fixed_abs, tag = 'smem constant byte address 0x4 - core index']
  #allocation1 [shape = 'u32[72,128]{1,0:T(1,128)}', space=vmem, size = 0x9000, scoped, tag = 'internal scratch']
  %s0 = inlined_call_operand.vmem [shape: f32[16,32], index: 0, kind: input, shape index: {}]
  %s1 = inlined_call_operand.vmem [shape: bf16[32,32], index: 1, kind: input, shape index: {}]
  %s2 = inlined_call_operand.vmem [shape: f32[1,32], index: 2, kind: input, shape index: {}]
  %s3 = inlined_call_operand.vmem [shape: f32[16,32], index: 3, kind: output, shape index: {}]
  %s4 = sld [smem:[#allocation0]]
  $region30: #{transformer_forward.42} parent=0
    _
  %s6 = ssub.s32 1, %s4
  %s7 = scalar_select 0, %s6, %s4
  // Predicated region
  $region2: #{transformer_forward.42} parent=0 // pred_check
    _
  $region3: #{transformer_forward.42} parent=0 // pred_check_branch
    %9 = sbr.rel (0) target = $region5
  $region4: #{transformer_forward.42} parent=0 // pred_region
    _
  $region5: #{transformer_forward.42} parent=0 // pred_fallthru
    _
  // Predicated region
  $region6: #{transformer_forward.42} parent=0 // pred_check
    _
  $region7: #{transformer_forward.42} parent=0 // pred_check_branch
    %11 = sbr.rel (0) target = $region9
  $region8: #{transformer_forward.42} parent=0 // pred_region
    _
  $region9: #{transformer_forward.42} parent=0 // pred_fallthru
    _
  // Predicated region
  $region10: #{transformer_forward.42} parent=0 // pred_check
    _
  $region11: #{transformer_forward.42} parent=0 // pred_check_branch
    %13 = sbr.rel (0) target = $region13
  $region12: #{transformer_forward.42} parent=0 // pred_region
    _
  $region13: #{transformer_forward.42} parent=0 // pred_fallthru
    _
  %p15 = scmp.eq.s32.totalorder 0, 0
  // Predicated region
  $region14: #{transformer_forward.42} parent=0 // pred_check
    %p16 = pneg %p15
  $region15: #{transformer_forward.42} parent=0 // pred_check_branch
    %18 = sbr.rel (%p16) target = $region17
  $region16: #{transformer_forward.42} parent=0 // pred_region
    %vm19 = vcmask 261120
    %20 = vst.msk [vmem:[%s3] sm:$0xff] %vm19, 0.0
    %21 = vst.msk [vmem:[%s3 + $0x8] sm:$0xff] %vm19, 0.0
  $region17: #{transformer_forward.42} parent=0 // pred_fallthru
    _
  %v22 = vld [vmem:[%s3] sm:$0xff]
  %v23 = vld [vmem:[%s3 + $0x8] sm:$0xff]
  %v24 = vld [vmem:[%s0] sm:$0xff]
  %v25 = vld [vmem:[%s0 + $0x8] sm:$0xff]
  %v26 = vpack.c.bf16 %v25, %v24
  %v27 = vld [vmem:[%s1] sm:$0xf]
  %v28 = vld [vmem:[%s1 + $0x4] sm:$0xf]
  %v29 = vld [vmem:[%s1 + $0x8] sm:$0xf]
  %v30 = vld [vmem:[%s1 + $0xc] sm:$0xf]
  %v35 = vunpack.c.l.b16 %v27
  %v36 = vunpack.c.l.b16 %v28
  %v37 = vunpack.c.l.b16 %v29
  %v38 = vunpack.c.l.b16 %v30
  %v39 = vpack.c.b16 %v36, %v35
  %v40 = vpack.c.b16 %v38, %v37
  %vm43 = vcmask 261120
  %v45 = vsel %vm43, %v26, 0
  %47 = vmatpush.bf16.msra.mxu0 0
  %48 = vmatpush.bf16.msra.mxu0 0
  %49 = vmatpush.bf16.msra.mxu0 0
  %50 = vmatpush.bf16.msra.mxu0 0
  %51 = vmatpush.bf16.msra.mxu0 0
  %52 = vmatpush.bf16.msra.mxu0 0
  %53 = vmatpush.bf16.msra.mxu0 %v40
  %54 = vmatpush.bf16.msra.mxu0 %v39
  %55 = vmatmul.bf16.gmra.mxu0 %v45
  %v56 = vpop.f32.mrf.mxu0
  %v57 = vadd.f32 0.0, %v56
  %v58 = vpop.f32.mrf.mxu0
  %v59 = vadd.f32 0.0, %v58
  %60 = vdwg.mxu0
  %v61 = vadd.f32 %v22, %v57
  %v62 = vadd.f32 %v23, %v59
  %63 = vst.msk [vmem:[%s3] sm:$0xff] %vm43, %v61
  %64 = vst.msk [vmem:[%s3 + $0x8] sm:$0xff] %vm43, %v62
  // Predicated region
  $region18: #{transformer_forward.42} parent=0 // pred_check
    %p65 = pneg %p15
  $region19: #{transformer_forward.42} parent=0 // pred_check_branch
    %67 = sbr.rel (%p65) target = $region21
  $region20: #{transformer_forward.42} parent=0 // pred_region
    %v68 = vld [vmem:[%s3] sm:$0xff]
    %v69 = vld [vmem:[%s3 + $0x8] sm:$0xff]
    %v70 = vld [vmem:[%s2] sm:$0x1]
    %v72 = vperm.slane %v70, 0
    %v74 = vadd.f32 %v68, %v72
    %v75 = vadd.f32 %v69, %v72
    %76 = vst.msk [vmem:[%s3] sm:$0xff] %vm43, %v74
    %77 = vst.msk [vmem:[%s3 + $0x8] sm:$0xff] %vm43, %v75
  $region21: #{transformer_forward.42} parent=0 // pred_fallthru
    _
  // Predicated region
  $region22: #{transformer_forward.42} parent=0 // pred_check
    _
  $region23: #{transformer_forward.42} parent=0 // pred_check_branch
    %79 = sbr.rel (0) target = $region25
  $region24: #{transformer_forward.42} parent=0 // pred_region
    _
  $region25: #{transformer_forward.42} parent=0 // pred_fallthru
    _
  // Predicated region
  $region26: #{transformer_forward.42} parent=0 // pred_check
    _
  $region27: #{transformer_forward.42} parent=0 // pred_check_branch
    %81 = sbr.rel (0) target = $region29
  $region28: #{transformer_forward.42} parent=0 // pred_region
    _
  $region29: #{transformer_forward.42} parent=0 // pred_fallthru
    _

// kernel: transformer_forward.57
$region0: #{transformer_forward.57}
  #allocation0 [shape = 'u32[]', space=smem, size = 0x4, offset = 0x4, fixed_abs, tag = 'smem constant byte address 0x4 - core index']
  #allocation1 [shape = 'u32[72,128]{1,0:T(1,128)}', space=vmem, size = 0x9000, scoped, tag = 'internal scratch']
  %s0 = inlined_call_operand.vmem [shape: f32[16,32], index: 0, kind: input, shape index: {}]
  %s1 = inlined_call_operand.vmem [shape: bf16[32,50], index: 1, kind: input, shape index: {}]
  %s2 = inlined_call_operand.vmem [shape: f32[1,50], index: 2, kind: input, shape index: {}]
  %s3 = inlined_call_operand.hbm [shape: f32[16,50], index: 3, kind: output, shape index: {}]
  %s4 = sld [smem:[#allocation0]]
  $region30: #{transformer_forward.57} parent=0
    _
  %s6 = ssub.s32 1, %s4
  %s7 = scalar_select 0, %s6, %s4
  $region1: #{transformer_forward.57} parent=0
    #allocation2 [shape = 'u8[8192]{0}', space=vmem, size = 0x2000, scoped, tag = 'output window, operand 0, single buffered']
    #allocation3 [shape = 's32[1]{0}', space=sflag, size = 0x4, scoped, tag = 'scoped memory for transformer_forward.57']
    %8 = vsyncpa [#allocation3], 0
    // Predicated region
    $region2: #{transformer_forward.57} parent=1 // pred_check
      _
    $region3: #{transformer_forward.57} parent=1 // pred_check_branch
      %10 = sbr.rel (0) target = $region5
    $region4: #{transformer_forward.57} parent=1 // pred_region
      _
    $region5: #{transformer_forward.57} parent=1 // pred_fallthru
      _
    // Predicated region
    $region6: #{transformer_forward.57} parent=1 // pred_check
      _
    $region7: #{transformer_forward.57} parent=1 // pred_check_branch
      %12 = sbr.rel (0) target = $region9
    $region8: #{transformer_forward.57} parent=1 // pred_region
      _
    $region9: #{transformer_forward.57} parent=1 // pred_fallthru
      _
    // Predicated region
    $region10: #{transformer_forward.57} parent=1 // pred_check
      _
    $region11: #{transformer_forward.57} parent=1 // pred_check_branch
      %14 = sbr.rel (0) target = $region13
    $region12: #{transformer_forward.57} parent=1 // pred_region
      _
    $region13: #{transformer_forward.57} parent=1 // pred_fallthru
      _
    %p16 = scmp.eq.s32.totalorder 0, 0
    // Predicated region
    $region14: #{transformer_forward.57} parent=1 // pred_check
      %p17 = pneg %p16
    $region15: #{transformer_forward.57} parent=1 // pred_check_branch
      %19 = sbr.rel (%p17) target = $region17
    $region16: #{transformer_forward.57} parent=1 // pred_region
      %vm20 = vcmask 408576
      %21 = vst.msk [vmem:[#allocation2] sm:$0xff] %vm20, 0.0
      %22 = vst.msk [vmem:[#allocation2 + $0x8] sm:$0xff] %vm20, 0.0
    $region17: #{transformer_forward.57} parent=1 // pred_fallthru
      _
    %v23 = vld [vmem:[#allocation2] sm:$0xff]
    %v24 = vld [vmem:[#allocation2 + $0x8] sm:$0xff]
    %v25 = vld [vmem:[%s0] sm:$0xff]
    %v26 = vld [vmem:[%s0 + $0x8] sm:$0xff]
    %v27 = vpack.c.bf16 %v26, %v25
    %v28 = vld [vmem:[%s1] sm:$0xf]
    %v29 = vld [vmem:[%s1 + $0x4] sm:$0xf]
    %v30 = vld [vmem:[%s1 + $0x8] sm:$0xf]
    %v31 = vld [vmem:[%s1 + $0xc] sm:$0xf]
    %v36 = vunpack.c.l.b16 %v28
    %v37 = vunpack.c.l.b16 %v29
    %v38 = vunpack.c.l.b16 %v30
    %v39 = vunpack.c.l.b16 %v31
    %v40 = vpack.c.b16 %v37, %v36
    %v41 = vpack.c.b16 %v39, %v38
    %vm44 = vcmask 261120
    %v46 = vsel %vm44, %v27, 0
    %48 = vmatpush.bf16.msra.mxu0 0
    %49 = vmatpush.bf16.msra.mxu0 0
    %50 = vmatpush.bf16.msra.mxu0 0
    %51 = vmatpush.bf16.msra.mxu0 0
    %52 = vmatpush.bf16.msra.mxu0 0
    %53 = vmatpush.bf16.msra.mxu0 0
    %54 = vmatpush.bf16.msra.mxu0 %v41
    %55 = vmatpush.bf16.msra.mxu0 %v40
    %56 = vmatmul.bf16.gmra.mxu0 %v46
    %v57 = vpop.f32.mrf.mxu0
    %v58 = vadd.f32 0.0, %v57
    %v59 = vpop.f32.mrf.mxu0
    %v60 = vadd.f32 0.0, %v59
    %61 = vdwg.mxu0
    %v62 = vadd.f32 %v23, %v58
    %v63 = vadd.f32 %v24, %v60
    %vm64 = vcmask 408576
    %65 = vst.msk [vmem:[#allocation2] sm:$0xff] %vm64, %v62
    %66 = vst.msk [vmem:[#allocation2 + $0x8] sm:$0xff] %vm64, %v63
    // Predicated region
    $region18: #{transformer_forward.57} parent=1 // pred_check
      %p67 = pneg %p16
    $region19: #{transformer_forward.57} parent=1 // pred_check_branch
      %69 = sbr.rel (%p67) target = $region21
    $region20: #{transformer_forward.57} parent=1 // pred_region
      %v70 = vld [vmem:[#allocation2] sm:$0xff]
      %v71 = vld [vmem:[#allocation2 + $0x8] sm:$0xff]
      %v72 = vld [vmem:[%s2] sm:$0x1]
      %v74 = vperm.slane %v72, 0
      %v76 = vadd.f32 %v70, %v74
      %v77 = vadd.f32 %v71, %v74
      %78 = vst.msk [vmem:[#allocation2] sm:$0xff] %vm64, %v76
      %79 = vst.msk [vmem:[#allocation2 + $0x8] sm:$0xff] %vm64, %v77
    $region21: #{transformer_forward.57} parent=1 // pred_fallthru
      _
    // Predicated region
    $region22: #{transformer_forward.57} parent=1 // pred_check
      _
    $region23: #{transformer_forward.57} parent=1 // pred_check_branch
      %81 = sbr.rel (0) target = $region25
    $region24: #{transformer_forward.57} parent=1 // pred_region
      %83 = vsyncadd [#allocation3], 0
      %s84 = sshll.u32 [#allocation2], 4
      %s85 = int_to_ptr.vmem [resolvable:$true] %s84
      %s86 = sshll.u32 %s3, 4
      %s87 = int_to_ptr.hbm [resolvable:$true] %s86
      %92 = dma.vmem_to_hbm [thread:$0]  %s85, 256, %s87, [#allocation3], 128, 128, 8
    $region25: #{transformer_forward.57} parent=1 // pred_fallthru
      _
    // Predicated region
    $region26: #{transformer_forward.57} parent=1 // pred_check
      _
    $region27: #{transformer_forward.57} parent=1 // pred_check_branch
      %94 = sbr.rel (0) target = $region29
    $region28: #{transformer_forward.57} parent=1 // pred_region
      %96 = dma.done [#allocation3], 256
    $region29: #{transformer_forward.57} parent=1 // pred_fallthru
      _
    %97 = vsyncpa [#allocation3], 1

</llo_original>
